<compile_context>
chip_gen: v7x
topology: tpu7x:2x2x1
jax: 0.10.0
libtpu: 0.0.40
codegen_flags: <defaults>
</compile_context>

<pallas_src>
import jax
import jax.numpy as jnp
from jax.experimental import pallas as pl
from jax.experimental.pallas import tpu as pltpu

EPS = 1e-3
LANES = 128  # pad channel dim to full lane width


def _bn_relu_conv_bn_kernel(x_ref, w_ref, g1_ref, b1_ref, g2_ref, b2_ref,
                            out_ref, patch_ref):
    N, H, W, Cp = x_ref.shape
    M = N * H * W
    inv_m = 1.0 / M

    x = x_ref[...].reshape(M, Cp)                        # f32, lane-dense (Cp == 128)

    # ---- BatchNorm #1 folded into per-channel scale/shift (one-pass stats) ----
    mean1 = jnp.sum(x, axis=0, keepdims=True) * inv_m
    var1 = jnp.sum(x * x, axis=0, keepdims=True) * inv_m - mean1 * mean1
    scale1 = g1_ref[...] * jax.lax.rsqrt(var1 + EPS)     # rsqrt -> EUP (free slot)
    shift1 = b1_ref[...] - mean1 * scale1
    # ---- ReLU ----
    y = jnp.maximum(x * scale1 + shift1, 0.0)            # (M, Cp) f32

    # ---- dx (W) shifts: XLU sublane rolls + tiny broadcast boundary mask ----
    y3 = y.reshape(N * H, W, Cp)
    w_idx = jax.lax.broadcasted_iota(jnp.int32, (1, W, 1), 1)   # broadcasts in where
    y_c = y3                                                              # reads w
    y_l = jnp.where(w_idx == 0, 0.0, pltpu.roll(y3, shift=1, axis=1))     # reads w-1
    y_r = jnp.where(w_idx == W - 1, 0.0,
                    pltpu.roll(y3, shift=W - 1, axis=1))                  # reads w+1

    # One bf16 cast per W-tap; the dy (H) shift is handled by the store location.
    taps = tuple(t.astype(jnp.bfloat16).reshape(N, H, W, Cp)
                 for t in (y_l, y_c, y_r))
    zero_row = jnp.zeros((N, 1, W, Cp), jnp.bfloat16)

    # ---- im2col: write each (dy, dx) tap straight into the bf16 scratch ----
    # Column block k = dy*3 + dx matches the (KH, KW, Cin) weight flattening.
    for dy in range(3):
        for dx in range(3):
            k = dy * 3 + dx
            cols = slice(k * Cp, (k + 1) * Cp)           # static, 128-lane aligned
            v = taps[dx]
            if dy == 0:      # reads h-1: patch row h takes tap row h-1, row 0 is zero
                patch_ref[:, 1:, :, cols] = v[:, :H - 1]
                patch_ref[:, 0:1, :, cols] = zero_row
            elif dy == 2:    # reads h+1: patch row h takes tap row h+1, last row zero
                patch_ref[:, :H - 1, :, cols] = v[:, 1:]
                patch_ref[:, H - 1:H, :, cols] = zero_row
            else:            # reads h
                patch_ref[:, :, :, cols] = v

    # ---- Conv2d 3x3 as one deep MXU matmul: (M, 9*Cp) @ (9*Cp, Cp), f32 acc ----
    patch = patch_ref[...].reshape(M, 9 * Cp)
    acc = jnp.dot(patch, w_ref[...], preferred_element_type=jnp.float32)  # (M, Cp)

    # ---- BatchNorm #2, folded scale/shift ----
    mean2 = jnp.sum(acc, axis=0, keepdims=True) * inv_m
    var2 = jnp.sum(acc * acc, axis=0, keepdims=True) * inv_m - mean2 * mean2
    scale2 = g2_ref[...] * jax.lax.rsqrt(var2 + EPS)
    shift2 = b2_ref[...] - mean2 * scale2
    out_ref[...] = (acc * scale2 + shift2).reshape(N, H, W, Cp).astype(out_ref.dtype)


@jax.jit
def bn_relu_conv_bn(x_nchw, w_oihw, g1, b1, g2, b2):
    """Wrapper: NCHW in, NCHW out (matches the PyTorch module)."""
    N, C, H, W = x_nchw.shape
    Cout = w_oihw.shape[0]
    Cp = LANES

    # NHWC, channels zero-padded to 128 lanes (kept in the wrapper: guaranteed
    # lowering; the padded copy is tiny at this module's fixed size).
    x_nhwc = jnp.transpose(x_nchw, (0, 2, 3, 1)).astype(jnp.float32)
    x_nhwc = jnp.pad(x_nhwc, ((0, 0), (0, 0), (0, 0), (0, Cp - C)))

    # Weight: OIHW -> (KH, KW, Cin, Cout), pad Cin/Cout to 128, im2col-flatten, bf16.
    w_hwio = jnp.transpose(w_oihw, (2, 3, 1, 0)).astype(jnp.float32)
    w_hwio = jnp.pad(w_hwio, ((0, 0), (0, 0), (0, Cp - C), (0, Cp - Cout)))
    w_mat = w_hwio.reshape(9 * Cp, Cp).astype(jnp.bfloat16)

    def pad_vec(v, n):
        return jnp.pad(v.astype(jnp.float32).reshape(-1), (0, n)).reshape(1, Cp)

    vspec = pl.BlockSpec(memory_space=pltpu.MemorySpace.VMEM)
    out_nhwc = pl.pallas_call(
        _bn_relu_conv_bn_kernel,
        out_shape=jax.ShapeDtypeStruct((N, H, W, Cp), x_nchw.dtype),
        in_specs=[vspec] * 6,
        out_specs=vspec,
        scratch_shapes=[pltpu.VMEM((N, H, W, 9 * Cp), jnp.bfloat16)],
        compiler_params=pltpu.CompilerParams(vmem_limit_bytes=32 * 1024 * 1024),
    )(x_nhwc, w_mat,
      pad_vec(g1, Cp - C), pad_vec(b1, Cp - C),
      pad_vec(g2, Cp - Cout), pad_vec(b2, Cp - Cout))

    # Slice the padded channels away, back to NCHW.
    return jnp.transpose(out_nhwc[..., :Cout], (0, 3, 1, 2))


def _reference(x, w, g1, b1, g2, b2):
    """Pure-JAX reference of the PyTorch forward (training-mode BN)."""
    def bn(t, g, b):
        m = jnp.mean(t, axis=(0, 2, 3), keepdims=True)
        v = jnp.mean((t - m) ** 2, axis=(0, 2, 3), keepdims=True)
        return ((t - m) * jax.lax.rsqrt(v + EPS)
                * g.reshape(1, -1, 1, 1) + b.reshape(1, -1, 1, 1))

    y = jnp.maximum(bn(x, g1, b1), 0.0)
    z = jax.lax.conv_general_dilated(
        y, w, window_strides=(1, 1), padding=((1, 1), (1, 1)),
        dimension_numbers=('NCHW', 'OIHW', 'NCHW'),
        precision=jax.lax.Precision.HIGHEST)
    return bn(z, g2, b2)


if __name__ == "__main__":
    # Channel count (96) is fixed by the module; batch / spatial kept small.
    N, C, H, W = 2, 96, 16, 16

    key = jax.random.PRNGKey(0)
    kx, kw, kg1, kb1, kg2, kb2 = jax.random.split(key, 6)

    x = jax.random.normal(kx, (N, C, H, W), dtype=jnp.float32)
    w = jax.random.normal(kw, (C, C, 3, 3), dtype=jnp.float32) * 0.05   # OIHW
    gamma1 = 1.0 + 0.1 * jax.random.normal(kg1, (C,), dtype=jnp.float32)
    beta1 = 0.1 * jax.random.normal(kb1, (C,), dtype=jnp.float32)
    gamma2 = 1.0 + 0.1 * jax.random.normal(kg2, (C,), dtype=jnp.float32)
    beta2 = 0.1 * jax.random.normal(kb2, (C,), dtype=jnp.float32)

    out = bn_relu_conv_bn(x, w, gamma1, beta1, gamma2, beta2)
    out = jax.block_until_ready(out)

    ref = _reference(x, w, gamma1, beta1, gamma2, beta2)
    assert out.shape == (N, C, H, W), out.shape
    # bf16 MXU operands (f32 accumulation) -> slightly looser tolerance than pure f32.
    assert jnp.allclose(out, ref, atol=2e-2, rtol=2e-2), (
        float(jnp.max(jnp.abs(out - ref))))

    print("KERNEL_OK")
</pallas_src>

<mosaic_0001>
module attributes {stable_mosaic.version = 11 : i64} {
  func.func @_bn_relu_conv_bn_kernel(%arg0: memref<2x16x16x128xf32, #tpu.memory_space<vmem>>, %arg1: memref<1152x128xbf16, #tpu.memory_space<vmem>>, %arg2: memref<1x128xf32, #tpu.memory_space<vmem>>, %arg3: memref<1x128xf32, #tpu.memory_space<vmem>>, %arg4: memref<1x128xf32, #tpu.memory_space<vmem>>, %arg5: memref<1x128xf32, #tpu.memory_space<vmem>>, %arg6: memref<2x16x16x128xf32, #tpu.memory_space<vmem>>, %arg7: memref<2x16x16x1152xbf16, #tpu.memory_space<vmem>>) attributes {dimension_semantics = [], scalar_prefetch = 0 : i64, scratch_operands = 1 : i64, tpu.core_type = #tpu.core_type<tc>} {
    %c0 = arith.constant 0 : index
    %c0_0 = arith.constant 0 : index
    %c0_1 = arith.constant 0 : index
    %c0_2 = arith.constant 0 : index
    %0 = vector.load %arg0[%c0, %c0_0, %c0_1, %c0_2] : memref<2x16x16x128xf32, #tpu.memory_space<vmem>>, vector<2x16x16x128xf32>
    %1 = vector.shape_cast %0 : vector<2x16x16x128xf32> to vector<512x128xf32>
    %cst = arith.constant dense<0.000000e+00> : vector<128xf32>
    %2 = vector.multi_reduction <add>, %1, %cst [0] : vector<512x128xf32> to vector<128xf32>
    %3 = vector.shape_cast %2 : vector<128xf32> to vector<1x128xf32>
    %cst_3 = arith.constant 0.001953125 : f32
    %4 = vector.broadcast %cst_3 : f32 to vector<1x128xf32>
    %5 = arith.mulf %3, %4 : vector<1x128xf32>
    %6 = arith.mulf %1, %1 : vector<512x128xf32>
    %cst_4 = arith.constant dense<0.000000e+00> : vector<128xf32>
    %7 = vector.multi_reduction <add>, %6, %cst_4 [0] : vector<512x128xf32> to vector<128xf32>
    %8 = vector.shape_cast %7 : vector<128xf32> to vector<1x128xf32>
    %cst_5 = arith.constant 0.001953125 : f32
    %9 = vector.broadcast %cst_5 : f32 to vector<1x128xf32>
    %10 = arith.mulf %8, %9 : vector<1x128xf32>
    %11 = arith.mulf %5, %5 : vector<1x128xf32>
    %12 = arith.subf %10, %11 : vector<1x128xf32>
    %c0_6 = arith.constant 0 : index
    %c0_7 = arith.constant 0 : index
    %13 = vector.load %arg2[%c0_6, %c0_7] : memref<1x128xf32, #tpu.memory_space<vmem>>, vector<1x128xf32>
    %cst_8 = arith.constant 1.000000e-03 : f32
    %14 = vector.broadcast %cst_8 : f32 to vector<1x128xf32>
    %15 = arith.addf %12, %14 : vector<1x128xf32>
    %16 = math.rsqrt %15 : vector<1x128xf32>
    %17 = arith.mulf %13, %16 : vector<1x128xf32>
    %c0_9 = arith.constant 0 : index
    %c0_10 = arith.constant 0 : index
    %18 = vector.load %arg3[%c0_9, %c0_10] : memref<1x128xf32, #tpu.memory_space<vmem>>, vector<1x128xf32>
    %19 = arith.mulf %5, %17 : vector<1x128xf32>
    %20 = arith.subf %18, %19 : vector<1x128xf32>
    %21 = vector.broadcast %17 : vector<1x128xf32> to vector<512x128xf32>
    %22 = arith.mulf %1, %21 : vector<512x128xf32>
    %23 = vector.broadcast %20 : vector<1x128xf32> to vector<512x128xf32>
    %24 = arith.addf %22, %23 : vector<512x128xf32>
    %cst_11 = arith.constant 0.000000e+00 : f32
    %25 = vector.broadcast %cst_11 : f32 to vector<512x128xf32>
    %26 = arith.maximumf %24, %25 : vector<512x128xf32>
    %27 = vector.shape_cast %26 : vector<512x128xf32> to vector<32x16x128xf32>
    %28 = tpu.iota {dimensions = array<i32: 1>} : vector<1x16x1xi32>
    %c0_i32 = arith.constant 0 : i32
    %29 = vector.broadcast %c0_i32 : i32 to vector<1x16x1xi32>
    %30 = arith.cmpi eq, %28, %29 : vector<1x16x1xi32>
    %c1_i32 = arith.constant 1 : i32
    %31 = tpu.dynamic_rotate %27 by %c1_i32 dim 1 : vector<32x16x128xf32>, i32 -> vector<32x16x128xf32>
    %cst_12 = arith.constant 0.000000e+00 : f32
    %32 = vector.shape_cast %30 : vector<1x16x1xi1> to vector<1x16x1xi1>
    %33 = vector.broadcast %32 : vector<1x16x1xi1> to vector<32x16x128xi1>
    %34 = vector.broadcast %cst_12 : f32 to vector<32x16x128xf32>
    %35 = arith.select %33, %34, %31 : vector<32x16x128xi1>, vector<32x16x128xf32>
    %c15_i32 = arith.constant 15 : i32
    %36 = vector.broadcast %c15_i32 : i32 to vector<1x16x1xi32>
    %37 = arith.cmpi eq, %28, %36 : vector<1x16x1xi32>
    %c15_i32_13 = arith.constant 15 : i32
    %38 = tpu.dynamic_rotate %27 by %c15_i32_13 dim 1 : vector<32x16x128xf32>, i32 -> vector<32x16x128xf32>
    %cst_14 = arith.constant 0.000000e+00 : f32
    %39 = vector.shape_cast %37 : vector<1x16x1xi1> to vector<1x16x1xi1>
    %40 = vector.broadcast %39 : vector<1x16x1xi1> to vector<32x16x128xi1>
    %41 = vector.broadcast %cst_14 : f32 to vector<32x16x128xf32>
    %42 = arith.select %40, %41, %38 : vector<32x16x128xi1>, vector<32x16x128xf32>
    %43 = arith.truncf %35 : vector<32x16x128xf32> to vector<32x16x128xbf16>
    %44 = vector.shape_cast %43 : vector<32x16x128xbf16> to vector<2x16x16x128xbf16>
    %45 = arith.truncf %27 : vector<32x16x128xf32> to vector<32x16x128xbf16>
    %46 = vector.shape_cast %45 : vector<32x16x128xbf16> to vector<2x16x16x128xbf16>
    %47 = arith.truncf %42 : vector<32x16x128xf32> to vector<32x16x128xbf16>
    %48 = vector.shape_cast %47 : vector<32x16x128xbf16> to vector<2x16x16x128xbf16>
    %cst_15 = arith.constant 0.000000e+00 : bf16
    %49 = vector.broadcast %cst_15 : bf16 to vector<2x1x16x128xbf16>
    %50 = vector.extract_strided_slice %44 {offsets = [0, 0, 0, 0], sizes = [2, 15, 16, 128], strides = [1, 1, 1, 1]} : vector<2x16x16x128xbf16> to vector<2x15x16x128xbf16>
    %c0_16 = arith.constant 0 : index
    %c1 = arith.constant 1 : index
    %c0_17 = arith.constant 0 : index
    %c0_18 = arith.constant 0 : index
    %51 = vector.load %arg7[%c0_16, %c1, %c0_17, %c0_18] : memref<2x16x16x1152xbf16, #tpu.memory_space<vmem>>, vector<2x15x16x128xbf16>
    tpu.vector_store %arg7[%c0_16, %c1, %c0_17, %c0_18], %50 {strides = array<i32>} : memref<2x16x16x1152xbf16, #tpu.memory_space<vmem>>, vector<2x15x16x128xbf16>,
    %c0_19 = arith.constant 0 : index
    %c0_20 = arith.constant 0 : index
    %c0_21 = arith.constant 0 : index
    %c0_22 = arith.constant 0 : index
    %52 = vector.load %arg7[%c0_19, %c0_20, %c0_21, %c0_22] : memref<2x16x16x1152xbf16, #tpu.memory_space<vmem>>, vector<2x1x16x128xbf16>
    tpu.vector_store %arg7[%c0_19, %c0_20, %c0_21, %c0_22], %49 {strides = array<i32>} : memref<2x16x16x1152xbf16, #tpu.memory_space<vmem>>, vector<2x1x16x128xbf16>,
    %53 = vector.extract_strided_slice %46 {offsets = [0, 0, 0, 0], sizes = [2, 15, 16, 128], strides = [1, 1, 1, 1]} : vector<2x16x16x128xbf16> to vector<2x15x16x128xbf16>
    %c0_23 = arith.constant 0 : index
    %c1_24 = arith.constant 1 : index
    %c0_25 = arith.constant 0 : index
    %c128 = arith.constant 128 : index
    %54 = vector.load %arg7[%c0_23, %c1_24, %c0_25, %c128] : memref<2x16x16x1152xbf16, #tpu.memory_space<vmem>>, vector<2x15x16x128xbf16>
    tpu.vector_store %arg7[%c0_23, %c1_24, %c0_25, %c128], %53 {strides = array<i32>} : memref<2x16x16x1152xbf16, #tpu.memory_space<vmem>>, vector<2x15x16x128xbf16>,
    %c0_26 = arith.constant 0 : index
    %c0_27 = arith.constant 0 : index
    %c0_28 = arith.constant 0 : index
    %c128_29 = arith.constant 128 : index
    %55 = vector.load %arg7[%c0_26, %c0_27, %c0_28, %c128_29] : memref<2x16x16x1152xbf16, #tpu.memory_space<vmem>>, vector<2x1x16x128xbf16>
    tpu.vector_store %arg7[%c0_26, %c0_27, %c0_28, %c128_29], %49 {strides = array<i32>} : memref<2x16x16x1152xbf16, #tpu.memory_space<vmem>>, vector<2x1x16x128xbf16>,
    %56 = vector.extract_strided_slice %48 {offsets = [0, 0, 0, 0], sizes = [2, 15, 16, 128], strides = [1, 1, 1, 1]} : vector<2x16x16x128xbf16> to vector<2x15x16x128xbf16>
    %c0_30 = arith.constant 0 : index
    %c1_31 = arith.constant 1 : index
    %c0_32 = arith.constant 0 : index
    %c256 = arith.constant 256 : index
    %57 = vector.load %arg7[%c0_30, %c1_31, %c0_32, %c256] : memref<2x16x16x1152xbf16, #tpu.memory_space<vmem>>, vector<2x15x16x128xbf16>
    tpu.vector_store %arg7[%c0_30, %c1_31, %c0_32, %c256], %56 {strides = array<i32>} : memref<2x16x16x1152xbf16, #tpu.memory_space<vmem>>, vector<2x15x16x128xbf16>,
    %c0_33 = arith.constant 0 : index
    %c0_34 = arith.constant 0 : index
    %c0_35 = arith.constant 0 : index
    %c256_36 = arith.constant 256 : index
    %58 = vector.load %arg7[%c0_33, %c0_34, %c0_35, %c256_36] : memref<2x16x16x1152xbf16, #tpu.memory_space<vmem>>, vector<2x1x16x128xbf16>
    tpu.vector_store %arg7[%c0_33, %c0_34, %c0_35, %c256_36], %49 {strides = array<i32>} : memref<2x16x16x1152xbf16, #tpu.memory_space<vmem>>, vector<2x1x16x128xbf16>,
    %c0_37 = arith.constant 0 : index
    %c0_38 = arith.constant 0 : index
    %c0_39 = arith.constant 0 : index
    %c384 = arith.constant 384 : index
    %59 = vector.load %arg7[%c0_37, %c0_38, %c0_39, %c384] : memref<2x16x16x1152xbf16, #tpu.memory_space<vmem>>, vector<2x16x16x128xbf16>
    tpu.vector_store %arg7[%c0_37, %c0_38, %c0_39, %c384], %44 {strides = array<i32>} : memref<2x16x16x1152xbf16, #tpu.memory_space<vmem>>, vector<2x16x16x128xbf16>,
    %c0_40 = arith.constant 0 : index
    %c0_41 = arith.constant 0 : index
    %c0_42 = arith.constant 0 : index
    %c512 = arith.constant 512 : index
    %60 = vector.load %arg7[%c0_40, %c0_41, %c0_42, %c512] : memref<2x16x16x1152xbf16, #tpu.memory_space<vmem>>, vector<2x16x16x128xbf16>
    tpu.vector_store %arg7[%c0_40, %c0_41, %c0_42, %c512], %46 {strides = array<i32>} : memref<2x16x16x1152xbf16, #tpu.memory_space<vmem>>, vector<2x16x16x128xbf16>,
    %c0_43 = arith.constant 0 : index
    %c0_44 = arith.constant 0 : index
    %c0_45 = arith.constant 0 : index
    %c640 = arith.constant 640 : index
    %61 = vector.load %arg7[%c0_43, %c0_44, %c0_45, %c640] : memref<2x16x16x1152xbf16, #tpu.memory_space<vmem>>, vector<2x16x16x128xbf16>
    tpu.vector_store %arg7[%c0_43, %c0_44, %c0_45, %c640], %48 {strides = array<i32>} : memref<2x16x16x1152xbf16, #tpu.memory_space<vmem>>, vector<2x16x16x128xbf16>,
    %62 = vector.extract_strided_slice %44 {offsets = [0, 1, 0, 0], sizes = [2, 15, 16, 128], strides = [1, 1, 1, 1]} : vector<2x16x16x128xbf16> to vector<2x15x16x128xbf16>
    %c0_46 = arith.constant 0 : index
    %c0_47 = arith.constant 0 : index
    %c0_48 = arith.constant 0 : index
    %c768 = arith.constant 768 : index
    %63 = vector.load %arg7[%c0_46, %c0_47, %c0_48, %c768] : memref<2x16x16x1152xbf16, #tpu.memory_space<vmem>>, vector<2x15x16x128xbf16>
    tpu.vector_store %arg7[%c0_46, %c0_47, %c0_48, %c768], %62 {strides = array<i32>} : memref<2x16x16x1152xbf16, #tpu.memory_space<vmem>>, vector<2x15x16x128xbf16>,
    %c0_49 = arith.constant 0 : index
    %c15 = arith.constant 15 : index
    %c0_50 = arith.constant 0 : index
    %c768_51 = arith.constant 768 : index
    %64 = vector.load %arg7[%c0_49, %c15, %c0_50, %c768_51] : memref<2x16x16x1152xbf16, #tpu.memory_space<vmem>>, vector<2x1x16x128xbf16>
    tpu.vector_store %arg7[%c0_49, %c15, %c0_50, %c768_51], %49 {strides = array<i32>} : memref<2x16x16x1152xbf16, #tpu.memory_space<vmem>>, vector<2x1x16x128xbf16>,
    %65 = vector.extract_strided_slice %46 {offsets = [0, 1, 0, 0], sizes = [2, 15, 16, 128], strides = [1, 1, 1, 1]} : vector<2x16x16x128xbf16> to vector<2x15x16x128xbf16>
    %c0_52 = arith.constant 0 : index
    %c0_53 = arith.constant 0 : index
    %c0_54 = arith.constant 0 : index
    %c896 = arith.constant 896 : index
    %66 = vector.load %arg7[%c0_52, %c0_53, %c0_54, %c896] : memref<2x16x16x1152xbf16, #tpu.memory_space<vmem>>, vector<2x15x16x128xbf16>
    tpu.vector_store %arg7[%c0_52, %c0_53, %c0_54, %c896], %65 {strides = array<i32>} : memref<2x16x16x1152xbf16, #tpu.memory_space<vmem>>, vector<2x15x16x128xbf16>,
    %c0_55 = arith.constant 0 : index
    %c15_56 = arith.constant 15 : index
    %c0_57 = arith.constant 0 : index
    %c896_58 = arith.constant 896 : index
    %67 = vector.load %arg7[%c0_55, %c15_56, %c0_57, %c896_58] : memref<2x16x16x1152xbf16, #tpu.memory_space<vmem>>, vector<2x1x16x128xbf16>
    tpu.vector_store %arg7[%c0_55, %c15_56, %c0_57, %c896_58], %49 {strides = array<i32>} : memref<2x16x16x1152xbf16, #tpu.memory_space<vmem>>, vector<2x1x16x128xbf16>,
    %68 = vector.extract_strided_slice %48 {offsets = [0, 1, 0, 0], sizes = [2, 15, 16, 128], strides = [1, 1, 1, 1]} : vector<2x16x16x128xbf16> to vector<2x15x16x128xbf16>
    %c0_59 = arith.constant 0 : index
    %c0_60 = arith.constant 0 : index
    %c0_61 = arith.constant 0 : index
    %c1024 = arith.constant 1024 : index
    %69 = vector.load %arg7[%c0_59, %c0_60, %c0_61, %c1024] : memref<2x16x16x1152xbf16, #tpu.memory_space<vmem>>, vector<2x15x16x128xbf16>
    tpu.vector_store %arg7[%c0_59, %c0_60, %c0_61, %c1024], %68 {strides = array<i32>} : memref<2x16x16x1152xbf16, #tpu.memory_space<vmem>>, vector<2x15x16x128xbf16>,
    %c0_62 = arith.constant 0 : index
    %c15_63 = arith.constant 15 : index
    %c0_64 = arith.constant 0 : index
    %c1024_65 = arith.constant 1024 : index
    %70 = vector.load %arg7[%c0_62, %c15_63, %c0_64, %c1024_65] : memref<2x16x16x1152xbf16, #tpu.memory_space<vmem>>, vector<2x1x16x128xbf16>
    tpu.vector_store %arg7[%c0_62, %c15_63, %c0_64, %c1024_65], %49 {strides = array<i32>} : memref<2x16x16x1152xbf16, #tpu.memory_space<vmem>>, vector<2x1x16x128xbf16>,
    %c0_66 = arith.constant 0 : index
    %c0_67 = arith.constant 0 : index
    %c0_68 = arith.constant 0 : index
    %c0_69 = arith.constant 0 : index
    %71 = vector.load %arg7[%c0_66, %c0_67, %c0_68, %c0_69] : memref<2x16x16x1152xbf16, #tpu.memory_space<vmem>>, vector<2x16x16x1152xbf16>
    %72 = vector.shape_cast %71 : vector<2x16x16x1152xbf16> to vector<512x1152xbf16>
    %c0_70 = arith.constant 0 : index
    %c0_71 = arith.constant 0 : index
    %73 = vector.load %arg1[%c0_70, %c0_71] : memref<1152x128xbf16, #tpu.memory_space<vmem>>, vector<1152x128xbf16>
    %cst_72 = arith.constant dense<0.000000e+00> : vector<512x128xf32>
    %74 = tpu.matmul %72, %73, %cst_72 {dimension_numbers = #tpu.dot_dimension_numbers<[1], [0], [0], [1], [0, 0, 1, 1], [], []>} : vector<512x1152xbf16>, vector<1152x128xbf16>, vector<512x128xf32> -> vector<512x128xf32>
    %cst_73 = arith.constant dense<0.000000e+00> : vector<128xf32>
    %75 = vector.multi_reduction <add>, %74, %cst_73 [0] : vector<512x128xf32> to vector<128xf32>
    %76 = vector.shape_cast %75 : vector<128xf32> to vector<1x128xf32>
    %cst_74 = arith.constant 0.001953125 : f32
    %77 = vector.broadcast %cst_74 : f32 to vector<1x128xf32>
    %78 = arith.mulf %76, %77 : vector<1x128xf32>
    %79 = arith.mulf %74, %74 : vector<512x128xf32>
    %cst_75 = arith.constant dense<0.000000e+00> : vector<128xf32>
    %80 = vector.multi_reduction <add>, %79, %cst_75 [0] : vector<512x128xf32> to vector<128xf32>
    %81 = vector.shape_cast %80 : vector<128xf32> to vector<1x128xf32>
    %cst_76 = arith.constant 0.001953125 : f32
    %82 = vector.broadcast %cst_76 : f32 to vector<1x128xf32>
    %83 = arith.mulf %81, %82 : vector<1x128xf32>
    %84 = arith.mulf %78, %78 : vector<1x128xf32>
    %85 = arith.subf %83, %84 : vector<1x128xf32>
    %c0_77 = arith.constant 0 : index
    %c0_78 = arith.constant 0 : index
    %86 = vector.load %arg4[%c0_77, %c0_78] : memref<1x128xf32, #tpu.memory_space<vmem>>, vector<1x128xf32>
    %cst_79 = arith.constant 1.000000e-03 : f32
    %87 = vector.broadcast %cst_79 : f32 to vector<1x128xf32>
    %88 = arith.addf %85, %87 : vector<1x128xf32>
    %89 = math.rsqrt %88 : vector<1x128xf32>
    %90 = arith.mulf %86, %89 : vector<1x128xf32>
    %c0_80 = arith.constant 0 : index
    %c0_81 = arith.constant 0 : index
    %91 = vector.load %arg5[%c0_80, %c0_81] : memref<1x128xf32, #tpu.memory_space<vmem>>, vector<1x128xf32>
    %92 = arith.mulf %78, %90 : vector<1x128xf32>
    %93 = arith.subf %91, %92 : vector<1x128xf32>
    %94 = vector.broadcast %90 : vector<1x128xf32> to vector<512x128xf32>
    %95 = arith.mulf %74, %94 : vector<512x128xf32>
    %96 = vector.broadcast %93 : vector<1x128xf32> to vector<512x128xf32>
    %97 = arith.addf %95, %96 : vector<512x128xf32>
    %98 = vector.shape_cast %97 : vector<512x128xf32> to vector<2x16x16x128xf32>
    %c0_82 = arith.constant 0 : index
    %c0_83 = arith.constant 0 : index
    %c0_84 = arith.constant 0 : index
    %c0_85 = arith.constant 0 : index
    %99 = vector.load %arg6[%c0_82, %c0_83, %c0_84, %c0_85] : memref<2x16x16x128xf32, #tpu.memory_space<vmem>>, vector<2x16x16x128xf32>
    tpu.vector_store %arg6[%c0_82, %c0_83, %c0_84, %c0_85], %98 {strides = array<i32>} : memref<2x16x16x128xf32, #tpu.memory_space<vmem>>, vector<2x16x16x128xf32>,
    return
  }
}

</mosaic_0001>

<llo_original>
// kernel: bn_relu_conv_bn.1
$region0: #{bn_relu_conv_bn.1}
  #allocation0 [shape = 'u32[]', space=smem, size = 0x4, offset = 0x4, fixed_abs, tag = 'smem constant byte address 0x4 - core index']
  #allocation1 [shape = 'u32[144,128]{1,0:T(1,128)}', space=vmem, size = 0x12000, scoped, tag = 'internal scratch']
  #allocation2 [shape = 'bf16[2,16,16,1152]{3,2,1,0:T(16,128)(2,1)}', space=vmem, size = 0x120000, scoped, tag = 'scratch operand']
  %s0 = inlined_call_operand.vmem [shape: f32[2,16,16,128], index: 0, kind: input, shape index: {}]
  %s1 = inlined_call_operand.vmem [shape: bf16[1152,128], index: 1, kind: input, shape index: {}]
  %s2 = inlined_call_operand.vmem [shape: f32[1,128], index: 2, kind: input, shape index: {}]
  %s3 = inlined_call_operand.vmem [shape: f32[1,128], index: 3, kind: input, shape index: {}]
  %s4 = inlined_call_operand.vmem [shape: f32[1,128], index: 4, kind: input, shape index: {}]
  %s5 = inlined_call_operand.vmem [shape: f32[1,128], index: 5, kind: input, shape index: {}]
  %s6 = inlined_call_operand.vmem [shape: f32[2,16,16,128], index: 6, kind: output, shape index: {}]
  %s7 = sld [smem:[#allocation0]]
  $region34: #{bn_relu_conv_bn.1} parent=0
    _
  %s9 = ssub.s32 1, %s7
  %s10 = scalar_select 0, %s9, %s7
  // Predicated region
  $region2: #{bn_relu_conv_bn.1} parent=0 // pred_check
    _
  $region3: #{bn_relu_conv_bn.1} parent=0 // pred_check_branch
    %12 = sbr.rel (0) target = $region5
  $region4: #{bn_relu_conv_bn.1} parent=0 // pred_region
    _
  $region5: #{bn_relu_conv_bn.1} parent=0 // pred_fallthru
    _
  // Predicated region
  $region6: #{bn_relu_conv_bn.1} parent=0 // pred_check
    _
  $region7: #{bn_relu_conv_bn.1} parent=0 // pred_check_branch
    %14 = sbr.rel (0) target = $region9
  $region8: #{bn_relu_conv_bn.1} parent=0 // pred_region
    _
  $region9: #{bn_relu_conv_bn.1} parent=0 // pred_fallthru
    _
  // Predicated region
  $region10: #{bn_relu_conv_bn.1} parent=0 // pred_check
    _
  $region11: #{bn_relu_conv_bn.1} parent=0 // pred_check_branch
    %16 = sbr.rel (0) target = $region13
  $region12: #{bn_relu_conv_bn.1} parent=0 // pred_region
    _
  $region13: #{bn_relu_conv_bn.1} parent=0 // pred_fallthru
    _
  // Predicated region
  $region14: #{bn_relu_conv_bn.1} parent=0 // pred_check
    _
  $region15: #{bn_relu_conv_bn.1} parent=0 // pred_check_branch
    %18 = sbr.rel (0) target = $region17
  $region16: #{bn_relu_conv_bn.1} parent=0 // pred_region
    _
  $region17: #{bn_relu_conv_bn.1} parent=0 // pred_fallthru
    _
  // Predicated region
  $region18: #{bn_relu_conv_bn.1} parent=0 // pred_check
    _
  $region19: #{bn_relu_conv_bn.1} parent=0 // pred_check_branch
    %20 = sbr.rel (0) target = $region21
  $region20: #{bn_relu_conv_bn.1} parent=0 // pred_region
    _
  $region21: #{bn_relu_conv_bn.1} parent=0 // pred_fallthru
    _
  // Predicated region
  $region22: #{bn_relu_conv_bn.1} parent=0 // pred_check
    _
  $region23: #{bn_relu_conv_bn.1} parent=0 // pred_check_branch
    %22 = sbr.rel (0) target = $region25
  $region24: #{bn_relu_conv_bn.1} parent=0 // pred_region
    _
  $region25: #{bn_relu_conv_bn.1} parent=0 // pred_fallthru
    _
  %v24 = vld [vmem:[%s0] sm:$0xff]
  %v25 = vld [vmem:[%s0 + $0x8] sm:$0xff]
  %v26 = vld [vmem:[%s0 + $0x10] sm:$0xff]
  %v27 = vld [vmem:[%s0 + $0x18] sm:$0xff]
  %v28 = vld [vmem:[%s0 + $0x20] sm:$0xff]
  %v29 = vld [vmem:[%s0 + $0x28] sm:$0xff]
  %v30 = vld [vmem:[%s0 + $0x30] sm:$0xff]
  %v31 = vld [vmem:[%s0 + $0x38] sm:$0xff]
  %v32 = vld [vmem:[%s0 + $0x40] sm:$0xff]
  %v33 = vld [vmem:[%s0 + $0x48] sm:$0xff]
  %v34 = vld [vmem:[%s0 + $0x50] sm:$0xff]
  %v35 = vld [vmem:[%s0 + $0x58] sm:$0xff]
  %v36 = vld [vmem:[%s0 + $0x60] sm:$0xff]
  %v37 = vld [vmem:[%s0 + $0x68] sm:$0xff]
  %v38 = vld [vmem:[%s0 + $0x70] sm:$0xff]
  %v39 = vld [vmem:[%s0 + $0x78] sm:$0xff]
  %v40 = vld [vmem:[%s0 + $0x80] sm:$0xff]
  %v41 = vld [vmem:[%s0 + $0x88] sm:$0xff]
  %v42 = vld [vmem:[%s0 + $0x90] sm:$0xff]
  %v43 = vld [vmem:[%s0 + $0x98] sm:$0xff]
  %v44 = vld [vmem:[%s0 + $0xa0] sm:$0xff]
  %v45 = vld [vmem:[%s0 + $0xa8] sm:$0xff]
  %v46 = vld [vmem:[%s0 + $0xb0] sm:$0xff]
  %v47 = vld [vmem:[%s0 + $0xb8] sm:$0xff]
  %v48 = vld [vmem:[%s0 + $0xc0] sm:$0xff]
  %v49 = vld [vmem:[%s0 + $0xc8] sm:$0xff]
  %v50 = vld [vmem:[%s0 + $0xd0] sm:$0xff]
  %v51 = vld [vmem:[%s0 + $0xd8] sm:$0xff]
  %v52 = vld [vmem:[%s0 + $0xe0] sm:$0xff]
  %v53 = vld [vmem:[%s0 + $0xe8] sm:$0xff]
  %v54 = vld [vmem:[%s0 + $0xf0] sm:$0xff]
  %v55 = vld [vmem:[%s0 + $0xf8] sm:$0xff]
  %v56 = vld [vmem:[%s0 + $0x100] sm:$0xff]
  %v57 = vld [vmem:[%s0 + $0x108] sm:$0xff]
  %v58 = vld [vmem:[%s0 + $0x110] sm:$0xff]
  %v59 = vld [vmem:[%s0 + $0x118] sm:$0xff]
  %v60 = vld [vmem:[%s0 + $0x120] sm:$0xff]
  %v61 = vld [vmem:[%s0 + $0x128] sm:$0xff]
  %v62 = vld [vmem:[%s0 + $0x130] sm:$0xff]
  %v63 = vld [vmem:[%s0 + $0x138] sm:$0xff]
  %v64 = vld [vmem:[%s0 + $0x140] sm:$0xff]
  %v65 = vld [vmem:[%s0 + $0x148] sm:$0xff]
  %v66 = vld [vmem:[%s0 + $0x150] sm:$0xff]
  %v67 = vld [vmem:[%s0 + $0x158] sm:$0xff]
  %v68 = vld [vmem:[%s0 + $0x160] sm:$0xff]
  %v69 = vld [vmem:[%s0 + $0x168] sm:$0xff]
  %v70 = vld [vmem:[%s0 + $0x170] sm:$0xff]
  %v71 = vld [vmem:[%s0 + $0x178] sm:$0xff]
  %v72 = vld [vmem:[%s0 + $0x180] sm:$0xff]
  %v73 = vld [vmem:[%s0 + $0x188] sm:$0xff]
  %v74 = vld [vmem:[%s0 + $0x190] sm:$0xff]
  %v75 = vld [vmem:[%s0 + $0x198] sm:$0xff]
  %v76 = vld [vmem:[%s0 + $0x1a0] sm:$0xff]
  %v77 = vld [vmem:[%s0 + $0x1a8] sm:$0xff]
  %v78 = vld [vmem:[%s0 + $0x1b0] sm:$0xff]
  %v79 = vld [vmem:[%s0 + $0x1b8] sm:$0xff]
  %v80 = vld [vmem:[%s0 + $0x1c0] sm:$0xff]
  %v81 = vld [vmem:[%s0 + $0x1c8] sm:$0xff]
  %v82 = vld [vmem:[%s0 + $0x1d0] sm:$0xff]
  %v83 = vld [vmem:[%s0 + $0x1d8] sm:$0xff]
  %v84 = vld [vmem:[%s0 + $0x1e0] sm:$0xff]
  %v85 = vld [vmem:[%s0 + $0x1e8] sm:$0xff]
  %v86 = vld [vmem:[%s0 + $0x1f0] sm:$0xff]
  %v87 = vld [vmem:[%s0 + $0x1f8] sm:$0xff]
  %v88 = vadd.f32 %v24, %v25
  %v89 = vadd.f32 %v88, %v26
  %v90 = vadd.f32 %v89, %v27
  %v91 = vadd.f32 %v90, %v28
  %v92 = vadd.f32 %v91, %v29
  %v93 = vadd.f32 %v92, %v30
  %v94 = vadd.f32 %v93, %v31
  %v95 = vadd.f32 %v94, %v32
  %v96 = vadd.f32 %v95, %v33
  %v97 = vadd.f32 %v96, %v34
  %v98 = vadd.f32 %v97, %v35
  %v99 = vadd.f32 %v98, %v36
  %v100 = vadd.f32 %v99, %v37
  %v101 = vadd.f32 %v100, %v38
  %v102 = vadd.f32 %v101, %v39
  %v103 = vadd.f32 %v102, %v40
  %v104 = vadd.f32 %v103, %v41
  %v105 = vadd.f32 %v104, %v42
  %v106 = vadd.f32 %v105, %v43
  %v107 = vadd.f32 %v106, %v44
  %v108 = vadd.f32 %v107, %v45
  %v109 = vadd.f32 %v108, %v46
  %v110 = vadd.f32 %v109, %v47
  %v111 = vadd.f32 %v110, %v48
  %v112 = vadd.f32 %v111, %v49
  %v113 = vadd.f32 %v112, %v50
  %v114 = vadd.f32 %v113, %v51
  %v115 = vadd.f32 %v114, %v52
  %v116 = vadd.f32 %v115, %v53
  %v117 = vadd.f32 %v116, %v54
  %v118 = vadd.f32 %v117, %v55
  %v119 = vadd.f32 %v118, %v56
  %v120 = vadd.f32 %v119, %v57
  %v121 = vadd.f32 %v120, %v58
  %v122 = vadd.f32 %v121, %v59
  %v123 = vadd.f32 %v122, %v60
  %v124 = vadd.f32 %v123, %v61
  %v125 = vadd.f32 %v124, %v62
  %v126 = vadd.f32 %v125, %v63
  %v127 = vadd.f32 %v126, %v64
  %v128 = vadd.f32 %v127, %v65
  %v129 = vadd.f32 %v128, %v66
  %v130 = vadd.f32 %v129, %v67
  %v131 = vadd.f32 %v130, %v68
  %v132 = vadd.f32 %v131, %v69
  %v133 = vadd.f32 %v132, %v70
  %v134 = vadd.f32 %v133, %v71
  %v135 = vadd.f32 %v134, %v72
  %v136 = vadd.f32 %v135, %v73
  %v137 = vadd.f32 %v136, %v74
  %v138 = vadd.f32 %v137, %v75
  %v139 = vadd.f32 %v138, %v76
  %v140 = vadd.f32 %v139, %v77
  %v141 = vadd.f32 %v140, %v78
  %v142 = vadd.f32 %v141, %v79
  %v143 = vadd.f32 %v142, %v80
  %v144 = vadd.f32 %v143, %v81
  %v145 = vadd.f32 %v144, %v82
  %v146 = vadd.f32 %v145, %v83
  %v147 = vadd.f32 %v146, %v84
  %v148 = vadd.f32 %v147, %v85
  %v149 = vadd.f32 %v148, %v86
  %v150 = vadd.f32 %v149, %v87
  %v151 = vrot.slane %v150, 4
  %v152 = vadd.f32 %v150, %v151
  %v153 = vrot.slane %v152, 2
  %v154 = vadd.f32 %v152, %v153
  %v155 = vrot.slane %v154, 1
  %v156 = vadd.f32 %v154, %v155
  %v157 = vmul.f32 %v156, 0.001953125
  %v158 = vmul.f32 %v24, %v24
  %v159 = vmul.f32 %v25, %v25
  %v160 = vmul.f32 %v26, %v26
  %v161 = vmul.f32 %v27, %v27
  %v162 = vmul.f32 %v28, %v28
  %v163 = vmul.f32 %v29, %v29
  %v164 = vmul.f32 %v30, %v30
  %v165 = vmul.f32 %v31, %v31
  %v166 = vmul.f32 %v32, %v32
  %v167 = vmul.f32 %v33, %v33
  %v168 = vmul.f32 %v34, %v34
  %v169 = vmul.f32 %v35, %v35
  %v170 = vmul.f32 %v36, %v36
  %v171 = vmul.f32 %v37, %v37
  %v172 = vmul.f32 %v38, %v38
  %v173 = vmul.f32 %v39, %v39
  %v174 = vmul.f32 %v40, %v40
  %v175 = vmul.f32 %v41, %v41
  %v176 = vmul.f32 %v42, %v42
  %v177 = vmul.f32 %v43, %v43
  %v178 = vmul.f32 %v44, %v44
  %v179 = vmul.f32 %v45, %v45
  %v180 = vmul.f32 %v46, %v46
  %v181 = vmul.f32 %v47, %v47
  %v182 = vmul.f32 %v48, %v48
  %v183 = vmul.f32 %v49, %v49
  %v184 = vmul.f32 %v50, %v50
  %v185 = vmul.f32 %v51, %v51
  %v186 = vmul.f32 %v52, %v52
  %v187 = vmul.f32 %v53, %v53
  %v188 = vmul.f32 %v54, %v54
  %v189 = vmul.f32 %v55, %v55
  %v190 = vmul.f32 %v56, %v56
  %v191 = vmul.f32 %v57, %v57
  %v192 = vmul.f32 %v58, %v58
  %v193 = vmul.f32 %v59, %v59
  %v194 = vmul.f32 %v60, %v60
  %v195 = vmul.f32 %v61, %v61
  %v196 = vmul.f32 %v62, %v62
  %v197 = vmul.f32 %v63, %v63
  %v198 = vmul.f32 %v64, %v64
  %v199 = vmul.f32 %v65, %v65
  %v200 = vmul.f32 %v66, %v66
  %v201 = vmul.f32 %v67, %v67
  %v202 = vmul.f32 %v68, %v68
  %v203 = vmul.f32 %v69, %v69
  %v204 = vmul.f32 %v70, %v70
  %v205 = vmul.f32 %v71, %v71
  %v206 = vmul.f32 %v72, %v72
  %v207 = vmul.f32 %v73, %v73
  %v208 = vmul.f32 %v74, %v74
  %v209 = vmul.f32 %v75, %v75
  %v210 = vmul.f32 %v76, %v76
  %v211 = vmul.f32 %v77, %v77
  %v212 = vmul.f32 %v78, %v78
  %v213 = vmul.f32 %v79, %v79
  %v214 = vmul.f32 %v80, %v80
  %v215 = vmul.f32 %v81, %v81
  %v216 = vmul.f32 %v82, %v82
  %v217 = vmul.f32 %v83, %v83
  %v218 = vmul.f32 %v84, %v84
  %v219 = vmul.f32 %v85, %v85
  %v220 = vmul.f32 %v86, %v86
  %v221 = vmul.f32 %v87, %v87
  %v222 = vadd.f32 %v158, %v159
  %v223 = vadd.f32 %v222, %v160
  %v224 = vadd.f32 %v223, %v161
  %v225 = vadd.f32 %v224, %v162
  %v226 = vadd.f32 %v225, %v163
  %v227 = vadd.f32 %v226, %v164
  %v228 = vadd.f32 %v227, %v165
  %v229 = vadd.f32 %v228, %v166
  %v230 = vadd.f32 %v229, %v167
  %v231 = vadd.f32 %v230, %v168
  %v232 = vadd.f32 %v231, %v169
  %v233 = vadd.f32 %v232, %v170
  %v234 = vadd.f32 %v233, %v171
  %v235 = vadd.f32 %v234, %v172
  %v236 = vadd.f32 %v235, %v173
  %v237 = vadd.f32 %v236, %v174
  %v238 = vadd.f32 %v237, %v175
  %v239 = vadd.f32 %v238, %v176
  %v240 = vadd.f32 %v239, %v177
  %v241 = vadd.f32 %v240, %v178
  %v242 = vadd.f32 %v241, %v179
  %v243 = vadd.f32 %v242, %v180
  %v244 = vadd.f32 %v243, %v181
  %v245 = vadd.f32 %v244, %v182
  %v246 = vadd.f32 %v245, %v183
  %v247 = vadd.f32 %v246, %v184
  %v248 = vadd.f32 %v247, %v185
  %v249 = vadd.f32 %v248, %v186
  %v250 = vadd.f32 %v249, %v187
  %v251 = vadd.f32 %v250, %v188
  %v252 = vadd.f32 %v251, %v189
  %v253 = vadd.f32 %v252, %v190
  %v254 = vadd.f32 %v253, %v191
  %v255 = vadd.f32 %v254, %v192
  %v256 = vadd.f32 %v255, %v193
  %v257 = vadd.f32 %v256, %v194
  %v258 = vadd.f32 %v257, %v195
  %v259 = vadd.f32 %v258, %v196
  %v260 = vadd.f32 %v259, %v197
  %v261 = vadd.f32 %v260, %v198
  %v262 = vadd.f32 %v261, %v199
  %v263 = vadd.f32 %v262, %v200
  %v264 = vadd.f32 %v263, %v201
  %v265 = vadd.f32 %v264, %v202
  %v266 = vadd.f32 %v265, %v203
  %v267 = vadd.f32 %v266, %v204
  %v268 = vadd.f32 %v267, %v205
  %v269 = vadd.f32 %v268, %v206
  %v270 = vadd.f32 %v269, %v207
  %v271 = vadd.f32 %v270, %v208
  %v272 = vadd.f32 %v271, %v209
  %v273 = vadd.f32 %v272, %v210
  %v274 = vadd.f32 %v273, %v211
  %v275 = vadd.f32 %v274, %v212
  %v276 = vadd.f32 %v275, %v213
  %v277 = vadd.f32 %v276, %v214
  %v278 = vadd.f32 %v277, %v215
  %v279 = vadd.f32 %v278, %v216
  %v280 = vadd.f32 %v279, %v217
  %v281 = vadd.f32 %v280, %v218
  %v282 = vadd.f32 %v281, %v219
  %v283 = vadd.f32 %v282, %v220
  %v284 = vadd.f32 %v283, %v221
  %v285 = vrot.slane %v284, 4
  %v286 = vadd.f32 %v284, %v285
  %v287 = vrot.slane %v286, 2
  %v288 = vadd.f32 %v286, %v287
  %v289 = vrot.slane %v288, 1
  %v290 = vadd.f32 %v288, %v289
  %v291 = vmul.f32 %v290, 0.001953125
  %v292 = vmul.f32 %v157, %v157
  %v293 = vsub.f32 %v291, %v292
  %v294 = vld [vmem:[%s2] sm:$0x1]
  %v295 = vadd.f32 %v293, 0.001
  %v296 = vrsqrt.pop %v295
  %v297 = vmul.f32 %v294, %v296
  %v298 = vld [vmem:[%s3] sm:$0x1]
  %v299 = vmul.f32 %v157, %v297
  %v300 = vsub.f32 %v298, %v299
  %v302 = vlaneseq
  %v303 = vshrl.u32 %v302, 7
  %v304 = vsub.s32 0, %v303
  %v305 = vrot.slane %v297, %v304
  %v307 = vmul.f32 %v24, %v305
  %v308 = vmul.f32 %v25, %v305
  %v309 = vmul.f32 %v26, %v305
  %v310 = vmul.f32 %v27, %v305
  %v311 = vmul.f32 %v28, %v305
  %v312 = vmul.f32 %v29, %v305
  %v313 = vmul.f32 %v30, %v305
  %v314 = vmul.f32 %v31, %v305
  %v315 = vmul.f32 %v32, %v305
  %v316 = vmul.f32 %v33, %v305
  %v317 = vmul.f32 %v34, %v305
  %v318 = vmul.f32 %v35, %v305
  %v319 = vmul.f32 %v36, %v305
  %v320 = vmul.f32 %v37, %v305
  %v321 = vmul.f32 %v38, %v305
  %v322 = vmul.f32 %v39, %v305
  %v323 = vmul.f32 %v40, %v305
  %v324 = vmul.f32 %v41, %v305
  %v325 = vmul.f32 %v42, %v305
  %v326 = vmul.f32 %v43, %v305
  %v327 = vmul.f32 %v44, %v305
  %v328 = vmul.f32 %v45, %v305
  %v329 = vmul.f32 %v46, %v305
  %v330 = vmul.f32 %v47, %v305
  %v331 = vmul.f32 %v48, %v305
  %v332 = vmul.f32 %v49, %v305
  %v333 = vmul.f32 %v50, %v305
  %v334 = vmul.f32 %v51, %v305
  %v335 = vmul.f32 %v52, %v305
  %v336 = vmul.f32 %v53, %v305
  %v337 = vmul.f32 %v54, %v305
  %v338 = vmul.f32 %v55, %v305
  %v339 = vmul.f32 %v56, %v305
  %v340 = vmul.f32 %v57, %v305
  %v341 = vmul.f32 %v58, %v305
  %v342 = vmul.f32 %v59, %v305
  %v343 = vmul.f32 %v60, %v305
  %v344 = vmul.f32 %v61, %v305
  %v345 = vmul.f32 %v62, %v305
  %v346 = vmul.f32 %v63, %v305
  %v347 = vmul.f32 %v64, %v305
  %v348 = vmul.f32 %v65, %v305
  %v349 = vmul.f32 %v66, %v305
  %v350 = vmul.f32 %v67, %v305
  %v351 = vmul.f32 %v68, %v305
  %v352 = vmul.f32 %v69, %v305
  %v353 = vmul.f32 %v70, %v305
  %v354 = vmul.f32 %v71, %v305
  %v355 = vmul.f32 %v72, %v305
  %v356 = vmul.f32 %v73, %v305
  %v357 = vmul.f32 %v74, %v305
  %v358 = vmul.f32 %v75, %v305
  %v359 = vmul.f32 %v76, %v305
  %v360 = vmul.f32 %v77, %v305
  %v361 = vmul.f32 %v78, %v305
  %v362 = vmul.f32 %v79, %v305
  %v363 = vmul.f32 %v80, %v305
  %v364 = vmul.f32 %v81, %v305
  %v365 = vmul.f32 %v82, %v305
  %v366 = vmul.f32 %v83, %v305
  %v367 = vmul.f32 %v84, %v305
  %v368 = vmul.f32 %v85, %v305
  %v369 = vmul.f32 %v86, %v305
  %v370 = vmul.f32 %v87, %v305
  %v372 = vlaneseq
  %v373 = vshrl.u32 %v372, 7
  %v374 = vsub.s32 0, %v373
  %v375 = vrot.slane %v300, %v374
  %v377 = vadd.f32 %v307, %v375
  %v378 = vadd.f32 %v308, %v375
  %v379 = vadd.f32 %v309, %v375
  %v380 = vadd.f32 %v310, %v375
  %v381 = vadd.f32 %v311, %v375
  %v382 = vadd.f32 %v312, %v375
  %v383 = vadd.f32 %v313, %v375
  %v384 = vadd.f32 %v314, %v375
  %v385 = vadd.f32 %v315, %v375
  %v386 = vadd.f32 %v316, %v375
  %v387 = vadd.f32 %v317, %v375
  %v388 = vadd.f32 %v318, %v375
  %v389 = vadd.f32 %v319, %v375
  %v390 = vadd.f32 %v320, %v375
  %v391 = vadd.f32 %v321, %v375
  %v392 = vadd.f32 %v322, %v375
  %v393 = vadd.f32 %v323, %v375
  %v394 = vadd.f32 %v324, %v375
  %v395 = vadd.f32 %v325, %v375
  %v396 = vadd.f32 %v326, %v375
  %v397 = vadd.f32 %v327, %v375
  %v398 = vadd.f32 %v328, %v375
  %v399 = vadd.f32 %v329, %v375
  %v400 = vadd.f32 %v330, %v375
  %v401 = vadd.f32 %v331, %v375
  %v402 = vadd.f32 %v332, %v375
  %v403 = vadd.f32 %v333, %v375
  %v404 = vadd.f32 %v334, %v375
  %v405 = vadd.f32 %v335, %v375
  %v406 = vadd.f32 %v336, %v375
  %v407 = vadd.f32 %v337, %v375
  %v408 = vadd.f32 %v338, %v375
  %v409 = vadd.f32 %v339, %v375
  %v410 = vadd.f32 %v340, %v375
  %v411 = vadd.f32 %v341, %v375
  %v412 = vadd.f32 %v342, %v375
  %v413 = vadd.f32 %v343, %v375
  %v414 = vadd.f32 %v344, %v375
  %v415 = vadd.f32 %v345, %v375
  %v416 = vadd.f32 %v346, %v375
  %v417 = vadd.f32 %v347, %v375
  %v418 = vadd.f32 %v348, %v375
  %v419 = vadd.f32 %v349, %v375
  %v420 = vadd.f32 %v350, %v375
  %v421 = vadd.f32 %v351, %v375
  %v422 = vadd.f32 %v352, %v375
  %v423 = vadd.f32 %v353, %v375
  %v424 = vadd.f32 %v354, %v375
  %v425 = vadd.f32 %v355, %v375
  %v426 = vadd.f32 %v356, %v375
  %v427 = vadd.f32 %v357, %v375
  %v428 = vadd.f32 %v358, %v375
  %v429 = vadd.f32 %v359, %v375
  %v430 = vadd.f32 %v360, %v375
  %v431 = vadd.f32 %v361, %v375
  %v432 = vadd.f32 %v362, %v375
  %v433 = vadd.f32 %v363, %v375
  %v434 = vadd.f32 %v364, %v375
  %v435 = vadd.f32 %v365, %v375
  %v436 = vadd.f32 %v366, %v375
  %v437 = vadd.f32 %v367, %v375
  %v438 = vadd.f32 %v368, %v375
  %v439 = vadd.f32 %v369, %v375
  %v440 = vadd.f32 %v370, %v375
  %v441 = vmax.f32 %v377, 0.0
  %v442 = vmax.f32 %v378, 0.0
  %v443 = vmax.f32 %v379, 0.0
  %v444 = vmax.f32 %v380, 0.0
  %v445 = vmax.f32 %v381, 0.0
  %v446 = vmax.f32 %v382, 0.0
  %v447 = vmax.f32 %v383, 0.0
  %v448 = vmax.f32 %v384, 0.0
  %v449 = vmax.f32 %v385, 0.0
  %v450 = vmax.f32 %v386, 0.0
  %v451 = vmax.f32 %v387, 0.0
  %v452 = vmax.f32 %v388, 0.0
  %v453 = vmax.f32 %v389, 0.0
  %v454 = vmax.f32 %v390, 0.0
  %v455 = vmax.f32 %v391, 0.0
  %v456 = vmax.f32 %v392, 0.0
  %v457 = vmax.f32 %v393, 0.0
  %v458 = vmax.f32 %v394, 0.0
  %v459 = vmax.f32 %v395, 0.0
  %v460 = vmax.f32 %v396, 0.0
  %v461 = vmax.f32 %v397, 0.0
  %v462 = vmax.f32 %v398, 0.0
  %v463 = vmax.f32 %v399, 0.0
  %v464 = vmax.f32 %v400, 0.0
  %v465 = vmax.f32 %v401, 0.0
  %v466 = vmax.f32 %v402, 0.0
  %v467 = vmax.f32 %v403, 0.0
  %v468 = vmax.f32 %v404, 0.0
  %v469 = vmax.f32 %v405, 0.0
  %v470 = vmax.f32 %v406, 0.0
  %v471 = vmax.f32 %v407, 0.0
  %v472 = vmax.f32 %v408, 0.0
  %v473 = vmax.f32 %v409, 0.0
  %v474 = vmax.f32 %v410, 0.0
  %v475 = vmax.f32 %v411, 0.0
  %v476 = vmax.f32 %v412, 0.0
  %v477 = vmax.f32 %v413, 0.0
  %v478 = vmax.f32 %v414, 0.0
  %v479 = vmax.f32 %v415, 0.0
  %v480 = vmax.f32 %v416, 0.0
  %v481 = vmax.f32 %v417, 0.0
  %v482 = vmax.f32 %v418, 0.0
  %v483 = vmax.f32 %v419, 0.0
  %v484 = vmax.f32 %v420, 0.0
  %v485 = vmax.f32 %v421, 0.0
  %v486 = vmax.f32 %v422, 0.0
  %v487 = vmax.f32 %v423, 0.0
  %v488 = vmax.f32 %v424, 0.0
  %v489 = vmax.f32 %v425, 0.0
  %v490 = vmax.f32 %v426, 0.0
  %v491 = vmax.f32 %v427, 0.0
  %v492 = vmax.f32 %v428, 0.0
  %v493 = vmax.f32 %v429, 0.0
  %v494 = vmax.f32 %v430, 0.0
  %v495 = vmax.f32 %v431, 0.0
  %v496 = vmax.f32 %v432, 0.0
  %v497 = vmax.f32 %v433, 0.0
  %v498 = vmax.f32 %v434, 0.0
  %v499 = vmax.f32 %v435, 0.0
  %v500 = vmax.f32 %v436, 0.0
  %v501 = vmax.f32 %v437, 0.0
  %v502 = vmax.f32 %v438, 0.0
  %v503 = vmax.f32 %v439, 0.0
  %v504 = vmax.f32 %v440, 0.0
  %v505 = vlaneseq
  %v506 = vshrl.u32 %v505, 7
  %v507 = vadd.s32 %v506, 8
  %vm508 = vcmp.eq.s32.totalorder %v506, 0
  %vm509 = vcmp.eq.s32.totalorder %v507, 0
  %v510 = vrot.slane %v441, 7
  %v511 = vrot.slane %v443, 7
  %v512 = vrot.slane %v445, 7
  %v513 = vrot.slane %v447, 7
  %v514 = vrot.slane %v449, 7
  %v515 = vrot.slane %v451, 7
  %v516 = vrot.slane %v453, 7
  %v517 = vrot.slane %v455, 7
  %v518 = vrot.slane %v457, 7
  %v519 = vrot.slane %v459, 7
  %v520 = vrot.slane %v461, 7
  %v521 = vrot.slane %v463, 7
  %v522 = vrot.slane %v465, 7
  %v523 = vrot.slane %v467, 7
  %v524 = vrot.slane %v469, 7
  %v525 = vrot.slane %v471, 7
  %v526 = vrot.slane %v473, 7
  %v527 = vrot.slane %v475, 7
  %v528 = vrot.slane %v477, 7
  %v529 = vrot.slane %v479, 7
  %v530 = vrot.slane %v481, 7
  %v531 = vrot.slane %v483, 7
  %v532 = vrot.slane %v485, 7
  %v533 = vrot.slane %v487, 7
  %v534 = vrot.slane %v489, 7
  %v535 = vrot.slane %v491, 7
  %v536 = vrot.slane %v493, 7
  %v537 = vrot.slane %v495, 7
  %v538 = vrot.slane %v497, 7
  %v539 = vrot.slane %v499, 7
  %v540 = vrot.slane %v501, 7
  %v541 = vrot.slane %v503, 7
  %v542 = vrot.slane %v442, 7
  %v543 = vrot.slane %v444, 7
  %v544 = vrot.slane %v446, 7
  %v545 = vrot.slane %v448, 7
  %v546 = vrot.slane %v450, 7
  %v547 = vrot.slane %v452, 7
  %v548 = vrot.slane %v454, 7
  %v549 = vrot.slane %v456, 7
  %v550 = vrot.slane %v458, 7
  %v551 = vrot.slane %v460, 7
  %v552 = vrot.slane %v462, 7
  %v553 = vrot.slane %v464, 7
  %v554 = vrot.slane %v466, 7
  %v555 = vrot.slane %v468, 7
  %v556 = vrot.slane %v470, 7
  %v557 = vrot.slane %v472, 7
  %v558 = vrot.slane %v474, 7
  %v559 = vrot.slane %v476, 7
  %v560 = vrot.slane %v478, 7
  %v561 = vrot.slane %v480, 7
  %v562 = vrot.slane %v482, 7
  %v563 = vrot.slane %v484, 7
  %v564 = vrot.slane %v486, 7
  %v565 = vrot.slane %v488, 7
  %v566 = vrot.slane %v490, 7
  %v567 = vrot.slane %v492, 7
  %v568 = vrot.slane %v494, 7
  %v569 = vrot.slane %v496, 7
  %v570 = vrot.slane %v498, 7
  %v571 = vrot.slane %v500, 7
  %v572 = vrot.slane %v502, 7
  %v573 = vrot.slane %v504, 7
  %vm574 = vcmp.lt.s32.totalorder %v506, 1
  %v575 = vsel %vm574, %v510, %v542
  %v576 = vsel %vm574, %v511, %v543
  %v577 = vsel %vm574, %v512, %v544
  %v578 = vsel %vm574, %v513, %v545
  %v579 = vsel %vm574, %v514, %v546
  %v580 = vsel %vm574, %v515, %v547
  %v581 = vsel %vm574, %v516, %v548
  %v582 = vsel %vm574, %v517, %v549
  %v583 = vsel %vm574, %v518, %v550
  %v584 = vsel %vm574, %v519, %v551
  %v585 = vsel %vm574, %v520, %v552
  %v586 = vsel %vm574, %v521, %v553
  %v587 = vsel %vm574, %v522, %v554
  %v588 = vsel %vm574, %v523, %v555
  %v589 = vsel %vm574, %v524, %v556
  %v590 = vsel %vm574, %v525, %v557
  %v591 = vsel %vm574, %v526, %v558
  %v592 = vsel %vm574, %v527, %v559
  %v593 = vsel %vm574, %v528, %v560
  %v594 = vsel %vm574, %v529, %v561
  %v595 = vsel %vm574, %v530, %v562
  %v596 = vsel %vm574, %v531, %v563
  %v597 = vsel %vm574, %v532, %v564
  %v598 = vsel %vm574, %v533, %v565
  %v599 = vsel %vm574, %v534, %v566
  %v600 = vsel %vm574, %v535, %v567
  %v601 = vsel %vm574, %v536, %v568
  %v602 = vsel %vm574, %v537, %v569
  %v603 = vsel %vm574, %v538, %v570
  %v604 = vsel %vm574, %v539, %v571
  %v605 = vsel %vm574, %v540, %v572
  %v606 = vsel %vm574, %v541, %v573
  %v607 = vsel %vm574, %v542, %v510
  %v608 = vsel %vm574, %v543, %v511
  %v609 = vsel %vm574, %v544, %v512
  %v610 = vsel %vm574, %v545, %v513
  %v611 = vsel %vm574, %v546, %v514
  %v612 = vsel %vm574, %v547, %v515
  %v613 = vsel %vm574, %v548, %v516
  %v614 = vsel %vm574, %v549, %v517
  %v615 = vsel %vm574, %v550, %v518
  %v616 = vsel %vm574, %v551, %v519
  %v617 = vsel %vm574, %v552, %v520
  %v618 = vsel %vm574, %v553, %v521
  %v619 = vsel %vm574, %v554, %v522
  %v620 = vsel %vm574, %v555, %v523
  %v621 = vsel %vm574, %v556, %v524
  %v622 = vsel %vm574, %v557, %v525
  %v623 = vsel %vm574, %v558, %v526
  %v624 = vsel %vm574, %v559, %v527
  %v625 = vsel %vm574, %v560, %v528
  %v626 = vsel %vm574, %v561, %v529
  %v627 = vsel %vm574, %v562, %v530
  %v628 = vsel %vm574, %v563, %v531
  %v629 = vsel %vm574, %v564, %v532
  %v630 = vsel %vm574, %v565, %v533
  %v631 = vsel %vm574, %v566, %v534
  %v632 = vsel %vm574, %v567, %v535
  %v633 = vsel %vm574, %v568, %v536
  %v634 = vsel %vm574, %v569, %v537
  %v635 = vsel %vm574, %v570, %v538
  %v636 = vsel %vm574, %v571, %v539
  %v637 = vsel %vm574, %v572, %v540
  %v638 = vsel %vm574, %v573, %v541
  %v639 = vsel %vm508, 1, 0
  %v640 = vsel %vm509, 1, 0
  %vm641 = vcmp.eq.s32.totalorder %v639, 1
  %vm642 = vcmp.eq.s32.totalorder %v640, 1
  %v643 = vsel %vm641, 0.0, %v607
  %v644 = vsel %vm642, 0.0, %v575
  %v645 = vsel %vm641, 0.0, %v608
  %v646 = vsel %vm642, 0.0, %v576
  %v647 = vsel %vm641, 0.0, %v609
  %v648 = vsel %vm642, 0.0, %v577
  %v649 = vsel %vm641, 0.0, %v610
  %v650 = vsel %vm642, 0.0, %v578
  %v651 = vsel %vm641, 0.0, %v611
  %v652 = vsel %vm642, 0.0, %v579
  %v653 = vsel %vm641, 0.0, %v612
  %v654 = vsel %vm642, 0.0, %v580
  %v655 = vsel %vm641, 0.0, %v613
  %v656 = vsel %vm642, 0.0, %v581
  %v657 = vsel %vm641, 0.0, %v614
  %v658 = vsel %vm642, 0.0, %v582
  %v659 = vsel %vm641, 0.0, %v615
  %v660 = vsel %vm642, 0.0, %v583
  %v661 = vsel %vm641, 0.0, %v616
  %v662 = vsel %vm642, 0.0, %v584
  %v663 = vsel %vm641, 0.0, %v617
  %v664 = vsel %vm642, 0.0, %v585
  %v665 = vsel %vm641, 0.0, %v618
  %v666 = vsel %vm642, 0.0, %v586
  %v667 = vsel %vm641, 0.0, %v619
  %v668 = vsel %vm642, 0.0, %v587
  %v669 = vsel %vm641, 0.0, %v620
  %v670 = vsel %vm642, 0.0, %v588
  %v671 = vsel %vm641, 0.0, %v621
  %v672 = vsel %vm642, 0.0, %v589
  %v673 = vsel %vm641, 0.0, %v622
  %v674 = vsel %vm642, 0.0, %v590
  %v675 = vsel %vm641, 0.0, %v623
  %v676 = vsel %vm642, 0.0, %v591
  %v677 = vsel %vm641, 0.0, %v624
  %v678 = vsel %vm642, 0.0, %v592
  %v679 = vsel %vm641, 0.0, %v625
  %v680 = vsel %vm642, 0.0, %v593
  %v681 = vsel %vm641, 0.0, %v626
  %v682 = vsel %vm642, 0.0, %v594
  %v683 = vsel %vm641, 0.0, %v627
  %v684 = vsel %vm642, 0.0, %v595
  %v685 = vsel %vm641, 0.0, %v628
  %v686 = vsel %vm642, 0.0, %v596
  %v687 = vsel %vm641, 0.0, %v629
  %v688 = vsel %vm642, 0.0, %v597
  %v689 = vsel %vm641, 0.0, %v630
  %v690 = vsel %vm642, 0.0, %v598
  %v691 = vsel %vm641, 0.0, %v631
  %v692 = vsel %vm642, 0.0, %v599
  %v693 = vsel %vm641, 0.0, %v632
  %v694 = vsel %vm642, 0.0, %v600
  %v695 = vsel %vm641, 0.0, %v633
  %v696 = vsel %vm642, 0.0, %v601
  %v697 = vsel %vm641, 0.0, %v634
  %v698 = vsel %vm642, 0.0, %v602
  %v699 = vsel %vm641, 0.0, %v635
  %v700 = vsel %vm642, 0.0, %v603
  %v701 = vsel %vm641, 0.0, %v636
  %v702 = vsel %vm642, 0.0, %v604
  %v703 = vsel %vm641, 0.0, %v637
  %v704 = vsel %vm642, 0.0, %v605
  %v705 = vsel %vm641, 0.0, %v638
  %v706 = vsel %vm642, 0.0, %v606
  %vm707 = vcmp.eq.s32.totalorder %v506, 15
  %vm708 = vcmp.eq.s32.totalorder %v507, 15
  %v709 = vrot.slane %v441, 1
  %v710 = vrot.slane %v443, 1
  %v711 = vrot.slane %v445, 1
  %v712 = vrot.slane %v447, 1
  %v713 = vrot.slane %v449, 1
  %v714 = vrot.slane %v451, 1
  %v715 = vrot.slane %v453, 1
  %v716 = vrot.slane %v455, 1
  %v717 = vrot.slane %v457, 1
  %v718 = vrot.slane %v459, 1
  %v719 = vrot.slane %v461, 1
  %v720 = vrot.slane %v463, 1
  %v721 = vrot.slane %v465, 1
  %v722 = vrot.slane %v467, 1
  %v723 = vrot.slane %v469, 1
  %v724 = vrot.slane %v471, 1
  %v725 = vrot.slane %v473, 1
  %v726 = vrot.slane %v475, 1
  %v727 = vrot.slane %v477, 1
  %v728 = vrot.slane %v479, 1
  %v729 = vrot.slane %v481, 1
  %v730 = vrot.slane %v483, 1
  %v731 = vrot.slane %v485, 1
  %v732 = vrot.slane %v487, 1
  %v733 = vrot.slane %v489, 1
  %v734 = vrot.slane %v491, 1
  %v735 = vrot.slane %v493, 1
  %v736 = vrot.slane %v495, 1
  %v737 = vrot.slane %v497, 1
  %v738 = vrot.slane %v499, 1
  %v739 = vrot.slane %v501, 1
  %v740 = vrot.slane %v503, 1
  %v741 = vrot.slane %v442, 1
  %v742 = vrot.slane %v444, 1
  %v743 = vrot.slane %v446, 1
  %v744 = vrot.slane %v448, 1
  %v745 = vrot.slane %v450, 1
  %v746 = vrot.slane %v452, 1
  %v747 = vrot.slane %v454, 1
  %v748 = vrot.slane %v456, 1
  %v749 = vrot.slane %v458, 1
  %v750 = vrot.slane %v460, 1
  %v751 = vrot.slane %v462, 1
  %v752 = vrot.slane %v464, 1
  %v753 = vrot.slane %v466, 1
  %v754 = vrot.slane %v468, 1
  %v755 = vrot.slane %v470, 1
  %v756 = vrot.slane %v472, 1
  %v757 = vrot.slane %v474, 1
  %v758 = vrot.slane %v476, 1
  %v759 = vrot.slane %v478, 1
  %v760 = vrot.slane %v480, 1
  %v761 = vrot.slane %v482, 1
  %v762 = vrot.slane %v484, 1
  %v763 = vrot.slane %v486, 1
  %v764 = vrot.slane %v488, 1
  %v765 = vrot.slane %v490, 1
  %v766 = vrot.slane %v492, 1
  %v767 = vrot.slane %v494, 1
  %v768 = vrot.slane %v496, 1
  %v769 = vrot.slane %v498, 1
  %v770 = vrot.slane %v500, 1
  %v771 = vrot.slane %v502, 1
  %v772 = vrot.slane %v504, 1
  %vm773 = vcmp.lt.s32.totalorder %v506, 7
  %v774 = vsel %vm773, %v709, %v741
  %v775 = vsel %vm773, %v710, %v742
  %v776 = vsel %vm773, %v711, %v743
  %v777 = vsel %vm773, %v712, %v744
  %v778 = vsel %vm773, %v713, %v745
  %v779 = vsel %vm773, %v714, %v746
  %v780 = vsel %vm773, %v715, %v747
  %v781 = vsel %vm773, %v716, %v748
  %v782 = vsel %vm773, %v717, %v749
  %v783 = vsel %vm773, %v718, %v750
  %v784 = vsel %vm773, %v719, %v751
  %v785 = vsel %vm773, %v720, %v752
  %v786 = vsel %vm773, %v721, %v753
  %v787 = vsel %vm773, %v722, %v754
  %v788 = vsel %vm773, %v723, %v755
  %v789 = vsel %vm773, %v724, %v756
  %v790 = vsel %vm773, %v725, %v757
  %v791 = vsel %vm773, %v726, %v758
  %v792 = vsel %vm773, %v727, %v759
  %v793 = vsel %vm773, %v728, %v760
  %v794 = vsel %vm773, %v729, %v761
  %v795 = vsel %vm773, %v730, %v762
  %v796 = vsel %vm773, %v731, %v763
  %v797 = vsel %vm773, %v732, %v764
  %v798 = vsel %vm773, %v733, %v765
  %v799 = vsel %vm773, %v734, %v766
  %v800 = vsel %vm773, %v735, %v767
  %v801 = vsel %vm773, %v736, %v768
  %v802 = vsel %vm773, %v737, %v769
  %v803 = vsel %vm773, %v738, %v770
  %v804 = vsel %vm773, %v739, %v771
  %v805 = vsel %vm773, %v740, %v772
  %v806 = vsel %vm773, %v741, %v709
  %v807 = vsel %vm773, %v742, %v710
  %v808 = vsel %vm773, %v743, %v711
  %v809 = vsel %vm773, %v744, %v712
  %v810 = vsel %vm773, %v745, %v713
  %v811 = vsel %vm773, %v746, %v714
  %v812 = vsel %vm773, %v747, %v715
  %v813 = vsel %vm773, %v748, %v716
  %v814 = vsel %vm773, %v749, %v717
  %v815 = vsel %vm773, %v750, %v718
  %v816 = vsel %vm773, %v751, %v719
  %v817 = vsel %vm773, %v752, %v720
  %v818 = vsel %vm773, %v753, %v721
  %v819 = vsel %vm773, %v754, %v722
  %v820 = vsel %vm773, %v755, %v723
  %v821 = vsel %vm773, %v756, %v724
  %v822 = vsel %vm773, %v757, %v725
  %v823 = vsel %vm773, %v758, %v726
  %v824 = vsel %vm773, %v759, %v727
  %v825 = vsel %vm773, %v760, %v728
  %v826 = vsel %vm773, %v761, %v729
  %v827 = vsel %vm773, %v762, %v730
  %v828 = vsel %vm773, %v763, %v731
  %v829 = vsel %vm773, %v764, %v732
  %v830 = vsel %vm773, %v765, %v733
  %v831 = vsel %vm773, %v766, %v734
  %v832 = vsel %vm773, %v767, %v735
  %v833 = vsel %vm773, %v768, %v736
  %v834 = vsel %vm773, %v769, %v737
  %v835 = vsel %vm773, %v770, %v738
  %v836 = vsel %vm773, %v771, %v739
  %v837 = vsel %vm773, %v772, %v740
  %v838 = vsel %vm707, 1, 0
  %v839 = vsel %vm708, 1, 0
  %vm840 = vcmp.eq.s32.totalorder %v838, 1
  %vm841 = vcmp.eq.s32.totalorder %v839, 1
  %v842 = vsel %vm840, 0.0, %v774
  %v843 = vsel %vm841, 0.0, %v806
  %v844 = vsel %vm840, 0.0, %v775
  %v845 = vsel %vm841, 0.0, %v807
  %v846 = vsel %vm840, 0.0, %v776
  %v847 = vsel %vm841, 0.0, %v808
  %v848 = vsel %vm840, 0.0, %v777
  %v849 = vsel %vm841, 0.0, %v809
  %v850 = vsel %vm840, 0.0, %v778
  %v851 = vsel %vm841, 0.0, %v810
  %v852 = vsel %vm840, 0.0, %v779
  %v853 = vsel %vm841, 0.0, %v811
  %v854 = vsel %vm840, 0.0, %v780
  %v855 = vsel %vm841, 0.0, %v812
  %v856 = vsel %vm840, 0.0, %v781
  %v857 = vsel %vm841, 0.0, %v813
  %v858 = vsel %vm840, 0.0, %v782
  %v859 = vsel %vm841, 0.0, %v814
  %v860 = vsel %vm840, 0.0, %v783
  %v861 = vsel %vm841, 0.0, %v815
  %v862 = vsel %vm840, 0.0, %v784
  %v863 = vsel %vm841, 0.0, %v816
  %v864 = vsel %vm840, 0.0, %v785
  %v865 = vsel %vm841, 0.0, %v817
  %v866 = vsel %vm840, 0.0, %v786
  %v867 = vsel %vm841, 0.0, %v818
  %v868 = vsel %vm840, 0.0, %v787
  %v869 = vsel %vm841, 0.0, %v819
  %v870 = vsel %vm840, 0.0, %v788
  %v871 = vsel %vm841, 0.0, %v820
  %v872 = vsel %vm840, 0.0, %v789
  %v873 = vsel %vm841, 0.0, %v821
  %v874 = vsel %vm840, 0.0, %v790
  %v875 = vsel %vm841, 0.0, %v822
  %v876 = vsel %vm840, 0.0, %v791
  %v877 = vsel %vm841, 0.0, %v823
  %v878 = vsel %vm840, 0.0, %v792
  %v879 = vsel %vm841, 0.0, %v824
  %v880 = vsel %vm840, 0.0, %v793
  %v881 = vsel %vm841, 0.0, %v825
  %v882 = vsel %vm840, 0.0, %v794
  %v883 = vsel %vm841, 0.0, %v826
  %v884 = vsel %vm840, 0.0, %v795
  %v885 = vsel %vm841, 0.0, %v827
  %v886 = vsel %vm840, 0.0, %v796
  %v887 = vsel %vm841, 0.0, %v828
  %v888 = vsel %vm840, 0.0, %v797
  %v889 = vsel %vm841, 0.0, %v829
  %v890 = vsel %vm840, 0.0, %v798
  %v891 = vsel %vm841, 0.0, %v830
  %v892 = vsel %vm840, 0.0, %v799
  %v893 = vsel %vm841, 0.0, %v831
  %v894 = vsel %vm840, 0.0, %v800
  %v895 = vsel %vm841, 0.0, %v832
  %v896 = vsel %vm840, 0.0, %v801
  %v897 = vsel %vm841, 0.0, %v833
  %v898 = vsel %vm840, 0.0, %v802
  %v899 = vsel %vm841, 0.0, %v834
  %v900 = vsel %vm840, 0.0, %v803
  %v901 = vsel %vm841, 0.0, %v835
  %v902 = vsel %vm840, 0.0, %v804
  %v903 = vsel %vm841, 0.0, %v836
  %v904 = vsel %vm840, 0.0, %v805
  %v905 = vsel %vm841, 0.0, %v837
  %v906 = vpack.c.bf16 %v644, %v643
  %v907 = vpack.c.bf16 %v646, %v645
  %v908 = vpack.c.bf16 %v648, %v647
  %v909 = vpack.c.bf16 %v650, %v649
  %v910 = vpack.c.bf16 %v652, %v651
  %v911 = vpack.c.bf16 %v654, %v653
  %v912 = vpack.c.bf16 %v656, %v655
  %v913 = vpack.c.bf16 %v658, %v657
  %v914 = vpack.c.bf16 %v660, %v659
  %v915 = vpack.c.bf16 %v662, %v661
  %v916 = vpack.c.bf16 %v664, %v663
  %v917 = vpack.c.bf16 %v666, %v665
  %v918 = vpack.c.bf16 %v668, %v667
  %v919 = vpack.c.bf16 %v670, %v669
  %v920 = vpack.c.bf16 %v672, %v671
  %v921 = vpack.c.bf16 %v674, %v673
  %v922 = vpack.c.bf16 %v676, %v675
  %v923 = vpack.c.bf16 %v678, %v677
  %v924 = vpack.c.bf16 %v680, %v679
  %v925 = vpack.c.bf16 %v682, %v681
  %v926 = vpack.c.bf16 %v684, %v683
  %v927 = vpack.c.bf16 %v686, %v685
  %v928 = vpack.c.bf16 %v688, %v687
  %v929 = vpack.c.bf16 %v690, %v689
  %v930 = vpack.c.bf16 %v692, %v691
  %v931 = vpack.c.bf16 %v694, %v693
  %v932 = vpack.c.bf16 %v696, %v695
  %v933 = vpack.c.bf16 %v698, %v697
  %v934 = vpack.c.bf16 %v700, %v699
  %v935 = vpack.c.bf16 %v702, %v701
  %v936 = vpack.c.bf16 %v704, %v703
  %v937 = vpack.c.bf16 %v706, %v705
  %v938 = vpack.c.bf16 %v442, %v441
  %v939 = vpack.c.bf16 %v444, %v443
  %v940 = vpack.c.bf16 %v446, %v445
  %v941 = vpack.c.bf16 %v448, %v447
  %v942 = vpack.c.bf16 %v450, %v449
  %v943 = vpack.c.bf16 %v452, %v451
  %v944 = vpack.c.bf16 %v454, %v453
  %v945 = vpack.c.bf16 %v456, %v455
  %v946 = vpack.c.bf16 %v458, %v457
  %v947 = vpack.c.bf16 %v460, %v459
  %v948 = vpack.c.bf16 %v462, %v461
  %v949 = vpack.c.bf16 %v464, %v463
  %v950 = vpack.c.bf16 %v466, %v465
  %v951 = vpack.c.bf16 %v468, %v467
  %v952 = vpack.c.bf16 %v470, %v469
  %v953 = vpack.c.bf16 %v472, %v471
  %v954 = vpack.c.bf16 %v474, %v473
  %v955 = vpack.c.bf16 %v476, %v475
  %v956 = vpack.c.bf16 %v478, %v477
  %v957 = vpack.c.bf16 %v480, %v479
  %v958 = vpack.c.bf16 %v482, %v481
  %v959 = vpack.c.bf16 %v484, %v483
  %v960 = vpack.c.bf16 %v486, %v485
  %v961 = vpack.c.bf16 %v488, %v487
  %v962 = vpack.c.bf16 %v490, %v489
  %v963 = vpack.c.bf16 %v492, %v491
  %v964 = vpack.c.bf16 %v494, %v493
  %v965 = vpack.c.bf16 %v496, %v495
  %v966 = vpack.c.bf16 %v498, %v497
  %v967 = vpack.c.bf16 %v500, %v499
  %v968 = vpack.c.bf16 %v502, %v501
  %v969 = vpack.c.bf16 %v504, %v503
  %v970 = vpack.c.bf16 %v843, %v842
  %v971 = vpack.c.bf16 %v845, %v844
  %v972 = vpack.c.bf16 %v847, %v846
  %v973 = vpack.c.bf16 %v849, %v848
  %v974 = vpack.c.bf16 %v851, %v850
  %v975 = vpack.c.bf16 %v853, %v852
  %v976 = vpack.c.bf16 %v855, %v854
  %v977 = vpack.c.bf16 %v857, %v856
  %v978 = vpack.c.bf16 %v859, %v858
  %v979 = vpack.c.bf16 %v861, %v860
  %v980 = vpack.c.bf16 %v863, %v862
  %v981 = vpack.c.bf16 %v865, %v864
  %v982 = vpack.c.bf16 %v867, %v866
  %v983 = vpack.c.bf16 %v869, %v868
  %v984 = vpack.c.bf16 %v871, %v870
  %v985 = vpack.c.bf16 %v873, %v872
  %v986 = vpack.c.bf16 %v875, %v874
  %v987 = vpack.c.bf16 %v877, %v876
  %v988 = vpack.c.bf16 %v879, %v878
  %v989 = vpack.c.bf16 %v881, %v880
  %v990 = vpack.c.bf16 %v883, %v882
  %v991 = vpack.c.bf16 %v885, %v884
  %v992 = vpack.c.bf16 %v887, %v886
  %v993 = vpack.c.bf16 %v889, %v888
  %v994 = vpack.c.bf16 %v891, %v890
  %v995 = vpack.c.bf16 %v893, %v892
  %v996 = vpack.c.bf16 %v895, %v894
  %v997 = vpack.c.bf16 %v897, %v896
  %v998 = vpack.c.bf16 %v899, %v898
  %v999 = vpack.c.bf16 %v901, %v900
  %v1000 = vpack.c.bf16 %v903, %v902
  %v1001 = vpack.c.bf16 %v905, %v904
  %s1002 = scalar_lea.vmem [#allocation2], 72
  %1003 = vst [vmem:[%s1002] sm:$0xff] %v906
  %1004 = vst [vmem:[%s1002 + $0x48] sm:$0xff] %v907
  %1005 = vst [vmem:[%s1002 + $0x90] sm:$0xff] %v908
  %1006 = vst [vmem:[%s1002 + $0xd8] sm:$0xff] %v909
  %1007 = vst [vmem:[%s1002 + $0x120] sm:$0xff] %v910
  %1008 = vst [vmem:[%s1002 + $0x168] sm:$0xff] %v911
  %1009 = vst [vmem:[%s1002 + $0x1b0] sm:$0xff] %v912
  %1010 = vst [vmem:[%s1002 + $0x1f8] sm:$0xff] %v913
  %1011 = vst [vmem:[%s1002 + $0x240] sm:$0xff] %v914
  %1012 = vst [vmem:[%s1002 + $0x288] sm:$0xff] %v915
  %1013 = vst [vmem:[%s1002 + $0x2d0] sm:$0xff] %v916
  %1014 = vst [vmem:[%s1002 + $0x318] sm:$0xff] %v917
  %1015 = vst [vmem:[%s1002 + $0x360] sm:$0xff] %v918
  %1016 = vst [vmem:[%s1002 + $0x3a8] sm:$0xff] %v919
  %1017 = vst [vmem:[%s1002 + $0x3f0] sm:$0xff] %v920
  %1018 = vst [vmem:[%s1002 + $0x480] sm:$0xff] %v922
  %1019 = vst [vmem:[%s1002 + $0x4c8] sm:$0xff] %v923
  %1020 = vst [vmem:[%s1002 + $0x510] sm:$0xff] %v924
  %1021 = vst [vmem:[%s1002 + $0x558] sm:$0xff] %v925
  %1022 = vst [vmem:[%s1002 + $0x5a0] sm:$0xff] %v926
  %1023 = vst [vmem:[%s1002 + $0x5e8] sm:$0xff] %v927
  %1024 = vst [vmem:[%s1002 + $0x630] sm:$0xff] %v928
  %1025 = vst [vmem:[%s1002 + $0x678] sm:$0xff] %v929
  %1026 = vst [vmem:[%s1002 + $0x6c0] sm:$0xff] %v930
  %1027 = vst [vmem:[%s1002 + $0x708] sm:$0xff] %v931
  %1028 = vst [vmem:[%s1002 + $0x750] sm:$0xff] %v932
  %1029 = vst [vmem:[%s1002 + $0x798] sm:$0xff] %v933
  %1030 = vst [vmem:[%s1002 + $0x7e0] sm:$0xff] %v934
  %1031 = vst [vmem:[%s1002 + $0x828] sm:$0xff] %v935
  %1032 = vst [vmem:[%s1002 + $0x870] sm:$0xff] %v936
  %1033 = vst [vmem:[#allocation2] sm:$0xff] 0
  %1034 = vst [vmem:[#allocation2 + $0x480] sm:$0xff] 0
  %1035 = vst [vmem:[%s1002 + $0x8] sm:$0xff] %v938
  %1036 = vst [vmem:[%s1002 + $0x50] sm:$0xff] %v939
  %1037 = vst [vmem:[%s1002 + $0x98] sm:$0xff] %v940
  %1038 = vst [vmem:[%s1002 + $0xe0] sm:$0xff] %v941
  %1039 = vst [vmem:[%s1002 + $0x128] sm:$0xff] %v942
  %1040 = vst [vmem:[%s1002 + $0x170] sm:$0xff] %v943
  %1041 = vst [vmem:[%s1002 + $0x1b8] sm:$0xff] %v944
  %1042 = vst [vmem:[%s1002 + $0x200] sm:$0xff] %v945
  %1043 = vst [vmem:[%s1002 + $0x248] sm:$0xff] %v946
  %1044 = vst [vmem:[%s1002 + $0x290] sm:$0xff] %v947
  %1045 = vst [vmem:[%s1002 + $0x2d8] sm:$0xff] %v948
  %1046 = vst [vmem:[%s1002 + $0x320] sm:$0xff] %v949
  %1047 = vst [vmem:[%s1002 + $0x368] sm:$0xff] %v950
  %1048 = vst [vmem:[%s1002 + $0x3b0] sm:$0xff] %v951
  %1049 = vst [vmem:[%s1002 + $0x3f8] sm:$0xff] %v952
  %1050 = vst [vmem:[%s1002 + $0x488] sm:$0xff] %v954
  %1051 = vst [vmem:[%s1002 + $0x4d0] sm:$0xff] %v955
  %1052 = vst [vmem:[%s1002 + $0x518] sm:$0xff] %v956
  %1053 = vst [vmem:[%s1002 + $0x560] sm:$0xff] %v957
  %1054 = vst [vmem:[%s1002 + $0x5a8] sm:$0xff] %v958
  %1055 = vst [vmem:[%s1002 + $0x5f0] sm:$0xff] %v959
  %1056 = vst [vmem:[%s1002 + $0x638] sm:$0xff] %v960
  %1057 = vst [vmem:[%s1002 + $0x680] sm:$0xff] %v961
  %1058 = vst [vmem:[%s1002 + $0x6c8] sm:$0xff] %v962
  %1059 = vst [vmem:[%s1002 + $0x710] sm:$0xff] %v963
  %1060 = vst [vmem:[%s1002 + $0x758] sm:$0xff] %v964
  %1061 = vst [vmem:[%s1002 + $0x7a0] sm:$0xff] %v965
  %1062 = vst [vmem:[%s1002 + $0x7e8] sm:$0xff] %v966
  %1063 = vst [vmem:[%s1002 + $0x830] sm:$0xff] %v967
  %1064 = vst [vmem:[%s1002 + $0x878] sm:$0xff] %v968
  %1065 = vst [vmem:[#allocation2 + $0x8] sm:$0xff] 0
  %1066 = vst [vmem:[#allocation2 + $0x488] sm:$0xff] 0
  %1067 = vst [vmem:[%s1002 + $0x10] sm:$0xff] %v970
  %1068 = vst [vmem:[%s1002 + $0x58] sm:$0xff] %v971
  %1069 = vst [vmem:[%s1002 + $0xa0] sm:$0xff] %v972
  %1070 = vst [vmem:[%s1002 + $0xe8] sm:$0xff] %v973
  %1071 = vst [vmem:[%s1002 + $0x130] sm:$0xff] %v974
  %1072 = vst [vmem:[%s1002 + $0x178] sm:$0xff] %v975
  %1073 = vst [vmem:[%s1002 + $0x1c0] sm:$0xff] %v976
  %1074 = vst [vmem:[%s1002 + $0x208] sm:$0xff] %v977
  %1075 = vst [vmem:[%s1002 + $0x250] sm:$0xff] %v978
  %1076 = vst [vmem:[%s1002 + $0x298] sm:$0xff] %v979
  %1077 = vst [vmem:[%s1002 + $0x2e0] sm:$0xff] %v980
  %1078 = vst [vmem:[%s1002 + $0x328] sm:$0xff] %v981
  %1079 = vst [vmem:[%s1002 + $0x370] sm:$0xff] %v982
  %1080 = vst [vmem:[%s1002 + $0x3b8] sm:$0xff] %v983
  %1081 = vst [vmem:[%s1002 + $0x400] sm:$0xff] %v984
  %1082 = vst [vmem:[%s1002 + $0x490] sm:$0xff] %v986
  %1083 = vst [vmem:[%s1002 + $0x4d8] sm:$0xff] %v987
  %1084 = vst [vmem:[%s1002 + $0x520] sm:$0xff] %v988
  %1085 = vst [vmem:[%s1002 + $0x568] sm:$0xff] %v989
  %1086 = vst [vmem:[%s1002 + $0x5b0] sm:$0xff] %v990
  %1087 = vst [vmem:[%s1002 + $0x5f8] sm:$0xff] %v991
  %1088 = vst [vmem:[%s1002 + $0x640] sm:$0xff] %v992
  %1089 = vst [vmem:[%s1002 + $0x688] sm:$0xff] %v993
  %1090 = vst [vmem:[%s1002 + $0x6d0] sm:$0xff] %v994
  %1091 = vst [vmem:[%s1002 + $0x718] sm:$0xff] %v995
  %1092 = vst [vmem:[%s1002 + $0x760] sm:$0xff] %v996
  %1093 = vst [vmem:[%s1002 + $0x7a8] sm:$0xff] %v997
  %1094 = vst [vmem:[%s1002 + $0x7f0] sm:$0xff] %v998
  %1095 = vst [vmem:[%s1002 + $0x838] sm:$0xff] %v999
  %1096 = vst [vmem:[%s1002 + $0x880] sm:$0xff] %v1000
  %1097 = vst [vmem:[#allocation2 + $0x10] sm:$0xff] 0
  %1098 = vst [vmem:[#allocation2 + $0x490] sm:$0xff] 0
  %1099 = vst [vmem:[#allocation2 + $0x18] sm:$0xff] %v906
  %1100 = vst [vmem:[#allocation2 + $0x60] sm:$0xff] %v907
  %1101 = vst [vmem:[#allocation2 + $0xa8] sm:$0xff] %v908
  %1102 = vst [vmem:[#allocation2 + $0xf0] sm:$0xff] %v909
  %1103 = vst [vmem:[#allocation2 + $0x138] sm:$0xff] %v910
  %1104 = vst [vmem:[#allocation2 + $0x180] sm:$0xff] %v911
  %1105 = vst [vmem:[#allocation2 + $0x1c8] sm:$0xff] %v912
  %1106 = vst [vmem:[#allocation2 + $0x210] sm:$0xff] %v913
  %1107 = vst [vmem:[#allocation2 + $0x258] sm:$0xff] %v914
  %1108 = vst [vmem:[#allocation2 + $0x2a0] sm:$0xff] %v915
  %1109 = vst [vmem:[#allocation2 + $0x2e8] sm:$0xff] %v916
  %1110 = vst [vmem:[#allocation2 + $0x330] sm:$0xff] %v917
  %1111 = vst [vmem:[#allocation2 + $0x378] sm:$0xff] %v918
  %1112 = vst [vmem:[#allocation2 + $0x3c0] sm:$0xff] %v919
  %1113 = vst [vmem:[#allocation2 + $0x408] sm:$0xff] %v920
  %1114 = vst [vmem:[#allocation2 + $0x450] sm:$0xff] %v921
  %1115 = vst [vmem:[#allocation2 + $0x498] sm:$0xff] %v922
  %1116 = vst [vmem:[#allocation2 + $0x4e0] sm:$0xff] %v923
  %1117 = vst [vmem:[#allocation2 + $0x528] sm:$0xff] %v924
  %1118 = vst [vmem:[#allocation2 + $0x570] sm:$0xff] %v925
  %1119 = vst [vmem:[#allocation2 + $0x5b8] sm:$0xff] %v926
  %1120 = vst [vmem:[#allocation2 + $0x600] sm:$0xff] %v927
  %1121 = vst [vmem:[#allocation2 + $0x648] sm:$0xff] %v928
  %1122 = vst [vmem:[#allocation2 + $0x690] sm:$0xff] %v929
  %1123 = vst [vmem:[#allocation2 + $0x6d8] sm:$0xff] %v930
  %1124 = vst [vmem:[#allocation2 + $0x720] sm:$0xff] %v931
  %1125 = vst [vmem:[#allocation2 + $0x768] sm:$0xff] %v932
  %1126 = vst [vmem:[#allocation2 + $0x7b0] sm:$0xff] %v933
  %1127 = vst [vmem:[#allocation2 + $0x7f8] sm:$0xff] %v934
  %1128 = vst [vmem:[#allocation2 + $0x840] sm:$0xff] %v935
  %1129 = vst [vmem:[#allocation2 + $0x888] sm:$0xff] %v936
  %1130 = vst [vmem:[#allocation2 + $0x8d0] sm:$0xff] %v937
  %1131 = vst [vmem:[#allocation2 + $0x20] sm:$0xff] %v938
  %1132 = vst [vmem:[#allocation2 + $0x68] sm:$0xff] %v939
  %1133 = vst [vmem:[#allocation2 + $0xb0] sm:$0xff] %v940
  %1134 = vst [vmem:[#allocation2 + $0xf8] sm:$0xff] %v941
  %1135 = vst [vmem:[#allocation2 + $0x140] sm:$0xff] %v942
  %1136 = vst [vmem:[#allocation2 + $0x188] sm:$0xff] %v943
  %1137 = vst [vmem:[#allocation2 + $0x1d0] sm:$0xff] %v944
  %1138 = vst [vmem:[#allocation2 + $0x218] sm:$0xff] %v945
  %1139 = vst [vmem:[#allocation2 + $0x260] sm:$0xff] %v946
  %1140 = vst [vmem:[#allocation2 + $0x2a8] sm:$0xff] %v947
  %1141 = vst [vmem:[#allocation2 + $0x2f0] sm:$0xff] %v948
  %1142 = vst [vmem:[#allocation2 + $0x338] sm:$0xff] %v949
  %1143 = vst [vmem:[#allocation2 + $0x380] sm:$0xff] %v950
  %1144 = vst [vmem:[#allocation2 + $0x3c8] sm:$0xff] %v951
  %1145 = vst [vmem:[#allocation2 + $0x410] sm:$0xff] %v952
  %1146 = vst [vmem:[#allocation2 + $0x458] sm:$0xff] %v953
  %1147 = vst [vmem:[#allocation2 + $0x4a0] sm:$0xff] %v954
  %1148 = vst [vmem:[#allocation2 + $0x4e8] sm:$0xff] %v955
  %1149 = vst [vmem:[#allocation2 + $0x530] sm:$0xff] %v956
  %1150 = vst [vmem:[#allocation2 + $0x578] sm:$0xff] %v957
  %1151 = vst [vmem:[#allocation2 + $0x5c0] sm:$0xff] %v958
  %1152 = vst [vmem:[#allocation2 + $0x608] sm:$0xff] %v959
  %1153 = vst [vmem:[#allocation2 + $0x650] sm:$0xff] %v960
  %1154 = vst [vmem:[#allocation2 + $0x698] sm:$0xff] %v961
  %1155 = vst [vmem:[#allocation2 + $0x6e0] sm:$0xff] %v962
  %1156 = vst [vmem:[#allocation2 + $0x728] sm:$0xff] %v963
  %1157 = vst [vmem:[#allocation2 + $0x770] sm:$0xff] %v964
  %1158 = vst [vmem:[#allocation2 + $0x7b8] sm:$0xff] %v965
  %1159 = vst [vmem:[#allocation2 + $0x800] sm:$0xff] %v966
  %1160 = vst [vmem:[#allocation2 + $0x848] sm:$0xff] %v967
  %1161 = vst [vmem:[#allocation2 + $0x890] sm:$0xff] %v968
  %1162 = vst [vmem:[#allocation2 + $0x8d8] sm:$0xff] %v969
  %1163 = vst [vmem:[#allocation2 + $0x28] sm:$0xff] %v970
  %1164 = vst [vmem:[#allocation2 + $0x70] sm:$0xff] %v971
  %1165 = vst [vmem:[#allocation2 + $0xb8] sm:$0xff] %v972
  %1166 = vst [vmem:[#allocation2 + $0x100] sm:$0xff] %v973
  %1167 = vst [vmem:[#allocation2 + $0x148] sm:$0xff] %v974
  %1168 = vst [vmem:[#allocation2 + $0x190] sm:$0xff] %v975
  %1169 = vst [vmem:[#allocation2 + $0x1d8] sm:$0xff] %v976
  %1170 = vst [vmem:[#allocation2 + $0x220] sm:$0xff] %v977
  %1171 = vst [vmem:[#allocation2 + $0x268] sm:$0xff] %v978
  %1172 = vst [vmem:[#allocation2 + $0x2b0] sm:$0xff] %v979
  %1173 = vst [vmem:[#allocation2 + $0x2f8] sm:$0xff] %v980
  %1174 = vst [vmem:[#allocation2 + $0x340] sm:$0xff] %v981
  %1175 = vst [vmem:[#allocation2 + $0x388] sm:$0xff] %v982
  %1176 = vst [vmem:[#allocation2 + $0x3d0] sm:$0xff] %v983
  %1177 = vst [vmem:[#allocation2 + $0x418] sm:$0xff] %v984
  %1178 = vst [vmem:[#allocation2 + $0x460] sm:$0xff] %v985
  %1179 = vst [vmem:[#allocation2 + $0x4a8] sm:$0xff] %v986
  %1180 = vst [vmem:[#allocation2 + $0x4f0] sm:$0xff] %v987
  %1181 = vst [vmem:[#allocation2 + $0x538] sm:$0xff] %v988
  %1182 = vst [vmem:[#allocation2 + $0x580] sm:$0xff] %v989
  %1183 = vst [vmem:[#allocation2 + $0x5c8] sm:$0xff] %v990
  %1184 = vst [vmem:[#allocation2 + $0x610] sm:$0xff] %v991
  %1185 = vst [vmem:[#allocation2 + $0x658] sm:$0xff] %v992
  %1186 = vst [vmem:[#allocation2 + $0x6a0] sm:$0xff] %v993
  %1187 = vst [vmem:[#allocation2 + $0x6e8] sm:$0xff] %v994
  %1188 = vst [vmem:[#allocation2 + $0x730] sm:$0xff] %v995
  %1189 = vst [vmem:[#allocation2 + $0x778] sm:$0xff] %v996
  %1190 = vst [vmem:[#allocation2 + $0x7c0] sm:$0xff] %v997
  %1191 = vst [vmem:[#allocation2 + $0x808] sm:$0xff] %v998
  %1192 = vst [vmem:[#allocation2 + $0x850] sm:$0xff] %v999
  %1193 = vst [vmem:[#allocation2 + $0x898] sm:$0xff] %v1000
  %1194 = vst [vmem:[#allocation2 + $0x8e0] sm:$0xff] %v1001
  %1195 = vst [vmem:[#allocation2 + $0x30] sm:$0xff] %v907
  %1196 = vst [vmem:[#allocation2 + $0x78] sm:$0xff] %v908
  %1197 = vst [vmem:[#allocation2 + $0xc0] sm:$0xff] %v909
  %1198 = vst [vmem:[#allocation2 + $0x108] sm:$0xff] %v910
  %1199 = vst [vmem:[#allocation2 + $0x150] sm:$0xff] %v911
  %1200 = vst [vmem:[#allocation2 + $0x198] sm:$0xff] %v912
  %1201 = vst [vmem:[#allocation2 + $0x1e0] sm:$0xff] %v913
  %1202 = vst [vmem:[#allocation2 + $0x228] sm:$0xff] %v914
  %1203 = vst [vmem:[#allocation2 + $0x270] sm:$0xff] %v915
  %1204 = vst [vmem:[#allocation2 + $0x2b8] sm:$0xff] %v916
  %1205 = vst [vmem:[#allocation2 + $0x300] sm:$0xff] %v917
  %1206 = vst [vmem:[#allocation2 + $0x348] sm:$0xff] %v918
  %1207 = vst [vmem:[#allocation2 + $0x390] sm:$0xff] %v919
  %1208 = vst [vmem:[#allocation2 + $0x3d8] sm:$0xff] %v920
  %1209 = vst [vmem:[#allocation2 + $0x420] sm:$0xff] %v921
  %1210 = vst [vmem:[#allocation2 + $0x4b0] sm:$0xff] %v923
  %1211 = vst [vmem:[#allocation2 + $0x4f8] sm:$0xff] %v924
  %1212 = vst [vmem:[#allocation2 + $0x540] sm:$0xff] %v925
  %1213 = vst [vmem:[#allocation2 + $0x588] sm:$0xff] %v926
  %1214 = vst [vmem:[#allocation2 + $0x5d0] sm:$0xff] %v927
  %1215 = vst [vmem:[#allocation2 + $0x618] sm:$0xff] %v928
  %1216 = vst [vmem:[#allocation2 + $0x660] sm:$0xff] %v929
  %1217 = vst [vmem:[#allocation2 + $0x6a8] sm:$0xff] %v930
  %1218 = vst [vmem:[#allocation2 + $0x6f0] sm:$0xff] %v931
  %1219 = vst [vmem:[#allocation2 + $0x738] sm:$0xff] %v932
  %1220 = vst [vmem:[#allocation2 + $0x780] sm:$0xff] %v933
  %1221 = vst [vmem:[#allocation2 + $0x7c8] sm:$0xff] %v934
  %1222 = vst [vmem:[#allocation2 + $0x810] sm:$0xff] %v935
  %1223 = vst [vmem:[#allocation2 + $0x858] sm:$0xff] %v936
  %1224 = vst [vmem:[#allocation2 + $0x8a0] sm:$0xff] %v937
  %s1225 = scalar_lea.vmem [#allocation2], 1080
  %1226 = vst [vmem:[%s1225 + $0x30] sm:$0xff] 0
  %1227 = vst [vmem:[%s1225 + $0x4b0] sm:$0xff] 0
  %1228 = vst [vmem:[#allocation2 + $0x38] sm:$0xff] %v939
  %1229 = vst [vmem:[#allocation2 + $0x80] sm:$0xff] %v940
  %1230 = vst [vmem:[#allocation2 + $0xc8] sm:$0xff] %v941
  %1231 = vst [vmem:[#allocation2 + $0x110] sm:$0xff] %v942
  %1232 = vst [vmem:[#allocation2 + $0x158] sm:$0xff] %v943
  %1233 = vst [vmem:[#allocation2 + $0x1a0] sm:$0xff] %v944
  %1234 = vst [vmem:[#allocation2 + $0x1e8] sm:$0xff] %v945
  %1235 = vst [vmem:[#allocation2 + $0x230] sm:$0xff] %v946
  %1236 = vst [vmem:[#allocation2 + $0x278] sm:$0xff] %v947
  %1237 = vst [vmem:[#allocation2 + $0x2c0] sm:$0xff] %v948
  %1238 = vst [vmem:[#allocation2 + $0x308] sm:$0xff] %v949
  %1239 = vst [vmem:[#allocation2 + $0x350] sm:$0xff] %v950
  %1240 = vst [vmem:[#allocation2 + $0x398] sm:$0xff] %v951
  %1241 = vst [vmem:[#allocation2 + $0x3e0] sm:$0xff] %v952
  %1242 = vst [vmem:[#allocation2 + $0x428] sm:$0xff] %v953
  %1243 = vst [vmem:[#allocation2 + $0x4b8] sm:$0xff] %v955
  %1244 = vst [vmem:[#allocation2 + $0x500] sm:$0xff] %v956
  %1245 = vst [vmem:[#allocation2 + $0x548] sm:$0xff] %v957
  %1246 = vst [vmem:[#allocation2 + $0x590] sm:$0xff] %v958
  %1247 = vst [vmem:[#allocation2 + $0x5d8] sm:$0xff] %v959
  %1248 = vst [vmem:[#allocation2 + $0x620] sm:$0xff] %v960
  %1249 = vst [vmem:[#allocation2 + $0x668] sm:$0xff] %v961
  %1250 = vst [vmem:[#allocation2 + $0x6b0] sm:$0xff] %v962
  %1251 = vst [vmem:[#allocation2 + $0x6f8] sm:$0xff] %v963
  %1252 = vst [vmem:[#allocation2 + $0x740] sm:$0xff] %v964
  %1253 = vst [vmem:[#allocation2 + $0x788] sm:$0xff] %v965
  %1254 = vst [vmem:[#allocation2 + $0x7d0] sm:$0xff] %v966
  %1255 = vst [vmem:[#allocation2 + $0x818] sm:$0xff] %v967
  %1256 = vst [vmem:[#allocation2 + $0x860] sm:$0xff] %v968
  %1257 = vst [vmem:[#allocation2 + $0x8a8] sm:$0xff] %v969
  %1258 = vst [vmem:[%s1225 + $0x38] sm:$0xff] 0
  %1259 = vst [vmem:[%s1225 + $0x4b8] sm:$0xff] 0
  %1260 = vst [vmem:[#allocation2 + $0x40] sm:$0xff] %v971
  %1261 = vst [vmem:[#allocation2 + $0x88] sm:$0xff] %v972
  %1262 = vst [vmem:[#allocation2 + $0xd0] sm:$0xff] %v973
  %1263 = vst [vmem:[#allocation2 + $0x118] sm:$0xff] %v974
  %1264 = vst [vmem:[#allocation2 + $0x160] sm:$0xff] %v975
  %1265 = vst [vmem:[#allocation2 + $0x1a8] sm:$0xff] %v976
  %1266 = vst [vmem:[#allocation2 + $0x1f0] sm:$0xff] %v977
  %1267 = vst [vmem:[#allocation2 + $0x238] sm:$0xff] %v978
  %1268 = vst [vmem:[#allocation2 + $0x280] sm:$0xff] %v979
  %1269 = vst [vmem:[#allocation2 + $0x2c8] sm:$0xff] %v980
  %1270 = vst [vmem:[#allocation2 + $0x310] sm:$0xff] %v981
  %1271 = vst [vmem:[#allocation2 + $0x358] sm:$0xff] %v982
  %1272 = vst [vmem:[#allocation2 + $0x3a0] sm:$0xff] %v983
  %1273 = vst [vmem:[#allocation2 + $0x3e8] sm:$0xff] %v984
  %1274 = vst [vmem:[#allocation2 + $0x430] sm:$0xff] %v985
  %1275 = vst [vmem:[#allocation2 + $0x4c0] sm:$0xff] %v987
  %1276 = vst [vmem:[#allocation2 + $0x508] sm:$0xff] %v988
  %1277 = vst [vmem:[#allocation2 + $0x550] sm:$0xff] %v989
  %1278 = vst [vmem:[#allocation2 + $0x598] sm:$0xff] %v990
  %1279 = vst [vmem:[#allocation2 + $0x5e0] sm:$0xff] %v991
  %1280 = vst [vmem:[#allocation2 + $0x628] sm:$0xff] %v992
  %1281 = vst [vmem:[#allocation2 + $0x670] sm:$0xff] %v993
  %1282 = vst [vmem:[#allocation2 + $0x6b8] sm:$0xff] %v994
  %1283 = vst [vmem:[#allocation2 + $0x700] sm:$0xff] %v995
  %1284 = vst [vmem:[#allocation2 + $0x748] sm:$0xff] %v996
  %1285 = vst [vmem:[#allocation2 + $0x790] sm:$0xff] %v997
  %1286 = vst [vmem:[#allocation2 + $0x7d8] sm:$0xff] %v998
  %1287 = vst [vmem:[#allocation2 + $0x820] sm:$0xff] %v999
  %1288 = vst [vmem:[#allocation2 + $0x868] sm:$0xff] %v1000
  %1289 = vst [vmem:[#allocation2 + $0x8b0] sm:$0xff] %v1001
  %1290 = vst [vmem:[%s1225 + $0x40] sm:$0xff] 0
  %1291 = vst [vmem:[%s1225 + $0x4c0] sm:$0xff] 0
  %v1292 = vld [vmem:[#allocation2] sm:$0xff]
  %v1293 = vld [vmem:[#allocation2 + $0x8] sm:$0xff]
  %v1294 = vld [vmem:[#allocation2 + $0x10] sm:$0xff]
  %v1295 = vld [vmem:[#allocation2 + $0x18] sm:$0xff]
  %v1296 = vld [vmem:[#allocation2 + $0x20] sm:$0xff]
  %v1297 = vld [vmem:[#allocation2 + $0x28] sm:$0xff]
  %v1298 = vld [vmem:[#allocation2 + $0x30] sm:$0xff]
  %v1299 = vld [vmem:[#allocation2 + $0x38] sm:$0xff]
  %v1300 = vld [vmem:[#allocation2 + $0x40] sm:$0xff]
  %v1301 = vld [vmem:[#allocation2 + $0x48] sm:$0xff]
  %v1302 = vld [vmem:[#allocation2 + $0x50] sm:$0xff]
  %v1303 = vld [vmem:[#allocation2 + $0x58] sm:$0xff]
  %v1304 = vld [vmem:[#allocation2 + $0x60] sm:$0xff]
  %v1305 = vld [vmem:[#allocation2 + $0x68] sm:$0xff]
  %v1306 = vld [vmem:[#allocation2 + $0x70] sm:$0xff]
  %v1307 = vld [vmem:[#allocation2 + $0x78] sm:$0xff]
  %v1308 = vld [vmem:[#allocation2 + $0x80] sm:$0xff]
  %v1309 = vld [vmem:[#allocation2 + $0x88] sm:$0xff]
  %v1310 = vld [vmem:[#allocation2 + $0x90] sm:$0xff]
  %v1311 = vld [vmem:[#allocation2 + $0x98] sm:$0xff]
  %v1312 = vld [vmem:[#allocation2 + $0xa0] sm:$0xff]
  %v1313 = vld [vmem:[#allocation2 + $0xa8] sm:$0xff]
  %v1314 = vld [vmem:[#allocation2 + $0xb0] sm:$0xff]
  %v1315 = vld [vmem:[#allocation2 + $0xb8] sm:$0xff]
  %v1316 = vld [vmem:[#allocation2 + $0xc0] sm:$0xff]
  %v1317 = vld [vmem:[#allocation2 + $0xc8] sm:$0xff]
  %v1318 = vld [vmem:[#allocation2 + $0xd0] sm:$0xff]
  %v1319 = vld [vmem:[#allocation2 + $0xd8] sm:$0xff]
  %v1320 = vld [vmem:[#allocation2 + $0xe0] sm:$0xff]
  %v1321 = vld [vmem:[#allocation2 + $0xe8] sm:$0xff]
  %v1322 = vld [vmem:[#allocation2 + $0xf0] sm:$0xff]
  %v1323 = vld [vmem:[#allocation2 + $0xf8] sm:$0xff]
  %v1324 = vld [vmem:[#allocation2 + $0x100] sm:$0xff]
  %v1325 = vld [vmem:[#allocation2 + $0x108] sm:$0xff]
  %v1326 = vld [vmem:[#allocation2 + $0x110] sm:$0xff]
  %v1327 = vld [vmem:[#allocation2 + $0x118] sm:$0xff]
  %v1328 = vld [vmem:[#allocation2 + $0x120] sm:$0xff]
  %v1329 = vld [vmem:[#allocation2 + $0x128] sm:$0xff]
  %v1330 = vld [vmem:[#allocation2 + $0x130] sm:$0xff]
  %v1331 = vld [vmem:[#allocation2 + $0x138] sm:$0xff]
  %v1332 = vld [vmem:[#allocation2 + $0x140] sm:$0xff]
  %v1333 = vld [vmem:[#allocation2 + $0x148] sm:$0xff]
  %v1334 = vld [vmem:[#allocation2 + $0x150] sm:$0xff]
  %v1335 = vld [vmem:[#allocation2 + $0x158] sm:$0xff]
  %v1336 = vld [vmem:[#allocation2 + $0x160] sm:$0xff]
  %v1337 = vld [vmem:[#allocation2 + $0x168] sm:$0xff]
  %v1338 = vld [vmem:[#allocation2 + $0x170] sm:$0xff]
  %v1339 = vld [vmem:[#allocation2 + $0x178] sm:$0xff]
  %v1340 = vld [vmem:[#allocation2 + $0x180] sm:$0xff]
  %v1341 = vld [vmem:[#allocation2 + $0x188] sm:$0xff]
  %v1342 = vld [vmem:[#allocation2 + $0x190] sm:$0xff]
  %v1343 = vld [vmem:[#allocation2 + $0x198] sm:$0xff]
  %v1344 = vld [vmem:[#allocation2 + $0x1a0] sm:$0xff]
  %v1345 = vld [vmem:[#allocation2 + $0x1a8] sm:$0xff]
  %v1346 = vld [vmem:[#allocation2 + $0x1b0] sm:$0xff]
  %v1347 = vld [vmem:[#allocation2 + $0x1b8] sm:$0xff]
  %v1348 = vld [vmem:[#allocation2 + $0x1c0] sm:$0xff]
  %v1349 = vld [vmem:[#allocation2 + $0x1c8] sm:$0xff]
  %v1350 = vld [vmem:[#allocation2 + $0x1d0] sm:$0xff]
  %v1351 = vld [vmem:[#allocation2 + $0x1d8] sm:$0xff]
  %v1352 = vld [vmem:[#allocation2 + $0x1e0] sm:$0xff]
  %v1353 = vld [vmem:[#allocation2 + $0x1e8] sm:$0xff]
  %v1354 = vld [vmem:[#allocation2 + $0x1f0] sm:$0xff]
  %v1355 = vld [vmem:[#allocation2 + $0x1f8] sm:$0xff]
  %v1356 = vld [vmem:[#allocation2 + $0x200] sm:$0xff]
  %v1357 = vld [vmem:[#allocation2 + $0x208] sm:$0xff]
  %v1358 = vld [vmem:[#allocation2 + $0x210] sm:$0xff]
  %v1359 = vld [vmem:[#allocation2 + $0x218] sm:$0xff]
  %v1360 = vld [vmem:[#allocation2 + $0x220] sm:$0xff]
  %v1361 = vld [vmem:[#allocation2 + $0x228] sm:$0xff]
  %v1362 = vld [vmem:[#allocation2 + $0x230] sm:$0xff]
  %v1363 = vld [vmem:[#allocation2 + $0x238] sm:$0xff]
  %v1364 = vld [vmem:[#allocation2 + $0x240] sm:$0xff]
  %v1365 = vld [vmem:[#allocation2 + $0x248] sm:$0xff]
  %v1366 = vld [vmem:[#allocation2 + $0x250] sm:$0xff]
  %v1367 = vld [vmem:[#allocation2 + $0x258] sm:$0xff]
  %v1368 = vld [vmem:[#allocation2 + $0x260] sm:$0xff]
  %v1369 = vld [vmem:[#allocation2 + $0x268] sm:$0xff]
  %v1370 = vld [vmem:[#allocation2 + $0x270] sm:$0xff]
  %v1371 = vld [vmem:[#allocation2 + $0x278] sm:$0xff]
  %v1372 = vld [vmem:[#allocation2 + $0x280] sm:$0xff]
  %v1373 = vld [vmem:[#allocation2 + $0x288] sm:$0xff]
  %v1374 = vld [vmem:[#allocation2 + $0x290] sm:$0xff]
  %v1375 = vld [vmem:[#allocation2 + $0x298] sm:$0xff]
  %v1376 = vld [vmem:[#allocation2 + $0x2a0] sm:$0xff]
  %v1377 = vld [vmem:[#allocation2 + $0x2a8] sm:$0xff]
  %v1378 = vld [vmem:[#allocation2 + $0x2b0] sm:$0xff]
  %v1379 = vld [vmem:[#allocation2 + $0x2b8] sm:$0xff]
  %v1380 = vld [vmem:[#allocation2 + $0x2c0] sm:$0xff]
  %v1381 = vld [vmem:[#allocation2 + $0x2c8] sm:$0xff]
  %v1382 = vld [vmem:[#allocation2 + $0x2d0] sm:$0xff]
  %v1383 = vld [vmem:[#allocation2 + $0x2d8] sm:$0xff]
  %v1384 = vld [vmem:[#allocation2 + $0x2e0] sm:$0xff]
  %v1385 = vld [vmem:[#allocation2 + $0x2e8] sm:$0xff]
  %v1386 = vld [vmem:[#allocation2 + $0x2f0] sm:$0xff]
  %v1387 = vld [vmem:[#allocation2 + $0x2f8] sm:$0xff]
  %v1388 = vld [vmem:[#allocation2 + $0x300] sm:$0xff]
  %v1389 = vld [vmem:[#allocation2 + $0x308] sm:$0xff]
  %v1390 = vld [vmem:[#allocation2 + $0x310] sm:$0xff]
  %v1391 = vld [vmem:[#allocation2 + $0x318] sm:$0xff]
  %v1392 = vld [vmem:[#allocation2 + $0x320] sm:$0xff]
  %v1393 = vld [vmem:[#allocation2 + $0x328] sm:$0xff]
  %v1394 = vld [vmem:[#allocation2 + $0x330] sm:$0xff]
  %v1395 = vld [vmem:[#allocation2 + $0x338] sm:$0xff]
  %v1396 = vld [vmem:[#allocation2 + $0x340] sm:$0xff]
  %v1397 = vld [vmem:[#allocation2 + $0x348] sm:$0xff]
  %v1398 = vld [vmem:[#allocation2 + $0x350] sm:$0xff]
  %v1399 = vld [vmem:[#allocation2 + $0x358] sm:$0xff]
  %v1400 = vld [vmem:[#allocation2 + $0x360] sm:$0xff]
  %v1401 = vld [vmem:[#allocation2 + $0x368] sm:$0xff]
  %v1402 = vld [vmem:[#allocation2 + $0x370] sm:$0xff]
  %v1403 = vld [vmem:[#allocation2 + $0x378] sm:$0xff]
  %v1404 = vld [vmem:[#allocation2 + $0x380] sm:$0xff]
  %v1405 = vld [vmem:[#allocation2 + $0x388] sm:$0xff]
  %v1406 = vld [vmem:[#allocation2 + $0x390] sm:$0xff]
  %v1407 = vld [vmem:[#allocation2 + $0x398] sm:$0xff]
  %v1408 = vld [vmem:[#allocation2 + $0x3a0] sm:$0xff]
  %v1409 = vld [vmem:[#allocation2 + $0x3a8] sm:$0xff]
  %v1410 = vld [vmem:[#allocation2 + $0x3b0] sm:$0xff]
  %v1411 = vld [vmem:[#allocation2 + $0x3b8] sm:$0xff]
  %v1412 = vld [vmem:[#allocation2 + $0x3c0] sm:$0xff]
  %v1413 = vld [vmem:[#allocation2 + $0x3c8] sm:$0xff]
  %v1414 = vld [vmem:[#allocation2 + $0x3d0] sm:$0xff]
  %v1415 = vld [vmem:[#allocation2 + $0x3d8] sm:$0xff]
  %v1416 = vld [vmem:[#allocation2 + $0x3e0] sm:$0xff]
  %v1417 = vld [vmem:[#allocation2 + $0x3e8] sm:$0xff]
  %v1418 = vld [vmem:[#allocation2 + $0x3f0] sm:$0xff]
  %v1419 = vld [vmem:[#allocation2 + $0x3f8] sm:$0xff]
  %v1420 = vld [vmem:[#allocation2 + $0x400] sm:$0xff]
  %v1421 = vld [vmem:[#allocation2 + $0x408] sm:$0xff]
  %v1422 = vld [vmem:[#allocation2 + $0x410] sm:$0xff]
  %v1423 = vld [vmem:[#allocation2 + $0x418] sm:$0xff]
  %v1424 = vld [vmem:[#allocation2 + $0x420] sm:$0xff]
  %v1425 = vld [vmem:[#allocation2 + $0x428] sm:$0xff]
  %v1426 = vld [vmem:[#allocation2 + $0x430] sm:$0xff]
  %v1427 = vld [vmem:[#allocation2 + $0x438] sm:$0xff]
  %v1428 = vld [vmem:[#allocation2 + $0x440] sm:$0xff]
  %v1429 = vld [vmem:[#allocation2 + $0x448] sm:$0xff]
  %v1430 = vld [vmem:[#allocation2 + $0x450] sm:$0xff]
  %v1431 = vld [vmem:[#allocation2 + $0x458] sm:$0xff]
  %v1432 = vld [vmem:[#allocation2 + $0x460] sm:$0xff]
  %v1433 = vld [vmem:[#allocation2 + $0x468] sm:$0xff]
  %v1434 = vld [vmem:[#allocation2 + $0x470] sm:$0xff]
  %v1435 = vld [vmem:[#allocation2 + $0x478] sm:$0xff]
  %v1436 = vld [vmem:[#allocation2 + $0x480] sm:$0xff]
  %v1437 = vld [vmem:[#allocation2 + $0x488] sm:$0xff]
  %v1438 = vld [vmem:[#allocation2 + $0x490] sm:$0xff]
  %v1439 = vld [vmem:[#allocation2 + $0x498] sm:$0xff]
  %v1440 = vld [vmem:[#allocation2 + $0x4a0] sm:$0xff]
  %v1441 = vld [vmem:[#allocation2 + $0x4a8] sm:$0xff]
  %v1442 = vld [vmem:[#allocation2 + $0x4b0] sm:$0xff]
  %v1443 = vld [vmem:[#allocation2 + $0x4b8] sm:$0xff]
  %v1444 = vld [vmem:[#allocation2 + $0x4c0] sm:$0xff]
  %v1445 = vld [vmem:[#allocation2 + $0x4c8] sm:$0xff]
  %v1446 = vld [vmem:[#allocation2 + $0x4d0] sm:$0xff]
  %v1447 = vld [vmem:[#allocation2 + $0x4d8] sm:$0xff]
  %v1448 = vld [vmem:[#allocation2 + $0x4e0] sm:$0xff]
  %v1449 = vld [vmem:[#allocation2 + $0x4e8] sm:$0xff]
  %v1450 = vld [vmem:[#allocation2 + $0x4f0] sm:$0xff]
  %v1451 = vld [vmem:[#allocation2 + $0x4f8] sm:$0xff]
  %v1452 = vld [vmem:[#allocation2 + $0x500] sm:$0xff]
  %v1453 = vld [vmem:[#allocation2 + $0x508] sm:$0xff]
  %v1454 = vld [vmem:[#allocation2 + $0x510] sm:$0xff]
  %v1455 = vld [vmem:[#allocation2 + $0x518] sm:$0xff]
  %v1456 = vld [vmem:[#allocation2 + $0x520] sm:$0xff]
  %v1457 = vld [vmem:[#allocation2 + $0x528] sm:$0xff]
  %v1458 = vld [vmem:[#allocation2 + $0x530] sm:$0xff]
  %v1459 = vld [vmem:[#allocation2 + $0x538] sm:$0xff]
  %v1460 = vld [vmem:[#allocation2 + $0x540] sm:$0xff]
  %v1461 = vld [vmem:[#allocation2 + $0x548] sm:$0xff]
  %v1462 = vld [vmem:[#allocation2 + $0x550] sm:$0xff]
  %v1463 = vld [vmem:[#allocation2 + $0x558] sm:$0xff]
  %v1464 = vld [vmem:[#allocation2 + $0x560] sm:$0xff]
  %v1465 = vld [vmem:[#allocation2 + $0x568] sm:$0xff]
  %v1466 = vld [vmem:[#allocation2 + $0x570] sm:$0xff]
  %v1467 = vld [vmem:[#allocation2 + $0x578] sm:$0xff]
  %v1468 = vld [vmem:[#allocation2 + $0x580] sm:$0xff]
  %v1469 = vld [vmem:[#allocation2 + $0x588] sm:$0xff]
  %v1470 = vld [vmem:[#allocation2 + $0x590] sm:$0xff]
  %v1471 = vld [vmem:[#allocation2 + $0x598] sm:$0xff]
  %v1472 = vld [vmem:[#allocation2 + $0x5a0] sm:$0xff]
  %v1473 = vld [vmem:[#allocation2 + $0x5a8] sm:$0xff]
  %v1474 = vld [vmem:[#allocation2 + $0x5b0] sm:$0xff]
  %v1475 = vld [vmem:[#allocation2 + $0x5b8] sm:$0xff]
  %v1476 = vld [vmem:[#allocation2 + $0x5c0] sm:$0xff]
  %v1477 = vld [vmem:[#allocation2 + $0x5c8] sm:$0xff]
  %v1478 = vld [vmem:[#allocation2 + $0x5d0] sm:$0xff]
  %v1479 = vld [vmem:[#allocation2 + $0x5d8] sm:$0xff]
  %v1480 = vld [vmem:[#allocation2 + $0x5e0] sm:$0xff]
  %v1481 = vld [vmem:[#allocation2 + $0x5e8] sm:$0xff]
  %v1482 = vld [vmem:[#allocation2 + $0x5f0] sm:$0xff]
  %v1483 = vld [vmem:[#allocation2 + $0x5f8] sm:$0xff]
  %v1484 = vld [vmem:[#allocation2 + $0x600] sm:$0xff]
  %v1485 = vld [vmem:[#allocation2 + $0x608] sm:$0xff]
  %v1486 = vld [vmem:[#allocation2 + $0x610] sm:$0xff]
  %v1487 = vld [vmem:[#allocation2 + $0x618] sm:$0xff]
  %v1488 = vld [vmem:[#allocation2 + $0x620] sm:$0xff]
  %v1489 = vld [vmem:[#allocation2 + $0x628] sm:$0xff]
  %v1490 = vld [vmem:[#allocation2 + $0x630] sm:$0xff]
  %v1491 = vld [vmem:[#allocation2 + $0x638] sm:$0xff]
  %v1492 = vld [vmem:[#allocation2 + $0x640] sm:$0xff]
  %v1493 = vld [vmem:[#allocation2 + $0x648] sm:$0xff]
  %v1494 = vld [vmem:[#allocation2 + $0x650] sm:$0xff]
  %v1495 = vld [vmem:[#allocation2 + $0x658] sm:$0xff]
  %v1496 = vld [vmem:[#allocation2 + $0x660] sm:$0xff]
  %v1497 = vld [vmem:[#allocation2 + $0x668] sm:$0xff]
  %v1498 = vld [vmem:[#allocation2 + $0x670] sm:$0xff]
  %v1499 = vld [vmem:[#allocation2 + $0x678] sm:$0xff]
  %v1500 = vld [vmem:[#allocation2 + $0x680] sm:$0xff]
  %v1501 = vld [vmem:[#allocation2 + $0x688] sm:$0xff]
  %v1502 = vld [vmem:[#allocation2 + $0x690] sm:$0xff]
  %v1503 = vld [vmem:[#allocation2 + $0x698] sm:$0xff]
  %v1504 = vld [vmem:[#allocation2 + $0x6a0] sm:$0xff]
  %v1505 = vld [vmem:[#allocation2 + $0x6a8] sm:$0xff]
  %v1506 = vld [vmem:[#allocation2 + $0x6b0] sm:$0xff]
  %v1507 = vld [vmem:[#allocation2 + $0x6b8] sm:$0xff]
  %v1508 = vld [vmem:[#allocation2 + $0x6c0] sm:$0xff]
  %v1509 = vld [vmem:[#allocation2 + $0x6c8] sm:$0xff]
  %v1510 = vld [vmem:[#allocation2 + $0x6d0] sm:$0xff]
  %v1511 = vld [vmem:[#allocation2 + $0x6d8] sm:$0xff]
  %v1512 = vld [vmem:[#allocation2 + $0x6e0] sm:$0xff]
  %v1513 = vld [vmem:[#allocation2 + $0x6e8] sm:$0xff]
  %v1514 = vld [vmem:[#allocation2 + $0x6f0] sm:$0xff]
  %v1515 = vld [vmem:[#allocation2 + $0x6f8] sm:$0xff]
  %v1516 = vld [vmem:[#allocation2 + $0x700] sm:$0xff]
  %v1517 = vld [vmem:[#allocation2 + $0x708] sm:$0xff]
  %v1518 = vld [vmem:[#allocation2 + $0x710] sm:$0xff]
  %v1519 = vld [vmem:[#allocation2 + $0x718] sm:$0xff]
  %v1520 = vld [vmem:[#allocation2 + $0x720] sm:$0xff]
  %v1521 = vld [vmem:[#allocation2 + $0x728] sm:$0xff]
  %v1522 = vld [vmem:[#allocation2 + $0x730] sm:$0xff]
  %v1523 = vld [vmem:[#allocation2 + $0x738] sm:$0xff]
  %v1524 = vld [vmem:[#allocation2 + $0x740] sm:$0xff]
  %v1525 = vld [vmem:[#allocation2 + $0x748] sm:$0xff]
  %v1526 = vld [vmem:[#allocation2 + $0x750] sm:$0xff]
  %v1527 = vld [vmem:[#allocation2 + $0x758] sm:$0xff]
  %v1528 = vld [vmem:[#allocation2 + $0x760] sm:$0xff]
  %v1529 = vld [vmem:[#allocation2 + $0x768] sm:$0xff]
  %v1530 = vld [vmem:[#allocation2 + $0x770] sm:$0xff]
  %v1531 = vld [vmem:[#allocation2 + $0x778] sm:$0xff]
  %v1532 = vld [vmem:[#allocation2 + $0x780] sm:$0xff]
  %v1533 = vld [vmem:[#allocation2 + $0x788] sm:$0xff]
  %v1534 = vld [vmem:[#allocation2 + $0x790] sm:$0xff]
  %v1535 = vld [vmem:[#allocation2 + $0x798] sm:$0xff]
  %v1536 = vld [vmem:[#allocation2 + $0x7a0] sm:$0xff]
  %v1537 = vld [vmem:[#allocation2 + $0x7a8] sm:$0xff]
  %v1538 = vld [vmem:[#allocation2 + $0x7b0] sm:$0xff]
  %v1539 = vld [vmem:[#allocation2 + $0x7b8] sm:$0xff]
  %v1540 = vld [vmem:[#allocation2 + $0x7c0] sm:$0xff]
  %v1541 = vld [vmem:[#allocation2 + $0x7c8] sm:$0xff]
  %v1542 = vld [vmem:[#allocation2 + $0x7d0] sm:$0xff]
  %v1543 = vld [vmem:[#allocation2 + $0x7d8] sm:$0xff]
  %v1544 = vld [vmem:[#allocation2 + $0x7e0] sm:$0xff]
  %v1545 = vld [vmem:[#allocation2 + $0x7e8] sm:$0xff]
  %v1546 = vld [vmem:[#allocation2 + $0x7f0] sm:$0xff]
  %v1547 = vld [vmem:[#allocation2 + $0x7f8] sm:$0xff]
  %v1548 = vld [vmem:[#allocation2 + $0x800] sm:$0xff]
  %v1549 = vld [vmem:[#allocation2 + $0x808] sm:$0xff]
  %v1550 = vld [vmem:[#allocation2 + $0x810] sm:$0xff]
  %v1551 = vld [vmem:[#allocation2 + $0x818] sm:$0xff]
  %v1552 = vld [vmem:[#allocation2 + $0x820] sm:$0xff]
  %v1553 = vld [vmem:[#allocation2 + $0x828] sm:$0xff]
  %v1554 = vld [vmem:[#allocation2 + $0x830] sm:$0xff]
  %v1555 = vld [vmem:[#allocation2 + $0x838] sm:$0xff]
  %v1556 = vld [vmem:[#allocation2 + $0x840] sm:$0xff]
  %v1557 = vld [vmem:[#allocation2 + $0x848] sm:$0xff]
  %v1558 = vld [vmem:[#allocation2 + $0x850] sm:$0xff]
  %v1559 = vld [vmem:[#allocation2 + $0x858] sm:$0xff]
  %v1560 = vld [vmem:[#allocation2 + $0x860] sm:$0xff]
  %v1561 = vld [vmem:[#allocation2 + $0x868] sm:$0xff]
  %v1562 = vld [vmem:[#allocation2 + $0x870] sm:$0xff]
  %v1563 = vld [vmem:[#allocation2 + $0x878] sm:$0xff]
  %v1564 = vld [vmem:[#allocation2 + $0x880] sm:$0xff]
  %v1565 = vld [vmem:[#allocation2 + $0x888] sm:$0xff]
  %v1566 = vld [vmem:[#allocation2 + $0x890] sm:$0xff]
  %v1567 = vld [vmem:[#allocation2 + $0x898] sm:$0xff]
  %v1568 = vld [vmem:[#allocation2 + $0x8a0] sm:$0xff]
  %v1569 = vld [vmem:[#allocation2 + $0x8a8] sm:$0xff]
  %v1570 = vld [vmem:[#allocation2 + $0x8b0] sm:$0xff]
  %v1571 = vld [vmem:[#allocation2 + $0x8b8] sm:$0xff]
  %v1572 = vld [vmem:[#allocation2 + $0x8c0] sm:$0xff]
  %v1573 = vld [vmem:[#allocation2 + $0x8c8] sm:$0xff]
  %v1574 = vld [vmem:[#allocation2 + $0x8d0] sm:$0xff]
  %v1575 = vld [vmem:[#allocation2 + $0x8d8] sm:$0xff]
  %v1576 = vld [vmem:[#allocation2 + $0x8e0] sm:$0xff]
  %v1577 = vld [vmem:[#allocation2 + $0x8e8] sm:$0xff]
  %v1578 = vld [vmem:[#allocation2 + $0x8f0] sm:$0xff]
  %v1579 = vld [vmem:[#allocation2 + $0x8f8] sm:$0xff]
  %v1580 = vld [vmem:[%s1] sm:$0xf]
  %v1581 = vld [vmem:[%s1 + $0x4] sm:$0xf]
  %v1582 = vld [vmem:[%s1 + $0x8] sm:$0xf]
  %v1583 = vld [vmem:[%s1 + $0xc] sm:$0xf]
  %v1584 = vld [vmem:[%s1 + $0x10] sm:$0xf]
  %v1585 = vld [vmem:[%s1 + $0x14] sm:$0xf]
  %v1586 = vld [vmem:[%s1 + $0x18] sm:$0xf]
  %v1587 = vld [vmem:[%s1 + $0x1c] sm:$0xf]
  %v1588 = vld [vmem:[%s1 + $0x20] sm:$0xf]
  %v1589 = vld [vmem:[%s1 + $0x24] sm:$0xf]
  %v1590 = vld [vmem:[%s1 + $0x28] sm:$0xf]
  %v1591 = vld [vmem:[%s1 + $0x2c] sm:$0xf]
  %v1592 = vld [vmem:[%s1 + $0x30] sm:$0xf]
  %v1593 = vld [vmem:[%s1 + $0x34] sm:$0xf]
  %v1594 = vld [vmem:[%s1 + $0x38] sm:$0xf]
  %v1595 = vld [vmem:[%s1 + $0x3c] sm:$0xf]
  %v1596 = vld [vmem:[%s1 + $0x40] sm:$0xf]
  %v1597 = vld [vmem:[%s1 + $0x44] sm:$0xf]
  %v1598 = vld [vmem:[%s1 + $0x48] sm:$0xf]
  %v1599 = vld [vmem:[%s1 + $0x4c] sm:$0xf]
  %v1600 = vld [vmem:[%s1 + $0x50] sm:$0xf]
  %v1601 = vld [vmem:[%s1 + $0x54] sm:$0xf]
  %v1602 = vld [vmem:[%s1 + $0x58] sm:$0xf]
  %v1603 = vld [vmem:[%s1 + $0x5c] sm:$0xf]
  %v1604 = vld [vmem:[%s1 + $0x60] sm:$0xf]
  %v1605 = vld [vmem:[%s1 + $0x64] sm:$0xf]
  %v1606 = vld [vmem:[%s1 + $0x68] sm:$0xf]
  %v1607 = vld [vmem:[%s1 + $0x6c] sm:$0xf]
  %v1608 = vld [vmem:[%s1 + $0x70] sm:$0xf]
  %v1609 = vld [vmem:[%s1 + $0x74] sm:$0xf]
  %v1610 = vld [vmem:[%s1 + $0x78] sm:$0xf]
  %v1611 = vld [vmem:[%s1 + $0x7c] sm:$0xf]
  %v1612 = vld [vmem:[%s1 + $0x80] sm:$0xf]
  %v1613 = vld [vmem:[%s1 + $0x84] sm:$0xf]
  %v1614 = vld [vmem:[%s1 + $0x88] sm:$0xf]
  %v1615 = vld [vmem:[%s1 + $0x8c] sm:$0xf]
  %v1616 = vld [vmem:[%s1 + $0x90] sm:$0xf]
  %v1617 = vld [vmem:[%s1 + $0x94] sm:$0xf]
  %v1618 = vld [vmem:[%s1 + $0x98] sm:$0xf]
  %v1619 = vld [vmem:[%s1 + $0x9c] sm:$0xf]
  %v1620 = vld [vmem:[%s1 + $0xa0] sm:$0xf]
  %v1621 = vld [vmem:[%s1 + $0xa4] sm:$0xf]
  %v1622 = vld [vmem:[%s1 + $0xa8] sm:$0xf]
  %v1623 = vld [vmem:[%s1 + $0xac] sm:$0xf]
  %v1624 = vld [vmem:[%s1 + $0xb0] sm:$0xf]
  %v1625 = vld [vmem:[%s1 + $0xb4] sm:$0xf]
  %v1626 = vld [vmem:[%s1 + $0xb8] sm:$0xf]
  %v1627 = vld [vmem:[%s1 + $0xbc] sm:$0xf]
  %v1628 = vld [vmem:[%s1 + $0xc0] sm:$0xf]
  %v1629 = vld [vmem:[%s1 + $0xc4] sm:$0xf]
  %v1630 = vld [vmem:[%s1 + $0xc8] sm:$0xf]
  %v1631 = vld [vmem:[%s1 + $0xcc] sm:$0xf]
  %v1632 = vld [vmem:[%s1 + $0xd0] sm:$0xf]
  %v1633 = vld [vmem:[%s1 + $0xd4] sm:$0xf]
  %v1634 = vld [vmem:[%s1 + $0xd8] sm:$0xf]
  %v1635 = vld [vmem:[%s1 + $0xdc] sm:$0xf]
  %v1636 = vld [vmem:[%s1 + $0xe0] sm:$0xf]
  %v1637 = vld [vmem:[%s1 + $0xe4] sm:$0xf]
  %v1638 = vld [vmem:[%s1 + $0xe8] sm:$0xf]
  %v1639 = vld [vmem:[%s1 + $0xec] sm:$0xf]
  %v1640 = vld [vmem:[%s1 + $0xf0] sm:$0xf]
  %v1641 = vld [vmem:[%s1 + $0xf4] sm:$0xf]
  %v1642 = vld [vmem:[%s1 + $0xf8] sm:$0xf]
  %v1643 = vld [vmem:[%s1 + $0xfc] sm:$0xf]
  %v1644 = vld [vmem:[%s1 + $0x100] sm:$0xf]
  %v1645 = vld [vmem:[%s1 + $0x104] sm:$0xf]
  %v1646 = vld [vmem:[%s1 + $0x108] sm:$0xf]
  %v1647 = vld [vmem:[%s1 + $0x10c] sm:$0xf]
  %v1648 = vld [vmem:[%s1 + $0x110] sm:$0xf]
  %v1649 = vld [vmem:[%s1 + $0x114] sm:$0xf]
  %v1650 = vld [vmem:[%s1 + $0x118] sm:$0xf]
  %v1651 = vld [vmem:[%s1 + $0x11c] sm:$0xf]
  %v1652 = vld [vmem:[%s1 + $0x120] sm:$0xf]
  %v1653 = vld [vmem:[%s1 + $0x124] sm:$0xf]
  %v1654 = vld [vmem:[%s1 + $0x128] sm:$0xf]
  %v1655 = vld [vmem:[%s1 + $0x12c] sm:$0xf]
  %v1656 = vld [vmem:[%s1 + $0x130] sm:$0xf]
  %v1657 = vld [vmem:[%s1 + $0x134] sm:$0xf]
  %v1658 = vld [vmem:[%s1 + $0x138] sm:$0xf]
  %v1659 = vld [vmem:[%s1 + $0x13c] sm:$0xf]
  %v1660 = vld [vmem:[%s1 + $0x140] sm:$0xf]
  %v1661 = vld [vmem:[%s1 + $0x144] sm:$0xf]
  %v1662 = vld [vmem:[%s1 + $0x148] sm:$0xf]
  %v1663 = vld [vmem:[%s1 + $0x14c] sm:$0xf]
  %v1664 = vld [vmem:[%s1 + $0x150] sm:$0xf]
  %v1665 = vld [vmem:[%s1 + $0x154] sm:$0xf]
  %v1666 = vld [vmem:[%s1 + $0x158] sm:$0xf]
  %v1667 = vld [vmem:[%s1 + $0x15c] sm:$0xf]
  %v1668 = vld [vmem:[%s1 + $0x160] sm:$0xf]
  %v1669 = vld [vmem:[%s1 + $0x164] sm:$0xf]
  %v1670 = vld [vmem:[%s1 + $0x168] sm:$0xf]
  %v1671 = vld [vmem:[%s1 + $0x16c] sm:$0xf]
  %v1672 = vld [vmem:[%s1 + $0x170] sm:$0xf]
  %v1673 = vld [vmem:[%s1 + $0x174] sm:$0xf]
  %v1674 = vld [vmem:[%s1 + $0x178] sm:$0xf]
  %v1675 = vld [vmem:[%s1 + $0x17c] sm:$0xf]
  %v1676 = vld [vmem:[%s1 + $0x180] sm:$0xf]
  %v1677 = vld [vmem:[%s1 + $0x184] sm:$0xf]
  %v1678 = vld [vmem:[%s1 + $0x188] sm:$0xf]
  %v1679 = vld [vmem:[%s1 + $0x18c] sm:$0xf]
  %v1680 = vld [vmem:[%s1 + $0x190] sm:$0xf]
  %v1681 = vld [vmem:[%s1 + $0x194] sm:$0xf]
  %v1682 = vld [vmem:[%s1 + $0x198] sm:$0xf]
  %v1683 = vld [vmem:[%s1 + $0x19c] sm:$0xf]
  %v1684 = vld [vmem:[%s1 + $0x1a0] sm:$0xf]
  %v1685 = vld [vmem:[%s1 + $0x1a4] sm:$0xf]
  %v1686 = vld [vmem:[%s1 + $0x1a8] sm:$0xf]
  %v1687 = vld [vmem:[%s1 + $0x1ac] sm:$0xf]
  %v1688 = vld [vmem:[%s1 + $0x1b0] sm:$0xf]
  %v1689 = vld [vmem:[%s1 + $0x1b4] sm:$0xf]
  %v1690 = vld [vmem:[%s1 + $0x1b8] sm:$0xf]
  %v1691 = vld [vmem:[%s1 + $0x1bc] sm:$0xf]
  %v1692 = vld [vmem:[%s1 + $0x1c0] sm:$0xf]
  %v1693 = vld [vmem:[%s1 + $0x1c4] sm:$0xf]
  %v1694 = vld [vmem:[%s1 + $0x1c8] sm:$0xf]
  %v1695 = vld [vmem:[%s1 + $0x1cc] sm:$0xf]
  %v1696 = vld [vmem:[%s1 + $0x1d0] sm:$0xf]
  %v1697 = vld [vmem:[%s1 + $0x1d4] sm:$0xf]
  %v1698 = vld [vmem:[%s1 + $0x1d8] sm:$0xf]
  %v1699 = vld [vmem:[%s1 + $0x1dc] sm:$0xf]
  %v1700 = vld [vmem:[%s1 + $0x1e0] sm:$0xf]
  %v1701 = vld [vmem:[%s1 + $0x1e4] sm:$0xf]
  %v1702 = vld [vmem:[%s1 + $0x1e8] sm:$0xf]
  %v1703 = vld [vmem:[%s1 + $0x1ec] sm:$0xf]
  %v1704 = vld [vmem:[%s1 + $0x1f0] sm:$0xf]
  %v1705 = vld [vmem:[%s1 + $0x1f4] sm:$0xf]
  %v1706 = vld [vmem:[%s1 + $0x1f8] sm:$0xf]
  %v1707 = vld [vmem:[%s1 + $0x1fc] sm:$0xf]
  %v1708 = vld [vmem:[%s1 + $0x200] sm:$0xf]
  %v1709 = vld [vmem:[%s1 + $0x204] sm:$0xf]
  %v1710 = vld [vmem:[%s1 + $0x208] sm:$0xf]
  %v1711 = vld [vmem:[%s1 + $0x20c] sm:$0xf]
  %v1712 = vld [vmem:[%s1 + $0x210] sm:$0xf]
  %v1713 = vld [vmem:[%s1 + $0x214] sm:$0xf]
  %v1714 = vld [vmem:[%s1 + $0x218] sm:$0xf]
  %v1715 = vld [vmem:[%s1 + $0x21c] sm:$0xf]
  %v1716 = vld [vmem:[%s1 + $0x220] sm:$0xf]
  %v1717 = vld [vmem:[%s1 + $0x224] sm:$0xf]
  %v1718 = vld [vmem:[%s1 + $0x228] sm:$0xf]
  %v1719 = vld [vmem:[%s1 + $0x22c] sm:$0xf]
  %v1720 = vld [vmem:[%s1 + $0x230] sm:$0xf]
  %v1721 = vld [vmem:[%s1 + $0x234] sm:$0xf]
  %v1722 = vld [vmem:[%s1 + $0x238] sm:$0xf]
  %v1723 = vld [vmem:[%s1 + $0x23c] sm:$0xf]
  %v1868 = vunpack.c.l.b16 %v1580
  %v1869 = vunpack.c.l.b16 %v1581
  %v1870 = vunpack.c.l.b16 %v1582
  %v1871 = vunpack.c.l.b16 %v1583
  %v1872 = vunpack.c.l.b16 %v1584
  %v1873 = vunpack.c.l.b16 %v1585
  %v1874 = vunpack.c.l.b16 %v1586
  %v1875 = vunpack.c.l.b16 %v1587
  %v1876 = vunpack.c.l.b16 %v1588
  %v1877 = vunpack.c.l.b16 %v1589
  %v1878 = vunpack.c.l.b16 %v1590
  %v1879 = vunpack.c.l.b16 %v1591
  %v1880 = vunpack.c.l.b16 %v1592
  %v1881 = vunpack.c.l.b16 %v1593
  %v1882 = vunpack.c.l.b16 %v1594
  %v1883 = vunpack.c.l.b16 %v1595
  %v1884 = vunpack.c.l.b16 %v1596
  %v1885 = vunpack.c.l.b16 %v1597
  %v1886 = vunpack.c.l.b16 %v1598
  %v1887 = vunpack.c.l.b16 %v1599
  %v1888 = vunpack.c.l.b16 %v1600
  %v1889 = vunpack.c.l.b16 %v1601
  %v1890 = vunpack.c.l.b16 %v1602
  %v1891 = vunpack.c.l.b16 %v1603
  %v1892 = vunpack.c.l.b16 %v1604
  %v1893 = vunpack.c.l.b16 %v1605
  %v1894 = vunpack.c.l.b16 %v1606
  %v1895 = vunpack.c.l.b16 %v1607
  %v1896 = vunpack.c.l.b16 %v1608
  %v1897 = vunpack.c.l.b16 %v1609
  %v1898 = vunpack.c.l.b16 %v1610
  %v1899 = vunpack.c.l.b16 %v1611
  %v1900 = vunpack.c.l.b16 %v1612
  %v1901 = vunpack.c.l.b16 %v1613
  %v1902 = vunpack.c.l.b16 %v1614
  %v1903 = vunpack.c.l.b16 %v1615
  %v1904 = vunpack.c.l.b16 %v1616
  %v1905 = vunpack.c.l.b16 %v1617
  %v1906 = vunpack.c.l.b16 %v1618
  %v1907 = vunpack.c.l.b16 %v1619
  %v1908 = vunpack.c.l.b16 %v1620
  %v1909 = vunpack.c.l.b16 %v1621
  %v1910 = vunpack.c.l.b16 %v1622
  %v1911 = vunpack.c.l.b16 %v1623
  %v1912 = vunpack.c.l.b16 %v1624
  %v1913 = vunpack.c.l.b16 %v1625
  %v1914 = vunpack.c.l.b16 %v1626
  %v1915 = vunpack.c.l.b16 %v1627
  %v1916 = vunpack.c.l.b16 %v1628
  %v1917 = vunpack.c.l.b16 %v1629
  %v1918 = vunpack.c.l.b16 %v1630
  %v1919 = vunpack.c.l.b16 %v1631
  %v1920 = vunpack.c.l.b16 %v1632
  %v1921 = vunpack.c.l.b16 %v1633
  %v1922 = vunpack.c.l.b16 %v1634
  %v1923 = vunpack.c.l.b16 %v1635
  %v1924 = vunpack.c.l.b16 %v1636
  %v1925 = vunpack.c.l.b16 %v1637
  %v1926 = vunpack.c.l.b16 %v1638
  %v1927 = vunpack.c.l.b16 %v1639
  %v1928 = vunpack.c.l.b16 %v1640
  %v1929 = vunpack.c.l.b16 %v1641
  %v1930 = vunpack.c.l.b16 %v1642
  %v1931 = vunpack.c.l.b16 %v1643
  %v1932 = vunpack.c.l.b16 %v1644
  %v1933 = vunpack.c.l.b16 %v1645
  %v1934 = vunpack.c.l.b16 %v1646
  %v1935 = vunpack.c.l.b16 %v1647
  %v1936 = vunpack.c.l.b16 %v1648
  %v1937 = vunpack.c.l.b16 %v1649
  %v1938 = vunpack.c.l.b16 %v1650
  %v1939 = vunpack.c.l.b16 %v1651
  %v1940 = vunpack.c.l.b16 %v1652
  %v1941 = vunpack.c.l.b16 %v1653
  %v1942 = vunpack.c.l.b16 %v1654
  %v1943 = vunpack.c.l.b16 %v1655
  %v1944 = vunpack.c.l.b16 %v1656
  %v1945 = vunpack.c.l.b16 %v1657
  %v1946 = vunpack.c.l.b16 %v1658
  %v1947 = vunpack.c.l.b16 %v1659
  %v1948 = vunpack.c.l.b16 %v1660
  %v1949 = vunpack.c.l.b16 %v1661
  %v1950 = vunpack.c.l.b16 %v1662
  %v1951 = vunpack.c.l.b16 %v1663
  %v1952 = vunpack.c.l.b16 %v1664
  %v1953 = vunpack.c.l.b16 %v1665
  %v1954 = vunpack.c.l.b16 %v1666
  %v1955 = vunpack.c.l.b16 %v1667
  %v1956 = vunpack.c.l.b16 %v1668
  %v1957 = vunpack.c.l.b16 %v1669
  %v1958 = vunpack.c.l.b16 %v1670
  %v1959 = vunpack.c.l.b16 %v1671
  %v1960 = vunpack.c.l.b16 %v1672
  %v1961 = vunpack.c.l.b16 %v1673
  %v1962 = vunpack.c.l.b16 %v1674
  %v1963 = vunpack.c.l.b16 %v1675
  %v1964 = vunpack.c.l.b16 %v1676
  %v1965 = vunpack.c.l.b16 %v1677
  %v1966 = vunpack.c.l.b16 %v1678
  %v1967 = vunpack.c.l.b16 %v1679
  %v1968 = vunpack.c.l.b16 %v1680
  %v1969 = vunpack.c.l.b16 %v1681
  %v1970 = vunpack.c.l.b16 %v1682
  %v1971 = vunpack.c.l.b16 %v1683
  %v1972 = vunpack.c.l.b16 %v1684
  %v1973 = vunpack.c.l.b16 %v1685
  %v1974 = vunpack.c.l.b16 %v1686
  %v1975 = vunpack.c.l.b16 %v1687
  %v1976 = vunpack.c.l.b16 %v1688
  %v1977 = vunpack.c.l.b16 %v1689
  %v1978 = vunpack.c.l.b16 %v1690
  %v1979 = vunpack.c.l.b16 %v1691
  %v1980 = vunpack.c.l.b16 %v1692
  %v1981 = vunpack.c.l.b16 %v1693
  %v1982 = vunpack.c.l.b16 %v1694
  %v1983 = vunpack.c.l.b16 %v1695
  %v1984 = vunpack.c.l.b16 %v1696
  %v1985 = vunpack.c.l.b16 %v1697
  %v1986 = vunpack.c.l.b16 %v1698
  %v1987 = vunpack.c.l.b16 %v1699
  %v1988 = vunpack.c.l.b16 %v1700
  %v1989 = vunpack.c.l.b16 %v1701
  %v1990 = vunpack.c.l.b16 %v1702
  %v1991 = vunpack.c.l.b16 %v1703
  %v1992 = vunpack.c.l.b16 %v1704
  %v1993 = vunpack.c.l.b16 %v1705
  %v1994 = vunpack.c.l.b16 %v1706
  %v1995 = vunpack.c.l.b16 %v1707
  %v1996 = vunpack.c.l.b16 %v1708
  %v1997 = vunpack.c.l.b16 %v1709
  %v1998 = vunpack.c.l.b16 %v1710
  %v1999 = vunpack.c.l.b16 %v1711
  %v2000 = vunpack.c.l.b16 %v1712
  %v2001 = vunpack.c.l.b16 %v1713
  %v2002 = vunpack.c.l.b16 %v1714
  %v2003 = vunpack.c.l.b16 %v1715
  %v2004 = vunpack.c.l.b16 %v1716
  %v2005 = vunpack.c.l.b16 %v1717
  %v2006 = vunpack.c.l.b16 %v1718
  %v2007 = vunpack.c.l.b16 %v1719
  %v2008 = vunpack.c.l.b16 %v1720
  %v2009 = vunpack.c.l.b16 %v1721
  %v2010 = vunpack.c.l.b16 %v1722
  %v2011 = vunpack.c.l.b16 %v1723
  %v2012 = vpack.c.b16 %v1869, %v1868
  %v2013 = vpack.c.b16 %v1871, %v1870
  %v2014 = vpack.c.b16 %v1873, %v1872
  %v2015 = vpack.c.b16 %v1875, %v1874
  %v2016 = vpack.c.b16 %v1877, %v1876
  %v2017 = vpack.c.b16 %v1879, %v1878
  %v2018 = vpack.c.b16 %v1881, %v1880
  %v2019 = vpack.c.b16 %v1883, %v1882
  %v2020 = vpack.c.b16 %v1885, %v1884
  %v2021 = vpack.c.b16 %v1887, %v1886
  %v2022 = vpack.c.b16 %v1889, %v1888
  %v2023 = vpack.c.b16 %v1891, %v1890
  %v2024 = vpack.c.b16 %v1893, %v1892
  %v2025 = vpack.c.b16 %v1895, %v1894
  %v2026 = vpack.c.b16 %v1897, %v1896
  %v2027 = vpack.c.b16 %v1899, %v1898
  %v2028 = vpack.c.b16 %v1901, %v1900
  %v2029 = vpack.c.b16 %v1903, %v1902
  %v2030 = vpack.c.b16 %v1905, %v1904
  %v2031 = vpack.c.b16 %v1907, %v1906
  %v2032 = vpack.c.b16 %v1909, %v1908
  %v2033 = vpack.c.b16 %v1911, %v1910
  %v2034 = vpack.c.b16 %v1913, %v1912
  %v2035 = vpack.c.b16 %v1915, %v1914
  %v2036 = vpack.c.b16 %v1917, %v1916
  %v2037 = vpack.c.b16 %v1919, %v1918
  %v2038 = vpack.c.b16 %v1921, %v1920
  %v2039 = vpack.c.b16 %v1923, %v1922
  %v2040 = vpack.c.b16 %v1925, %v1924
  %v2041 = vpack.c.b16 %v1927, %v1926
  %v2042 = vpack.c.b16 %v1929, %v1928
  %v2043 = vpack.c.b16 %v1931, %v1930
  %v2044 = vpack.c.b16 %v1933, %v1932
  %v2045 = vpack.c.b16 %v1935, %v1934
  %v2046 = vpack.c.b16 %v1937, %v1936
  %v2047 = vpack.c.b16 %v1939, %v1938
  %v2048 = vpack.c.b16 %v1941, %v1940
  %v2049 = vpack.c.b16 %v1943, %v1942
  %v2050 = vpack.c.b16 %v1945, %v1944
  %v2051 = vpack.c.b16 %v1947, %v1946
  %v2052 = vpack.c.b16 %v1949, %v1948
  %v2053 = vpack.c.b16 %v1951, %v1950
  %v2054 = vpack.c.b16 %v1953, %v1952
  %v2055 = vpack.c.b16 %v1955, %v1954
  %v2056 = vpack.c.b16 %v1957, %v1956
  %v2057 = vpack.c.b16 %v1959, %v1958
  %v2058 = vpack.c.b16 %v1961, %v1960
  %v2059 = vpack.c.b16 %v1963, %v1962
  %v2060 = vpack.c.b16 %v1965, %v1964
  %v2061 = vpack.c.b16 %v1967, %v1966
  %v2062 = vpack.c.b16 %v1969, %v1968
  %v2063 = vpack.c.b16 %v1971, %v1970
  %v2064 = vpack.c.b16 %v1973, %v1972
  %v2065 = vpack.c.b16 %v1975, %v1974
  %v2066 = vpack.c.b16 %v1977, %v1976
  %v2067 = vpack.c.b16 %v1979, %v1978
  %v2068 = vpack.c.b16 %v1981, %v1980
  %v2069 = vpack.c.b16 %v1983, %v1982
  %v2070 = vpack.c.b16 %v1985, %v1984
  %v2071 = vpack.c.b16 %v1987, %v1986
  %v2072 = vpack.c.b16 %v1989, %v1988
  %v2073 = vpack.c.b16 %v1991, %v1990
  %v2074 = vpack.c.b16 %v1993, %v1992
  %v2075 = vpack.c.b16 %v1995, %v1994
  %v2076 = vpack.c.b16 %v1997, %v1996
  %v2077 = vpack.c.b16 %v1999, %v1998
  %v2078 = vpack.c.b16 %v2001, %v2000
  %v2079 = vpack.c.b16 %v2003, %v2002
  %v2080 = vpack.c.b16 %v2005, %v2004
  %v2081 = vpack.c.b16 %v2007, %v2006
  %v2082 = vpack.c.b16 %v2009, %v2008
  %v2083 = vpack.c.b16 %v2011, %v2010
  %2156 = vmatprep.subr.bf16.mxu0 0
  %2157 = vmatpush1.bf16.msra.mxu0 %v2012
  %2158 = vmatprep.subr.bf16.mxu0 0
  %2159 = vmatpush1.bf16.msra.mxu0 %v2013
  %2160 = vmatprep.subr.bf16.mxu0 0
  %2161 = vmatpush1.bf16.msra.mxu0 %v2014
  %2162 = vmatprep.subr.bf16.mxu0 0
  %2163 = vmatpush1.bf16.msra.mxu0 %v2015
  %2164 = vmatprep.subr.bf16.mxu0 0
  %2165 = vmatpush1.bf16.msra.mxu0 %v2016
  %2166 = vmatprep.subr.bf16.mxu0 0
  %2167 = vmatpush1.bf16.msra.mxu0 %v2017
  %2168 = vmatprep.subr.bf16.mxu0 0
  %2169 = vmatpush1.bf16.msra.mxu0 %v2018
  %2170 = vmatprep.subr.bf16.mxu0 0
  %2171 = vmatpush1.bf16.msra.mxu0 %v2019
  %2172 = vmatprep.subr.bf16.mxu0 0
  %2173 = vmatpush1.bf16.msra.mxu0 %v2020
  %2174 = vmatprep.subr.bf16.mxu0 0
  %2175 = vmatpush1.bf16.msra.mxu0 %v2021
  %2176 = vmatprep.subr.bf16.mxu0 0
  %2177 = vmatpush1.bf16.msra.mxu0 %v2022
  %2178 = vmatprep.subr.bf16.mxu0 0
  %2179 = vmatpush1.bf16.msra.mxu0 %v2023
  %2180 = vmatprep.subr.bf16.mxu0 0
  %2181 = vmatpush1.bf16.msra.mxu0 %v2024
  %2182 = vmatprep.subr.bf16.mxu0 0
  %2183 = vmatpush1.bf16.msra.mxu0 %v2025
  %2184 = vmatprep.subr.bf16.mxu0 0
  %2185 = vmatpush1.bf16.msra.mxu0 %v2026
  %2186 = vmatprep.subr.bf16.mxu0 0
  %2187 = vmatpush1.bf16.msra.mxu0 %v2027
  %2188 = vmatprep.mubr.bf16.mxu0 %v1293
  %2189 = vmatmul.mubr.bf16.gmra.mrb[0].mxu0 %v1292
  %v2190 = vpop.f32.mrb[0].mxu0
  %v2191 = vadd.f32 0.0, %v2190
  %v2192 = vpop.f32.mrb[0].mxu0
  %v2193 = vpop.f32.mrb[0].mxu0
  %v2194 = vadd.f32 0.0, %v2193
  %v2195 = vpop.f32.mrb[0].mxu0
  %2196 = vmatprep.mubr.bf16.mxu0 %v1302
  %2197 = vmatmul.mubr.bf16.gmra.mrb[0].mxu0 %v1301
  %v2198 = vpop.f32.mrb[0].mxu0
  %v2199 = vadd.f32 0.0, %v2198
  %v2200 = vpop.f32.mrb[0].mxu0
  %v2201 = vpop.f32.mrb[0].mxu0
  %v2202 = vadd.f32 0.0, %v2201
  %v2203 = vpop.f32.mrb[0].mxu0
  %2204 = vmatprep.mubr.bf16.mxu0 %v1311
  %2205 = vmatmul.mubr.bf16.gmra.mrb[0].mxu0 %v1310
  %v2206 = vpop.f32.mrb[0].mxu0
  %v2207 = vadd.f32 0.0, %v2206
  %v2208 = vpop.f32.mrb[0].mxu0
  %v2209 = vpop.f32.mrb[0].mxu0
  %v2210 = vadd.f32 0.0, %v2209
  %v2211 = vpop.f32.mrb[0].mxu0
  %2212 = vmatprep.mubr.bf16.mxu0 %v1320
  %2213 = vmatmul.mubr.bf16.gmra.mrb[0].mxu0 %v1319
  %v2214 = vpop.f32.mrb[0].mxu0
  %v2215 = vadd.f32 0.0, %v2214
  %v2216 = vpop.f32.mrb[0].mxu0
  %v2217 = vpop.f32.mrb[0].mxu0
  %v2218 = vadd.f32 0.0, %v2217
  %v2219 = vpop.f32.mrb[0].mxu0
  %2220 = vmatprep.mubr.bf16.mxu0 %v1329
  %2221 = vmatmul.mubr.bf16.gmra.mrb[0].mxu0 %v1328
  %v2222 = vpop.f32.mrb[0].mxu0
  %v2223 = vadd.f32 0.0, %v2222
  %v2224 = vpop.f32.mrb[0].mxu0
  %v2225 = vpop.f32.mrb[0].mxu0
  %v2226 = vadd.f32 0.0, %v2225
  %v2227 = vpop.f32.mrb[0].mxu0
  %2228 = vmatprep.mubr.bf16.mxu0 %v1338
  %2229 = vmatmul.mubr.bf16.gmra.mrb[0].mxu0 %v1337
  %v2230 = vpop.f32.mrb[0].mxu0
  %v2231 = vadd.f32 0.0, %v2230
  %v2232 = vpop.f32.mrb[0].mxu0
  %v2233 = vpop.f32.mrb[0].mxu0
  %v2234 = vadd.f32 0.0, %v2233
  %v2235 = vpop.f32.mrb[0].mxu0
  %2236 = vmatprep.mubr.bf16.mxu0 %v1347
  %2237 = vmatmul.mubr.bf16.gmra.mrb[0].mxu0 %v1346
  %v2238 = vpop.f32.mrb[0].mxu0
  %v2239 = vadd.f32 0.0, %v2238
  %v2240 = vpop.f32.mrb[0].mxu0
  %v2241 = vpop.f32.mrb[0].mxu0
  %v2242 = vadd.f32 0.0, %v2241
  %v2243 = vpop.f32.mrb[0].mxu0
  %2244 = vmatprep.mubr.bf16.mxu0 %v1356
  %2245 = vmatmul.mubr.bf16.gmra.mrb[0].mxu0 %v1355
  %v2246 = vpop.f32.mrb[0].mxu0
  %v2247 = vadd.f32 0.0, %v2246
  %v2248 = vpop.f32.mrb[0].mxu0
  %v2249 = vpop.f32.mrb[0].mxu0
  %v2250 = vadd.f32 0.0, %v2249
  %v2251 = vpop.f32.mrb[0].mxu0
  %2252 = vmatprep.mubr.bf16.mxu0 %v1365
  %2253 = vmatmul.mubr.bf16.gmra.mrb[0].mxu0 %v1364
  %v2254 = vpop.f32.mrb[0].mxu0
  %v2255 = vadd.f32 0.0, %v2254
  %v2256 = vpop.f32.mrb[0].mxu0
  %v2257 = vpop.f32.mrb[0].mxu0
  %v2258 = vadd.f32 0.0, %v2257
  %v2259 = vpop.f32.mrb[0].mxu0
  %2260 = vmatprep.mubr.bf16.mxu0 %v1374
  %2261 = vmatmul.mubr.bf16.gmra.mrb[0].mxu0 %v1373
  %v2262 = vpop.f32.mrb[0].mxu0
  %v2263 = vadd.f32 0.0, %v2262
  %v2264 = vpop.f32.mrb[0].mxu0
  %v2265 = vpop.f32.mrb[0].mxu0
  %v2266 = vadd.f32 0.0, %v2265
  %v2267 = vpop.f32.mrb[0].mxu0
  %2268 = vmatprep.mubr.bf16.mxu0 %v1383
  %2269 = vmatmul.mubr.bf16.gmra.mrb[0].mxu0 %v1382
  %v2270 = vpop.f32.mrb[0].mxu0
  %v2271 = vadd.f32 0.0, %v2270
  %v2272 = vpop.f32.mrb[0].mxu0
  %v2273 = vpop.f32.mrb[0].mxu0
  %v2274 = vadd.f32 0.0, %v2273
  %v2275 = vpop.f32.mrb[0].mxu0
  %2276 = vmatprep.mubr.bf16.mxu0 %v1392
  %2277 = vmatmul.mubr.bf16.gmra.mrb[0].mxu0 %v1391
  %v2278 = vpop.f32.mrb[0].mxu0
  %v2279 = vadd.f32 0.0, %v2278
  %v2280 = vpop.f32.mrb[0].mxu0
  %v2281 = vpop.f32.mrb[0].mxu0
  %v2282 = vadd.f32 0.0, %v2281
  %v2283 = vpop.f32.mrb[0].mxu0
  %2284 = vmatprep.mubr.bf16.mxu0 %v1401
  %2285 = vmatmul.mubr.bf16.gmra.mrb[0].mxu0 %v1400
  %v2286 = vpop.f32.mrb[0].mxu0
  %v2287 = vadd.f32 0.0, %v2286
  %v2288 = vpop.f32.mrb[0].mxu0
  %v2289 = vpop.f32.mrb[0].mxu0
  %v2290 = vadd.f32 0.0, %v2289
  %v2291 = vpop.f32.mrb[0].mxu0
  %2292 = vmatprep.mubr.bf16.mxu0 %v1410
  %2293 = vmatmul.mubr.bf16.gmra.mrb[0].mxu0 %v1409
  %v2294 = vpop.f32.mrb[0].mxu0
  %v2295 = vadd.f32 0.0, %v2294
  %v2296 = vpop.f32.mrb[0].mxu0
  %v2297 = vpop.f32.mrb[0].mxu0
  %v2298 = vadd.f32 0.0, %v2297
  %v2299 = vpop.f32.mrb[0].mxu0
  %2300 = vmatprep.mubr.bf16.mxu0 %v1419
  %2301 = vmatmul.mubr.bf16.gmra.mrb[0].mxu0 %v1418
  %v2302 = vpop.f32.mrb[0].mxu0
  %v2303 = vadd.f32 0.0, %v2302
  %v2304 = vpop.f32.mrb[0].mxu0
  %v2305 = vpop.f32.mrb[0].mxu0
  %v2306 = vadd.f32 0.0, %v2305
  %v2307 = vpop.f32.mrb[0].mxu0
  %2308 = vmatprep.mubr.bf16.mxu0 %v1428
  %2309 = vmatmul.mubr.bf16.gmra.mrb[0].mxu0 %v1427
  %v2310 = vpop.f32.mrb[0].mxu0
  %v2311 = vadd.f32 0.0, %v2310
  %v2312 = vpop.f32.mrb[0].mxu0
  %v2313 = vpop.f32.mrb[0].mxu0
  %v2314 = vadd.f32 0.0, %v2313
  %v2315 = vpop.f32.mrb[0].mxu0
  %2316 = vmatprep.mubr.bf16.mxu0 %v1437
  %2317 = vmatmul.mubr.bf16.gmra.mrb[0].mxu0 %v1436
  %v2318 = vpop.f32.mrb[0].mxu0
  %v2319 = vadd.f32 0.0, %v2318
  %v2320 = vpop.f32.mrb[0].mxu0
  %v2321 = vpop.f32.mrb[0].mxu0
  %v2322 = vadd.f32 0.0, %v2321
  %v2323 = vpop.f32.mrb[0].mxu0
  %2324 = vmatprep.mubr.bf16.mxu0 %v1446
  %2325 = vmatmul.mubr.bf16.gmra.mrb[0].mxu0 %v1445
  %v2326 = vpop.f32.mrb[0].mxu0
  %v2327 = vadd.f32 0.0, %v2326
  %v2328 = vpop.f32.mrb[0].mxu0
  %v2329 = vpop.f32.mrb[0].mxu0
  %v2330 = vadd.f32 0.0, %v2329
  %v2331 = vpop.f32.mrb[0].mxu0
  %2332 = vmatprep.mubr.bf16.mxu0 %v1455
  %2333 = vmatmul.mubr.bf16.gmra.mrb[0].mxu0 %v1454
  %v2334 = vpop.f32.mrb[0].mxu0
  %v2335 = vadd.f32 0.0, %v2334
  %v2336 = vpop.f32.mrb[0].mxu0
  %v2337 = vpop.f32.mrb[0].mxu0
  %v2338 = vadd.f32 0.0, %v2337
  %v2339 = vpop.f32.mrb[0].mxu0
  %2340 = vmatprep.mubr.bf16.mxu0 %v1464
  %2341 = vmatmul.mubr.bf16.gmra.mrb[0].mxu0 %v1463
  %v2342 = vpop.f32.mrb[0].mxu0
  %v2343 = vadd.f32 0.0, %v2342
  %v2344 = vpop.f32.mrb[0].mxu0
  %v2345 = vpop.f32.mrb[0].mxu0
  %v2346 = vadd.f32 0.0, %v2345
  %v2347 = vpop.f32.mrb[0].mxu0
  %2348 = vmatprep.mubr.bf16.mxu0 %v1473
  %2349 = vmatmul.mubr.bf16.gmra.mrb[0].mxu0 %v1472
  %v2350 = vpop.f32.mrb[0].mxu0
  %v2351 = vadd.f32 0.0, %v2350
  %v2352 = vpop.f32.mrb[0].mxu0
  %v2353 = vpop.f32.mrb[0].mxu0
  %v2354 = vadd.f32 0.0, %v2353
  %v2355 = vpop.f32.mrb[0].mxu0
  %2356 = vmatprep.mubr.bf16.mxu0 %v1482
  %2357 = vmatmul.mubr.bf16.gmra.mrb[0].mxu0 %v1481
  %v2358 = vpop.f32.mrb[0].mxu0
  %v2359 = vadd.f32 0.0, %v2358
  %v2360 = vpop.f32.mrb[0].mxu0
  %v2361 = vpop.f32.mrb[0].mxu0
  %v2362 = vadd.f32 0.0, %v2361
  %v2363 = vpop.f32.mrb[0].mxu0
  %2364 = vmatprep.mubr.bf16.mxu0 %v1491
  %2365 = vmatmul.mubr.bf16.gmra.mrb[0].mxu0 %v1490
  %v2366 = vpop.f32.mrb[0].mxu0
  %v2367 = vadd.f32 0.0, %v2366
  %v2368 = vpop.f32.mrb[0].mxu0
  %v2369 = vpop.f32.mrb[0].mxu0
  %v2370 = vadd.f32 0.0, %v2369
  %v2371 = vpop.f32.mrb[0].mxu0
  %2372 = vmatprep.mubr.bf16.mxu0 %v1500
  %2373 = vmatmul.mubr.bf16.gmra.mrb[0].mxu0 %v1499
  %v2374 = vpop.f32.mrb[0].mxu0
  %v2375 = vadd.f32 0.0, %v2374
  %v2376 = vpop.f32.mrb[0].mxu0
  %v2377 = vpop.f32.mrb[0].mxu0
  %v2378 = vadd.f32 0.0, %v2377
  %v2379 = vpop.f32.mrb[0].mxu0
  %2380 = vmatprep.mubr.bf16.mxu0 %v1509
  %2381 = vmatmul.mubr.bf16.gmra.mrb[0].mxu0 %v1508
  %v2382 = vpop.f32.mrb[0].mxu0
  %v2383 = vadd.f32 0.0, %v2382
  %v2384 = vpop.f32.mrb[0].mxu0
  %v2385 = vpop.f32.mrb[0].mxu0
  %v2386 = vadd.f32 0.0, %v2385
  %v2387 = vpop.f32.mrb[0].mxu0
  %2388 = vmatprep.mubr.bf16.mxu0 %v1518
  %2389 = vmatmul.mubr.bf16.gmra.mrb[0].mxu0 %v1517
  %v2390 = vpop.f32.mrb[0].mxu0
  %v2391 = vadd.f32 0.0, %v2390
  %v2392 = vpop.f32.mrb[0].mxu0
  %v2393 = vpop.f32.mrb[0].mxu0
  %v2394 = vadd.f32 0.0, %v2393
  %v2395 = vpop.f32.mrb[0].mxu0
  %2396 = vmatprep.mubr.bf16.mxu0 %v1527
  %2397 = vmatmul.mubr.bf16.gmra.mrb[0].mxu0 %v1526
  %v2398 = vpop.f32.mrb[0].mxu0
  %v2399 = vadd.f32 0.0, %v2398
  %v2400 = vpop.f32.mrb[0].mxu0
  %v2401 = vpop.f32.mrb[0].mxu0
  %v2402 = vadd.f32 0.0, %v2401
  %v2403 = vpop.f32.mrb[0].mxu0
  %2404 = vmatprep.mubr.bf16.mxu0 %v1536
  %2405 = vmatmul.mubr.bf16.gmra.mrb[0].mxu0 %v1535
  %v2406 = vpop.f32.mrb[0].mxu0
  %v2407 = vadd.f32 0.0, %v2406
  %v2408 = vpop.f32.mrb[0].mxu0
  %v2409 = vpop.f32.mrb[0].mxu0
  %v2410 = vadd.f32 0.0, %v2409
  %v2411 = vpop.f32.mrb[0].mxu0
  %2412 = vmatprep.mubr.bf16.mxu0 %v1545
  %2413 = vmatmul.mubr.bf16.gmra.mrb[0].mxu0 %v1544
  %v2414 = vpop.f32.mrb[0].mxu0
  %v2415 = vadd.f32 0.0, %v2414
  %v2416 = vpop.f32.mrb[0].mxu0
  %v2417 = vpop.f32.mrb[0].mxu0
  %v2418 = vadd.f32 0.0, %v2417
  %v2419 = vpop.f32.mrb[0].mxu0
  %2420 = vmatprep.mubr.bf16.mxu0 %v1554
  %2421 = vmatmul.mubr.bf16.gmra.mrb[0].mxu0 %v1553
  %v2422 = vpop.f32.mrb[0].mxu0
  %v2423 = vadd.f32 0.0, %v2422
  %v2424 = vpop.f32.mrb[0].mxu0
  %v2425 = vpop.f32.mrb[0].mxu0
  %v2426 = vadd.f32 0.0, %v2425
  %v2427 = vpop.f32.mrb[0].mxu0
  %2428 = vmatprep.mubr.bf16.mxu0 %v1563
  %2429 = vmatmul.mubr.bf16.gmra.mrb[0].mxu0 %v1562
  %v2430 = vpop.f32.mrb[0].mxu0
  %v2431 = vadd.f32 0.0, %v2430
  %v2432 = vpop.f32.mrb[0].mxu0
  %v2433 = vpop.f32.mrb[0].mxu0
  %v2434 = vadd.f32 0.0, %v2433
  %v2435 = vpop.f32.mrb[0].mxu0
  %2436 = vmatprep.mubr.bf16.mxu0 %v1572
  %2437 = vmatmul.mubr.bf16.gmra.mrb[0].mxu0 %v1571
  %v2438 = vpop.f32.mrb[0].mxu0
  %v2439 = vadd.f32 0.0, %v2438
  %v2440 = vpop.f32.mrb[0].mxu0
  %v2441 = vpop.f32.mrb[0].mxu0
  %v2442 = vadd.f32 0.0, %v2441
  %v2443 = vpop.f32.mrb[0].mxu0
  %2444 = vdwg.mxu0
  %2445 = vmatprep.subr.bf16.mxu0 0
  %2446 = vmatpush1.bf16.msra.mxu0 %v2028
  %2447 = vmatprep.subr.bf16.mxu0 0
  %2448 = vmatpush1.bf16.msra.mxu0 %v2029
  %2449 = vmatprep.subr.bf16.mxu0 0
  %2450 = vmatpush1.bf16.msra.mxu0 %v2030
  %2451 = vmatprep.subr.bf16.mxu0 0
  %2452 = vmatpush1.bf16.msra.mxu0 %v2031
  %2453 = vmatprep.subr.bf16.mxu0 0
  %2454 = vmatpush1.bf16.msra.mxu0 %v2032
  %2455 = vmatprep.subr.bf16.mxu0 0
  %2456 = vmatpush1.bf16.msra.mxu0 %v2033
  %2457 = vmatprep.subr.bf16.mxu0 0
  %2458 = vmatpush1.bf16.msra.mxu0 %v2034
  %2459 = vmatprep.subr.bf16.mxu0 0
  %2460 = vmatpush1.bf16.msra.mxu0 %v2035
  %2461 = vmatprep.subr.bf16.mxu0 0
  %2462 = vmatpush1.bf16.msra.mxu0 %v2036
  %2463 = vmatprep.subr.bf16.mxu0 0
  %2464 = vmatpush1.bf16.msra.mxu0 %v2037
  %2465 = vmatprep.subr.bf16.mxu0 0
  %2466 = vmatpush1.bf16.msra.mxu0 %v2038
  %2467 = vmatprep.subr.bf16.mxu0 0
  %2468 = vmatpush1.bf16.msra.mxu0 %v2039
  %2469 = vmatprep.subr.bf16.mxu0 0
  %2470 = vmatpush1.bf16.msra.mxu0 %v2040
  %2471 = vmatprep.subr.bf16.mxu0 0
  %2472 = vmatpush1.bf16.msra.mxu0 %v2041
  %2473 = vmatprep.subr.bf16.mxu0 0
  %2474 = vmatpush1.bf16.msra.mxu0 %v2042
  %2475 = vmatprep.subr.bf16.mxu0 0
  %2476 = vmatpush1.bf16.msra.mxu0 %v2043
  %2477 = vmatprep.mubr.bf16.mxu0 %v1295
  %2478 = vmatmul.mubr.bf16.gmra.mrb[0].mxu0 %v1294
  %v2479 = vpop.f32.mrb[0].mxu0
  %v2480 = vadd.f32 %v2191, %v2479
  %v2481 = vpop.f32.mrb[0].mxu0
  %v2482 = vpop.f32.mrb[0].mxu0
  %v2483 = vadd.f32 %v2194, %v2482
  %v2484 = vpop.f32.mrb[0].mxu0
  %2485 = vmatprep.mubr.bf16.mxu0 %v1304
  %2486 = vmatmul.mubr.bf16.gmra.mrb[0].mxu0 %v1303
  %v2487 = vpop.f32.mrb[0].mxu0
  %v2488 = vadd.f32 %v2199, %v2487
  %v2489 = vpop.f32.mrb[0].mxu0
  %v2490 = vpop.f32.mrb[0].mxu0
  %v2491 = vadd.f32 %v2202, %v2490
  %v2492 = vpop.f32.mrb[0].mxu0
  %2493 = vmatprep.mubr.bf16.mxu0 %v1313
  %2494 = vmatmul.mubr.bf16.gmra.mrb[0].mxu0 %v1312
  %v2495 = vpop.f32.mrb[0].mxu0
  %v2496 = vadd.f32 %v2207, %v2495
  %v2497 = vpop.f32.mrb[0].mxu0
  %v2498 = vpop.f32.mrb[0].mxu0
  %v2499 = vadd.f32 %v2210, %v2498
  %v2500 = vpop.f32.mrb[0].mxu0
  %2501 = vmatprep.mubr.bf16.mxu0 %v1322
  %2502 = vmatmul.mubr.bf16.gmra.mrb[0].mxu0 %v1321
  %v2503 = vpop.f32.mrb[0].mxu0
  %v2504 = vadd.f32 %v2215, %v2503
  %v2505 = vpop.f32.mrb[0].mxu0
  %v2506 = vpop.f32.mrb[0].mxu0
  %v2507 = vadd.f32 %v2218, %v2506
  %v2508 = vpop.f32.mrb[0].mxu0
  %2509 = vmatprep.mubr.bf16.mxu0 %v1331
  %2510 = vmatmul.mubr.bf16.gmra.mrb[0].mxu0 %v1330
  %v2511 = vpop.f32.mrb[0].mxu0
  %v2512 = vadd.f32 %v2223, %v2511
  %v2513 = vpop.f32.mrb[0].mxu0
  %v2514 = vpop.f32.mrb[0].mxu0
  %v2515 = vadd.f32 %v2226, %v2514
  %v2516 = vpop.f32.mrb[0].mxu0
  %2517 = vmatprep.mubr.bf16.mxu0 %v1340
  %2518 = vmatmul.mubr.bf16.gmra.mrb[0].mxu0 %v1339
  %v2519 = vpop.f32.mrb[0].mxu0
  %v2520 = vadd.f32 %v2231, %v2519
  %v2521 = vpop.f32.mrb[0].mxu0
  %v2522 = vpop.f32.mrb[0].mxu0
  %v2523 = vadd.f32 %v2234, %v2522
  %v2524 = vpop.f32.mrb[0].mxu0
  %2525 = vmatprep.mubr.bf16.mxu0 %v1349
  %2526 = vmatmul.mubr.bf16.gmra.mrb[0].mxu0 %v1348
  %v2527 = vpop.f32.mrb[0].mxu0
  %v2528 = vadd.f32 %v2239, %v2527
  %v2529 = vpop.f32.mrb[0].mxu0
  %v2530 = vpop.f32.mrb[0].mxu0
  %v2531 = vadd.f32 %v2242, %v2530
  %v2532 = vpop.f32.mrb[0].mxu0
  %2533 = vmatprep.mubr.bf16.mxu0 %v1358
  %2534 = vmatmul.mubr.bf16.gmra.mrb[0].mxu0 %v1357
  %v2535 = vpop.f32.mrb[0].mxu0
  %v2536 = vadd.f32 %v2247, %v2535
  %v2537 = vpop.f32.mrb[0].mxu0
  %v2538 = vpop.f32.mrb[0].mxu0
  %v2539 = vadd.f32 %v2250, %v2538
  %v2540 = vpop.f32.mrb[0].mxu0
  %2541 = vmatprep.mubr.bf16.mxu0 %v1367
  %2542 = vmatmul.mubr.bf16.gmra.mrb[0].mxu0 %v1366
  %v2543 = vpop.f32.mrb[0].mxu0
  %v2544 = vadd.f32 %v2255, %v2543
  %v2545 = vpop.f32.mrb[0].mxu0
  %v2546 = vpop.f32.mrb[0].mxu0
  %v2547 = vadd.f32 %v2258, %v2546
  %v2548 = vpop.f32.mrb[0].mxu0
  %2549 = vmatprep.mubr.bf16.mxu0 %v1376
  %2550 = vmatmul.mubr.bf16.gmra.mrb[0].mxu0 %v1375
  %v2551 = vpop.f32.mrb[0].mxu0
  %v2552 = vadd.f32 %v2263, %v2551
  %v2553 = vpop.f32.mrb[0].mxu0
  %v2554 = vpop.f32.mrb[0].mxu0
  %v2555 = vadd.f32 %v2266, %v2554
  %v2556 = vpop.f32.mrb[0].mxu0
  %2557 = vmatprep.mubr.bf16.mxu0 %v1385
  %2558 = vmatmul.mubr.bf16.gmra.mrb[0].mxu0 %v1384
  %v2559 = vpop.f32.mrb[0].mxu0
  %v2560 = vadd.f32 %v2271, %v2559
  %v2561 = vpop.f32.mrb[0].mxu0
  %v2562 = vpop.f32.mrb[0].mxu0
  %v2563 = vadd.f32 %v2274, %v2562
  %v2564 = vpop.f32.mrb[0].mxu0
  %2565 = vmatprep.mubr.bf16.mxu0 %v1394
  %2566 = vmatmul.mubr.bf16.gmra.mrb[0].mxu0 %v1393
  %v2567 = vpop.f32.mrb[0].mxu0
  %v2568 = vadd.f32 %v2279, %v2567
  %v2569 = vpop.f32.mrb[0].mxu0
  %v2570 = vpop.f32.mrb[0].mxu0
  %v2571 = vadd.f32 %v2282, %v2570
  %v2572 = vpop.f32.mrb[0].mxu0
  %2573 = vmatprep.mubr.bf16.mxu0 %v1403
  %2574 = vmatmul.mubr.bf16.gmra.mrb[0].mxu0 %v1402
  %v2575 = vpop.f32.mrb[0].mxu0
  %v2576 = vadd.f32 %v2287, %v2575
  %v2577 = vpop.f32.mrb[0].mxu0
  %v2578 = vpop.f32.mrb[0].mxu0
  %v2579 = vadd.f32 %v2290, %v2578
  %v2580 = vpop.f32.mrb[0].mxu0
  %2581 = vmatprep.mubr.bf16.mxu0 %v1412
  %2582 = vmatmul.mubr.bf16.gmra.mrb[0].mxu0 %v1411
  %v2583 = vpop.f32.mrb[0].mxu0
  %v2584 = vadd.f32 %v2295, %v2583
  %v2585 = vpop.f32.mrb[0].mxu0
  %v2586 = vpop.f32.mrb[0].mxu0
  %v2587 = vadd.f32 %v2298, %v2586
  %v2588 = vpop.f32.mrb[0].mxu0
  %2589 = vmatprep.mubr.bf16.mxu0 %v1421
  %2590 = vmatmul.mubr.bf16.gmra.mrb[0].mxu0 %v1420
  %v2591 = vpop.f32.mrb[0].mxu0
  %v2592 = vadd.f32 %v2303, %v2591
  %v2593 = vpop.f32.mrb[0].mxu0
  %v2594 = vpop.f32.mrb[0].mxu0
  %v2595 = vadd.f32 %v2306, %v2594
  %v2596 = vpop.f32.mrb[0].mxu0
  %2597 = vmatprep.mubr.bf16.mxu0 %v1430
  %2598 = vmatmul.mubr.bf16.gmra.mrb[0].mxu0 %v1429
  %v2599 = vpop.f32.mrb[0].mxu0
  %v2600 = vadd.f32 %v2311, %v2599
  %v2601 = vpop.f32.mrb[0].mxu0
  %v2602 = vpop.f32.mrb[0].mxu0
  %v2603 = vadd.f32 %v2314, %v2602
  %v2604 = vpop.f32.mrb[0].mxu0
  %2605 = vmatprep.mubr.bf16.mxu0 %v1439
  %2606 = vmatmul.mubr.bf16.gmra.mrb[0].mxu0 %v1438
  %v2607 = vpop.f32.mrb[0].mxu0
  %v2608 = vadd.f32 %v2319, %v2607
  %v2609 = vpop.f32.mrb[0].mxu0
  %v2610 = vpop.f32.mrb[0].mxu0
  %v2611 = vadd.f32 %v2322, %v2610
  %v2612 = vpop.f32.mrb[0].mxu0
  %2613 = vmatprep.mubr.bf16.mxu0 %v1448
  %2614 = vmatmul.mubr.bf16.gmra.mrb[0].mxu0 %v1447
  %v2615 = vpop.f32.mrb[0].mxu0
  %v2616 = vadd.f32 %v2327, %v2615
  %v2617 = vpop.f32.mrb[0].mxu0
  %v2618 = vpop.f32.mrb[0].mxu0
  %v2619 = vadd.f32 %v2330, %v2618
  %v2620 = vpop.f32.mrb[0].mxu0
  %2621 = vmatprep.mubr.bf16.mxu0 %v1457
  %2622 = vmatmul.mubr.bf16.gmra.mrb[0].mxu0 %v1456
  %v2623 = vpop.f32.mrb[0].mxu0
  %v2624 = vadd.f32 %v2335, %v2623
  %v2625 = vpop.f32.mrb[0].mxu0
  %v2626 = vpop.f32.mrb[0].mxu0
  %v2627 = vadd.f32 %v2338, %v2626
  %v2628 = vpop.f32.mrb[0].mxu0
  %2629 = vmatprep.mubr.bf16.mxu0 %v1466
  %2630 = vmatmul.mubr.bf16.gmra.mrb[0].mxu0 %v1465
  %v2631 = vpop.f32.mrb[0].mxu0
  %v2632 = vadd.f32 %v2343, %v2631
  %v2633 = vpop.f32.mrb[0].mxu0
  %v2634 = vpop.f32.mrb[0].mxu0
  %v2635 = vadd.f32 %v2346, %v2634
  %v2636 = vpop.f32.mrb[0].mxu0
  %2637 = vmatprep.mubr.bf16.mxu0 %v1475
  %2638 = vmatmul.mubr.bf16.gmra.mrb[0].mxu0 %v1474
  %v2639 = vpop.f32.mrb[0].mxu0
  %v2640 = vadd.f32 %v2351, %v2639
  %v2641 = vpop.f32.mrb[0].mxu0
  %v2642 = vpop.f32.mrb[0].mxu0
  %v2643 = vadd.f32 %v2354, %v2642
  %v2644 = vpop.f32.mrb[0].mxu0
  %2645 = vmatprep.mubr.bf16.mxu0 %v1484
  %2646 = vmatmul.mubr.bf16.gmra.mrb[0].mxu0 %v1483
  %v2647 = vpop.f32.mrb[0].mxu0
  %v2648 = vadd.f32 %v2359, %v2647
  %v2649 = vpop.f32.mrb[0].mxu0
  %v2650 = vpop.f32.mrb[0].mxu0
  %v2651 = vadd.f32 %v2362, %v2650
  %v2652 = vpop.f32.mrb[0].mxu0
  %2653 = vmatprep.mubr.bf16.mxu0 %v1493
  %2654 = vmatmul.mubr.bf16.gmra.mrb[0].mxu0 %v1492
  %v2655 = vpop.f32.mrb[0].mxu0
  %v2656 = vadd.f32 %v2367, %v2655
  %v2657 = vpop.f32.mrb[0].mxu0
  %v2658 = vpop.f32.mrb[0].mxu0
  %v2659 = vadd.f32 %v2370, %v2658
  %v2660 = vpop.f32.mrb[0].mxu0
  %2661 = vmatprep.mubr.bf16.mxu0 %v1502
  %2662 = vmatmul.mubr.bf16.gmra.mrb[0].mxu0 %v1501
  %v2663 = vpop.f32.mrb[0].mxu0
  %v2664 = vadd.f32 %v2375, %v2663
  %v2665 = vpop.f32.mrb[0].mxu0
  %v2666 = vpop.f32.mrb[0].mxu0
  %v2667 = vadd.f32 %v2378, %v2666
  %v2668 = vpop.f32.mrb[0].mxu0
  %2669 = vmatprep.mubr.bf16.mxu0 %v1511
  %2670 = vmatmul.mubr.bf16.gmra.mrb[0].mxu0 %v1510
  %v2671 = vpop.f32.mrb[0].mxu0
  %v2672 = vadd.f32 %v2383, %v2671
  %v2673 = vpop.f32.mrb[0].mxu0
  %v2674 = vpop.f32.mrb[0].mxu0
  %v2675 = vadd.f32 %v2386, %v2674
  %v2676 = vpop.f32.mrb[0].mxu0
  %2677 = vmatprep.mubr.bf16.mxu0 %v1520
  %2678 = vmatmul.mubr.bf16.gmra.mrb[0].mxu0 %v1519
  %v2679 = vpop.f32.mrb[0].mxu0
  %v2680 = vadd.f32 %v2391, %v2679
  %v2681 = vpop.f32.mrb[0].mxu0
  %v2682 = vpop.f32.mrb[0].mxu0
  %v2683 = vadd.f32 %v2394, %v2682
  %v2684 = vpop.f32.mrb[0].mxu0
  %2685 = vmatprep.mubr.bf16.mxu0 %v1529
  %2686 = vmatmul.mubr.bf16.gmra.mrb[0].mxu0 %v1528
  %v2687 = vpop.f32.mrb[0].mxu0
  %v2688 = vadd.f32 %v2399, %v2687
  %v2689 = vpop.f32.mrb[0].mxu0
  %v2690 = vpop.f32.mrb[0].mxu0
  %v2691 = vadd.f32 %v2402, %v2690
  %v2692 = vpop.f32.mrb[0].mxu0
  %2693 = vmatprep.mubr.bf16.mxu0 %v1538
  %2694 = vmatmul.mubr.bf16.gmra.mrb[0].mxu0 %v1537
  %v2695 = vpop.f32.mrb[0].mxu0
  %v2696 = vadd.f32 %v2407, %v2695
  %v2697 = vpop.f32.mrb[0].mxu0
  %v2698 = vpop.f32.mrb[0].mxu0
  %v2699 = vadd.f32 %v2410, %v2698
  %v2700 = vpop.f32.mrb[0].mxu0
  %2701 = vmatprep.mubr.bf16.mxu0 %v1547
  %2702 = vmatmul.mubr.bf16.gmra.mrb[0].mxu0 %v1546
  %v2703 = vpop.f32.mrb[0].mxu0
  %v2704 = vadd.f32 %v2415, %v2703
  %v2705 = vpop.f32.mrb[0].mxu0
  %v2706 = vpop.f32.mrb[0].mxu0
  %v2707 = vadd.f32 %v2418, %v2706
  %v2708 = vpop.f32.mrb[0].mxu0
  %2709 = vmatprep.mubr.bf16.mxu0 %v1556
  %2710 = vmatmul.mubr.bf16.gmra.mrb[0].mxu0 %v1555
  %v2711 = vpop.f32.mrb[0].mxu0
  %v2712 = vadd.f32 %v2423, %v2711
  %v2713 = vpop.f32.mrb[0].mxu0
  %v2714 = vpop.f32.mrb[0].mxu0
  %v2715 = vadd.f32 %v2426, %v2714
  %v2716 = vpop.f32.mrb[0].mxu0
  %2717 = vmatprep.mubr.bf16.mxu0 %v1565
  %2718 = vmatmul.mubr.bf16.gmra.mrb[0].mxu0 %v1564
  %v2719 = vpop.f32.mrb[0].mxu0
  %v2720 = vadd.f32 %v2431, %v2719
  %v2721 = vpop.f32.mrb[0].mxu0
  %v2722 = vpop.f32.mrb[0].mxu0
  %v2723 = vadd.f32 %v2434, %v2722
  %v2724 = vpop.f32.mrb[0].mxu0
  %2725 = vmatprep.mubr.bf16.mxu0 %v1574
  %2726 = vmatmul.mubr.bf16.gmra.mrb[0].mxu0 %v1573
  %v2727 = vpop.f32.mrb[0].mxu0
  %v2728 = vadd.f32 %v2439, %v2727
  %v2729 = vpop.f32.mrb[0].mxu0
  %v2730 = vpop.f32.mrb[0].mxu0
  %v2731 = vadd.f32 %v2442, %v2730
  %v2732 = vpop.f32.mrb[0].mxu0
  %2733 = vdwg.mxu0
  %2734 = vmatprep.subr.bf16.mxu0 0
  %2735 = vmatpush1.bf16.msra.mxu0 %v2044
  %2736 = vmatprep.subr.bf16.mxu0 0
  %2737 = vmatpush1.bf16.msra.mxu0 %v2045
  %2738 = vmatprep.subr.bf16.mxu0 0
  %2739 = vmatpush1.bf16.msra.mxu0 %v2046
  %2740 = vmatprep.subr.bf16.mxu0 0
  %2741 = vmatpush1.bf16.msra.mxu0 %v2047
  %2742 = vmatprep.subr.bf16.mxu0 0
  %2743 = vmatpush1.bf16.msra.mxu0 %v2048
  %2744 = vmatprep.subr.bf16.mxu0 0
  %2745 = vmatpush1.bf16.msra.mxu0 %v2049
  %2746 = vmatprep.subr.bf16.mxu0 0
  %2747 = vmatpush1.bf16.msra.mxu0 %v2050
  %2748 = vmatprep.subr.bf16.mxu0 0
  %2749 = vmatpush1.bf16.msra.mxu0 %v2051
  %2750 = vmatprep.subr.bf16.mxu0 0
  %2751 = vmatpush1.bf16.msra.mxu0 %v2052
  %2752 = vmatprep.subr.bf16.mxu0 0
  %2753 = vmatpush1.bf16.msra.mxu0 %v2053
  %2754 = vmatprep.subr.bf16.mxu0 0
  %2755 = vmatpush1.bf16.msra.mxu0 %v2054
  %2756 = vmatprep.subr.bf16.mxu0 0
  %2757 = vmatpush1.bf16.msra.mxu0 %v2055
  %2758 = vmatprep.subr.bf16.mxu0 0
  %2759 = vmatpush1.bf16.msra.mxu0 %v2056
  %2760 = vmatprep.subr.bf16.mxu0 0
  %2761 = vmatpush1.bf16.msra.mxu0 %v2057
  %2762 = vmatprep.subr.bf16.mxu0 0
  %2763 = vmatpush1.bf16.msra.mxu0 %v2058
  %2764 = vmatprep.subr.bf16.mxu0 0
  %2765 = vmatpush1.bf16.msra.mxu0 %v2059
  %2766 = vmatprep.mubr.bf16.mxu0 %v1297
  %2767 = vmatmul.mubr.bf16.gmra.mrb[0].mxu0 %v1296
  %v2768 = vpop.f32.mrb[0].mxu0
  %v2769 = vadd.f32 %v2480, %v2768
  %v2770 = vpop.f32.mrb[0].mxu0
  %v2771 = vpop.f32.mrb[0].mxu0
  %v2772 = vadd.f32 %v2483, %v2771
  %v2773 = vpop.f32.mrb[0].mxu0
  %2774 = vmatprep.mubr.bf16.mxu0 %v1306
  %2775 = vmatmul.mubr.bf16.gmra.mrb[0].mxu0 %v1305
  %v2776 = vpop.f32.mrb[0].mxu0
  %v2777 = vadd.f32 %v2488, %v2776
  %v2778 = vpop.f32.mrb[0].mxu0
  %v2779 = vpop.f32.mrb[0].mxu0
  %v2780 = vadd.f32 %v2491, %v2779
  %v2781 = vpop.f32.mrb[0].mxu0
  %2782 = vmatprep.mubr.bf16.mxu0 %v1315
  %2783 = vmatmul.mubr.bf16.gmra.mrb[0].mxu0 %v1314
  %v2784 = vpop.f32.mrb[0].mxu0
  %v2785 = vadd.f32 %v2496, %v2784
  %v2786 = vpop.f32.mrb[0].mxu0
  %v2787 = vpop.f32.mrb[0].mxu0
  %v2788 = vadd.f32 %v2499, %v2787
  %v2789 = vpop.f32.mrb[0].mxu0
  %2790 = vmatprep.mubr.bf16.mxu0 %v1324
  %2791 = vmatmul.mubr.bf16.gmra.mrb[0].mxu0 %v1323
  %v2792 = vpop.f32.mrb[0].mxu0
  %v2793 = vadd.f32 %v2504, %v2792
  %v2794 = vpop.f32.mrb[0].mxu0
  %v2795 = vpop.f32.mrb[0].mxu0
  %v2796 = vadd.f32 %v2507, %v2795
  %v2797 = vpop.f32.mrb[0].mxu0
  %2798 = vmatprep.mubr.bf16.mxu0 %v1333
  %2799 = vmatmul.mubr.bf16.gmra.mrb[0].mxu0 %v1332
  %v2800 = vpop.f32.mrb[0].mxu0
  %v2801 = vadd.f32 %v2512, %v2800
  %v2802 = vpop.f32.mrb[0].mxu0
  %v2803 = vpop.f32.mrb[0].mxu0
  %v2804 = vadd.f32 %v2515, %v2803
  %v2805 = vpop.f32.mrb[0].mxu0
  %2806 = vmatprep.mubr.bf16.mxu0 %v1342
  %2807 = vmatmul.mubr.bf16.gmra.mrb[0].mxu0 %v1341
  %v2808 = vpop.f32.mrb[0].mxu0
  %v2809 = vadd.f32 %v2520, %v2808
  %v2810 = vpop.f32.mrb[0].mxu0
  %v2811 = vpop.f32.mrb[0].mxu0
  %v2812 = vadd.f32 %v2523, %v2811
  %v2813 = vpop.f32.mrb[0].mxu0
  %2814 = vmatprep.mubr.bf16.mxu0 %v1351
  %2815 = vmatmul.mubr.bf16.gmra.mrb[0].mxu0 %v1350
  %v2816 = vpop.f32.mrb[0].mxu0
  %v2817 = vadd.f32 %v2528, %v2816
  %v2818 = vpop.f32.mrb[0].mxu0
  %v2819 = vpop.f32.mrb[0].mxu0
  %v2820 = vadd.f32 %v2531, %v2819
  %v2821 = vpop.f32.mrb[0].mxu0
  %2822 = vmatprep.mubr.bf16.mxu0 %v1360
  %2823 = vmatmul.mubr.bf16.gmra.mrb[0].mxu0 %v1359
  %v2824 = vpop.f32.mrb[0].mxu0
  %v2825 = vadd.f32 %v2536, %v2824
  %v2826 = vpop.f32.mrb[0].mxu0
  %v2827 = vpop.f32.mrb[0].mxu0
  %v2828 = vadd.f32 %v2539, %v2827
  %v2829 = vpop.f32.mrb[0].mxu0
  %2830 = vmatprep.mubr.bf16.mxu0 %v1369
  %2831 = vmatmul.mubr.bf16.gmra.mrb[0].mxu0 %v1368
  %v2832 = vpop.f32.mrb[0].mxu0
  %v2833 = vadd.f32 %v2544, %v2832
  %v2834 = vpop.f32.mrb[0].mxu0
  %v2835 = vpop.f32.mrb[0].mxu0
  %v2836 = vadd.f32 %v2547, %v2835
  %v2837 = vpop.f32.mrb[0].mxu0
  %2838 = vmatprep.mubr.bf16.mxu0 %v1378
  %2839 = vmatmul.mubr.bf16.gmra.mrb[0].mxu0 %v1377
  %v2840 = vpop.f32.mrb[0].mxu0
  %v2841 = vadd.f32 %v2552, %v2840
  %v2842 = vpop.f32.mrb[0].mxu0
  %v2843 = vpop.f32.mrb[0].mxu0
  %v2844 = vadd.f32 %v2555, %v2843
  %v2845 = vpop.f32.mrb[0].mxu0
  %2846 = vmatprep.mubr.bf16.mxu0 %v1387
  %2847 = vmatmul.mubr.bf16.gmra.mrb[0].mxu0 %v1386
  %v2848 = vpop.f32.mrb[0].mxu0
  %v2849 = vadd.f32 %v2560, %v2848
  %v2850 = vpop.f32.mrb[0].mxu0
  %v2851 = vpop.f32.mrb[0].mxu0
  %v2852 = vadd.f32 %v2563, %v2851
  %v2853 = vpop.f32.mrb[0].mxu0
  %2854 = vmatprep.mubr.bf16.mxu0 %v1396
  %2855 = vmatmul.mubr.bf16.gmra.mrb[0].mxu0 %v1395
  %v2856 = vpop.f32.mrb[0].mxu0
  %v2857 = vadd.f32 %v2568, %v2856
  %v2858 = vpop.f32.mrb[0].mxu0
  %v2859 = vpop.f32.mrb[0].mxu0
  %v2860 = vadd.f32 %v2571, %v2859
  %v2861 = vpop.f32.mrb[0].mxu0
  %2862 = vmatprep.mubr.bf16.mxu0 %v1405
  %2863 = vmatmul.mubr.bf16.gmra.mrb[0].mxu0 %v1404
  %v2864 = vpop.f32.mrb[0].mxu0
  %v2865 = vadd.f32 %v2576, %v2864
  %v2866 = vpop.f32.mrb[0].mxu0
  %v2867 = vpop.f32.mrb[0].mxu0
  %v2868 = vadd.f32 %v2579, %v2867
  %v2869 = vpop.f32.mrb[0].mxu0
  %2870 = vmatprep.mubr.bf16.mxu0 %v1414
  %2871 = vmatmul.mubr.bf16.gmra.mrb[0].mxu0 %v1413
  %v2872 = vpop.f32.mrb[0].mxu0
  %v2873 = vadd.f32 %v2584, %v2872
  %v2874 = vpop.f32.mrb[0].mxu0
  %v2875 = vpop.f32.mrb[0].mxu0
  %v2876 = vadd.f32 %v2587, %v2875
  %v2877 = vpop.f32.mrb[0].mxu0
  %2878 = vmatprep.mubr.bf16.mxu0 %v1423
  %2879 = vmatmul.mubr.bf16.gmra.mrb[0].mxu0 %v1422
  %v2880 = vpop.f32.mrb[0].mxu0
  %v2881 = vadd.f32 %v2592, %v2880
  %v2882 = vpop.f32.mrb[0].mxu0
  %v2883 = vpop.f32.mrb[0].mxu0
  %v2884 = vadd.f32 %v2595, %v2883
  %v2885 = vpop.f32.mrb[0].mxu0
  %2886 = vmatprep.mubr.bf16.mxu0 %v1432
  %2887 = vmatmul.mubr.bf16.gmra.mrb[0].mxu0 %v1431
  %v2888 = vpop.f32.mrb[0].mxu0
  %v2889 = vadd.f32 %v2600, %v2888
  %v2890 = vpop.f32.mrb[0].mxu0
  %v2891 = vpop.f32.mrb[0].mxu0
  %v2892 = vadd.f32 %v2603, %v2891
  %v2893 = vpop.f32.mrb[0].mxu0
  %2894 = vmatprep.mubr.bf16.mxu0 %v1441
  %2895 = vmatmul.mubr.bf16.gmra.mrb[0].mxu0 %v1440
  %v2896 = vpop.f32.mrb[0].mxu0
  %v2897 = vadd.f32 %v2608, %v2896
  %v2898 = vpop.f32.mrb[0].mxu0
  %v2899 = vpop.f32.mrb[0].mxu0
  %v2900 = vadd.f32 %v2611, %v2899
  %v2901 = vpop.f32.mrb[0].mxu0
  %2902 = vmatprep.mubr.bf16.mxu0 %v1450
  %2903 = vmatmul.mubr.bf16.gmra.mrb[0].mxu0 %v1449
  %v2904 = vpop.f32.mrb[0].mxu0
  %v2905 = vadd.f32 %v2616, %v2904
  %v2906 = vpop.f32.mrb[0].mxu0
  %v2907 = vpop.f32.mrb[0].mxu0
  %v2908 = vadd.f32 %v2619, %v2907
  %v2909 = vpop.f32.mrb[0].mxu0
  %2910 = vmatprep.mubr.bf16.mxu0 %v1459
  %2911 = vmatmul.mubr.bf16.gmra.mrb[0].mxu0 %v1458
  %v2912 = vpop.f32.mrb[0].mxu0
  %v2913 = vadd.f32 %v2624, %v2912
  %v2914 = vpop.f32.mrb[0].mxu0
  %v2915 = vpop.f32.mrb[0].mxu0
  %v2916 = vadd.f32 %v2627, %v2915
  %v2917 = vpop.f32.mrb[0].mxu0
  %2918 = vmatprep.mubr.bf16.mxu0 %v1468
  %2919 = vmatmul.mubr.bf16.gmra.mrb[0].mxu0 %v1467
  %v2920 = vpop.f32.mrb[0].mxu0
  %v2921 = vadd.f32 %v2632, %v2920
  %v2922 = vpop.f32.mrb[0].mxu0
  %v2923 = vpop.f32.mrb[0].mxu0
  %v2924 = vadd.f32 %v2635, %v2923
  %v2925 = vpop.f32.mrb[0].mxu0
  %2926 = vmatprep.mubr.bf16.mxu0 %v1477
  %2927 = vmatmul.mubr.bf16.gmra.mrb[0].mxu0 %v1476
  %v2928 = vpop.f32.mrb[0].mxu0
  %v2929 = vadd.f32 %v2640, %v2928
  %v2930 = vpop.f32.mrb[0].mxu0
  %v2931 = vpop.f32.mrb[0].mxu0
  %v2932 = vadd.f32 %v2643, %v2931
  %v2933 = vpop.f32.mrb[0].mxu0
  %2934 = vmatprep.mubr.bf16.mxu0 %v1486
  %2935 = vmatmul.mubr.bf16.gmra.mrb[0].mxu0 %v1485
  %v2936 = vpop.f32.mrb[0].mxu0
  %v2937 = vadd.f32 %v2648, %v2936
  %v2938 = vpop.f32.mrb[0].mxu0
  %v2939 = vpop.f32.mrb[0].mxu0
  %v2940 = vadd.f32 %v2651, %v2939
  %v2941 = vpop.f32.mrb[0].mxu0
  %2942 = vmatprep.mubr.bf16.mxu0 %v1495
  %2943 = vmatmul.mubr.bf16.gmra.mrb[0].mxu0 %v1494
  %v2944 = vpop.f32.mrb[0].mxu0
  %v2945 = vadd.f32 %v2656, %v2944
  %v2946 = vpop.f32.mrb[0].mxu0
  %v2947 = vpop.f32.mrb[0].mxu0
  %v2948 = vadd.f32 %v2659, %v2947
  %v2949 = vpop.f32.mrb[0].mxu0
  %2950 = vmatprep.mubr.bf16.mxu0 %v1504
  %2951 = vmatmul.mubr.bf16.gmra.mrb[0].mxu0 %v1503
  %v2952 = vpop.f32.mrb[0].mxu0
  %v2953 = vadd.f32 %v2664, %v2952
  %v2954 = vpop.f32.mrb[0].mxu0
  %v2955 = vpop.f32.mrb[0].mxu0
  %v2956 = vadd.f32 %v2667, %v2955
  %v2957 = vpop.f32.mrb[0].mxu0
  %2958 = vmatprep.mubr.bf16.mxu0 %v1513
  %2959 = vmatmul.mubr.bf16.gmra.mrb[0].mxu0 %v1512
  %v2960 = vpop.f32.mrb[0].mxu0
  %v2961 = vadd.f32 %v2672, %v2960
  %v2962 = vpop.f32.mrb[0].mxu0
  %v2963 = vpop.f32.mrb[0].mxu0
  %v2964 = vadd.f32 %v2675, %v2963
  %v2965 = vpop.f32.mrb[0].mxu0
  %2966 = vmatprep.mubr.bf16.mxu0 %v1522
  %2967 = vmatmul.mubr.bf16.gmra.mrb[0].mxu0 %v1521
  %v2968 = vpop.f32.mrb[0].mxu0
  %v2969 = vadd.f32 %v2680, %v2968
  %v2970 = vpop.f32.mrb[0].mxu0
  %v2971 = vpop.f32.mrb[0].mxu0
  %v2972 = vadd.f32 %v2683, %v2971
  %v2973 = vpop.f32.mrb[0].mxu0
  %2974 = vmatprep.mubr.bf16.mxu0 %v1531
  %2975 = vmatmul.mubr.bf16.gmra.mrb[0].mxu0 %v1530
  %v2976 = vpop.f32.mrb[0].mxu0
  %v2977 = vadd.f32 %v2688, %v2976
  %v2978 = vpop.f32.mrb[0].mxu0
  %v2979 = vpop.f32.mrb[0].mxu0
  %v2980 = vadd.f32 %v2691, %v2979
  %v2981 = vpop.f32.mrb[0].mxu0
  %2982 = vmatprep.mubr.bf16.mxu0 %v1540
  %2983 = vmatmul.mubr.bf16.gmra.mrb[0].mxu0 %v1539
  %v2984 = vpop.f32.mrb[0].mxu0
  %v2985 = vadd.f32 %v2696, %v2984
  %v2986 = vpop.f32.mrb[0].mxu0
  %v2987 = vpop.f32.mrb[0].mxu0
  %v2988 = vadd.f32 %v2699, %v2987
  %v2989 = vpop.f32.mrb[0].mxu0
  %2990 = vmatprep.mubr.bf16.mxu0 %v1549
  %2991 = vmatmul.mubr.bf16.gmra.mrb[0].mxu0 %v1548
  %v2992 = vpop.f32.mrb[0].mxu0
  %v2993 = vadd.f32 %v2704, %v2992
  %v2994 = vpop.f32.mrb[0].mxu0
  %v2995 = vpop.f32.mrb[0].mxu0
  %v2996 = vadd.f32 %v2707, %v2995
  %v2997 = vpop.f32.mrb[0].mxu0
  %2998 = vmatprep.mubr.bf16.mxu0 %v1558
  %2999 = vmatmul.mubr.bf16.gmra.mrb[0].mxu0 %v1557
  %v3000 = vpop.f32.mrb[0].mxu0
  %v3001 = vadd.f32 %v2712, %v3000
  %v3002 = vpop.f32.mrb[0].mxu0
  %v3003 = vpop.f32.mrb[0].mxu0
  %v3004 = vadd.f32 %v2715, %v3003
  %v3005 = vpop.f32.mrb[0].mxu0
  %3006 = vmatprep.mubr.bf16.mxu0 %v1567
  %3007 = vmatmul.mubr.bf16.gmra.mrb[0].mxu0 %v1566
  %v3008 = vpop.f32.mrb[0].mxu0
  %v3009 = vadd.f32 %v2720, %v3008
  %v3010 = vpop.f32.mrb[0].mxu0
  %v3011 = vpop.f32.mrb[0].mxu0
  %v3012 = vadd.f32 %v2723, %v3011
  %v3013 = vpop.f32.mrb[0].mxu0
  %3014 = vmatprep.mubr.bf16.mxu0 %v1576
  %3015 = vmatmul.mubr.bf16.gmra.mrb[0].mxu0 %v1575
  %v3016 = vpop.f32.mrb[0].mxu0
  %v3017 = vadd.f32 %v2728, %v3016
  %v3018 = vpop.f32.mrb[0].mxu0
  %v3019 = vpop.f32.mrb[0].mxu0
  %v3020 = vadd.f32 %v2731, %v3019
  %v3021 = vpop.f32.mrb[0].mxu0
  %3022 = vdwg.mxu0
  %3023 = vmatprep.subr.bf16.mxu0 0
  %3024 = vmatpush1.bf16.msra.mxu0 %v2060
  %3025 = vmatprep.subr.bf16.mxu0 0
  %3026 = vmatpush1.bf16.msra.mxu0 %v2061
  %3027 = vmatprep.subr.bf16.mxu0 0
  %3028 = vmatpush1.bf16.msra.mxu0 %v2062
  %3029 = vmatprep.subr.bf16.mxu0 0
  %3030 = vmatpush1.bf16.msra.mxu0 %v2063
  %3031 = vmatprep.subr.bf16.mxu0 0
  %3032 = vmatpush1.bf16.msra.mxu0 %v2064
  %3033 = vmatprep.subr.bf16.mxu0 0
  %3034 = vmatpush1.bf16.msra.mxu0 %v2065
  %3035 = vmatprep.subr.bf16.mxu0 0
  %3036 = vmatpush1.bf16.msra.mxu0 %v2066
  %3037 = vmatprep.subr.bf16.mxu0 0
  %3038 = vmatpush1.bf16.msra.mxu0 %v2067
  %3039 = vmatprep.subr.bf16.mxu0 0
  %3040 = vmatpush1.bf16.msra.mxu0 %v2068
  %3041 = vmatprep.subr.bf16.mxu0 0
  %3042 = vmatpush1.bf16.msra.mxu0 %v2069
  %3043 = vmatprep.subr.bf16.mxu0 0
  %3044 = vmatpush1.bf16.msra.mxu0 %v2070
  %3045 = vmatprep.subr.bf16.mxu0 0
  %3046 = vmatpush1.bf16.msra.mxu0 %v2071
  %3047 = vmatprep.subr.bf16.mxu0 0
  %3048 = vmatpush1.bf16.msra.mxu0 %v2072
  %3049 = vmatprep.subr.bf16.mxu0 0
  %3050 = vmatpush1.bf16.msra.mxu0 %v2073
  %3051 = vmatprep.subr.bf16.mxu0 0
  %3052 = vmatpush1.bf16.msra.mxu0 %v2074
  %3053 = vmatprep.subr.bf16.mxu0 0
  %3054 = vmatpush1.bf16.msra.mxu0 %v2075
  %3055 = vmatprep.mubr.bf16.mxu0 %v1299
  %3056 = vmatmul.mubr.bf16.gmra.mrb[0].mxu0 %v1298
  %v3057 = vpop.f32.mrb[0].mxu0
  %v3058 = vadd.f32 %v2769, %v3057
  %v3059 = vpop.f32.mrb[0].mxu0
  %v3060 = vpop.f32.mrb[0].mxu0
  %v3061 = vadd.f32 %v2772, %v3060
  %v3062 = vpop.f32.mrb[0].mxu0
  %3063 = vmatprep.mubr.bf16.mxu0 %v1308
  %3064 = vmatmul.mubr.bf16.gmra.mrb[0].mxu0 %v1307
  %v3065 = vpop.f32.mrb[0].mxu0
  %v3066 = vadd.f32 %v2777, %v3065
  %v3067 = vpop.f32.mrb[0].mxu0
  %v3068 = vpop.f32.mrb[0].mxu0
  %v3069 = vadd.f32 %v2780, %v3068
  %v3070 = vpop.f32.mrb[0].mxu0
  %3071 = vmatprep.mubr.bf16.mxu0 %v1317
  %3072 = vmatmul.mubr.bf16.gmra.mrb[0].mxu0 %v1316
  %v3073 = vpop.f32.mrb[0].mxu0
  %v3074 = vadd.f32 %v2785, %v3073
  %v3075 = vpop.f32.mrb[0].mxu0
  %v3076 = vpop.f32.mrb[0].mxu0
  %v3077 = vadd.f32 %v2788, %v3076
  %v3078 = vpop.f32.mrb[0].mxu0
  %3079 = vmatprep.mubr.bf16.mxu0 %v1326
  %3080 = vmatmul.mubr.bf16.gmra.mrb[0].mxu0 %v1325
  %v3081 = vpop.f32.mrb[0].mxu0
  %v3082 = vadd.f32 %v2793, %v3081
  %v3083 = vpop.f32.mrb[0].mxu0
  %v3084 = vpop.f32.mrb[0].mxu0
  %v3085 = vadd.f32 %v2796, %v3084
  %v3086 = vpop.f32.mrb[0].mxu0
  %3087 = vmatprep.mubr.bf16.mxu0 %v1335
  %3088 = vmatmul.mubr.bf16.gmra.mrb[0].mxu0 %v1334
  %v3089 = vpop.f32.mrb[0].mxu0
  %v3090 = vadd.f32 %v2801, %v3089
  %v3091 = vpop.f32.mrb[0].mxu0
  %v3092 = vpop.f32.mrb[0].mxu0
  %v3093 = vadd.f32 %v2804, %v3092
  %v3094 = vpop.f32.mrb[0].mxu0
  %3095 = vmatprep.mubr.bf16.mxu0 %v1344
  %3096 = vmatmul.mubr.bf16.gmra.mrb[0].mxu0 %v1343
  %v3097 = vpop.f32.mrb[0].mxu0
  %v3098 = vadd.f32 %v2809, %v3097
  %v3099 = vpop.f32.mrb[0].mxu0
  %v3100 = vpop.f32.mrb[0].mxu0
  %v3101 = vadd.f32 %v2812, %v3100
  %v3102 = vpop.f32.mrb[0].mxu0
  %3103 = vmatprep.mubr.bf16.mxu0 %v1353
  %3104 = vmatmul.mubr.bf16.gmra.mrb[0].mxu0 %v1352
  %v3105 = vpop.f32.mrb[0].mxu0
  %v3106 = vadd.f32 %v2817, %v3105
  %v3107 = vpop.f32.mrb[0].mxu0
  %v3108 = vpop.f32.mrb[0].mxu0
  %v3109 = vadd.f32 %v2820, %v3108
  %v3110 = vpop.f32.mrb[0].mxu0
  %3111 = vmatprep.mubr.bf16.mxu0 %v1362
  %3112 = vmatmul.mubr.bf16.gmra.mrb[0].mxu0 %v1361
  %v3113 = vpop.f32.mrb[0].mxu0
  %v3114 = vadd.f32 %v2825, %v3113
  %v3115 = vpop.f32.mrb[0].mxu0
  %v3116 = vpop.f32.mrb[0].mxu0
  %v3117 = vadd.f32 %v2828, %v3116
  %v3118 = vpop.f32.mrb[0].mxu0
  %3119 = vmatprep.mubr.bf16.mxu0 %v1371
  %3120 = vmatmul.mubr.bf16.gmra.mrb[0].mxu0 %v1370
  %v3121 = vpop.f32.mrb[0].mxu0
  %v3122 = vadd.f32 %v2833, %v3121
  %v3123 = vpop.f32.mrb[0].mxu0
  %v3124 = vpop.f32.mrb[0].mxu0
  %v3125 = vadd.f32 %v2836, %v3124
  %v3126 = vpop.f32.mrb[0].mxu0
  %3127 = vmatprep.mubr.bf16.mxu0 %v1380
  %3128 = vmatmul.mubr.bf16.gmra.mrb[0].mxu0 %v1379
  %v3129 = vpop.f32.mrb[0].mxu0
  %v3130 = vadd.f32 %v2841, %v3129
  %v3131 = vpop.f32.mrb[0].mxu0
  %v3132 = vpop.f32.mrb[0].mxu0
  %v3133 = vadd.f32 %v2844, %v3132
  %v3134 = vpop.f32.mrb[0].mxu0
  %3135 = vmatprep.mubr.bf16.mxu0 %v1389
  %3136 = vmatmul.mubr.bf16.gmra.mrb[0].mxu0 %v1388
  %v3137 = vpop.f32.mrb[0].mxu0
  %v3138 = vadd.f32 %v2849, %v3137
  %v3139 = vpop.f32.mrb[0].mxu0
  %v3140 = vpop.f32.mrb[0].mxu0
  %v3141 = vadd.f32 %v2852, %v3140
  %v3142 = vpop.f32.mrb[0].mxu0
  %3143 = vmatprep.mubr.bf16.mxu0 %v1398
  %3144 = vmatmul.mubr.bf16.gmra.mrb[0].mxu0 %v1397
  %v3145 = vpop.f32.mrb[0].mxu0
  %v3146 = vadd.f32 %v2857, %v3145
  %v3147 = vpop.f32.mrb[0].mxu0
  %v3148 = vpop.f32.mrb[0].mxu0
  %v3149 = vadd.f32 %v2860, %v3148
  %v3150 = vpop.f32.mrb[0].mxu0
  %3151 = vmatprep.mubr.bf16.mxu0 %v1407
  %3152 = vmatmul.mubr.bf16.gmra.mrb[0].mxu0 %v1406
  %v3153 = vpop.f32.mrb[0].mxu0
  %v3154 = vadd.f32 %v2865, %v3153
  %v3155 = vpop.f32.mrb[0].mxu0
  %v3156 = vpop.f32.mrb[0].mxu0
  %v3157 = vadd.f32 %v2868, %v3156
  %v3158 = vpop.f32.mrb[0].mxu0
  %3159 = vmatprep.mubr.bf16.mxu0 %v1416
  %3160 = vmatmul.mubr.bf16.gmra.mrb[0].mxu0 %v1415
  %v3161 = vpop.f32.mrb[0].mxu0
  %v3162 = vadd.f32 %v2873, %v3161
  %v3163 = vpop.f32.mrb[0].mxu0
  %v3164 = vpop.f32.mrb[0].mxu0
  %v3165 = vadd.f32 %v2876, %v3164
  %v3166 = vpop.f32.mrb[0].mxu0
  %3167 = vmatprep.mubr.bf16.mxu0 %v1425
  %3168 = vmatmul.mubr.bf16.gmra.mrb[0].mxu0 %v1424
  %v3169 = vpop.f32.mrb[0].mxu0
  %v3170 = vadd.f32 %v2881, %v3169
  %v3171 = vpop.f32.mrb[0].mxu0
  %v3172 = vpop.f32.mrb[0].mxu0
  %v3173 = vadd.f32 %v2884, %v3172
  %v3174 = vpop.f32.mrb[0].mxu0
  %3175 = vmatprep.mubr.bf16.mxu0 %v1434
  %3176 = vmatmul.mubr.bf16.gmra.mrb[0].mxu0 %v1433
  %v3177 = vpop.f32.mrb[0].mxu0
  %v3178 = vadd.f32 %v2889, %v3177
  %v3179 = vpop.f32.mrb[0].mxu0
  %v3180 = vpop.f32.mrb[0].mxu0
  %v3181 = vadd.f32 %v2892, %v3180
  %v3182 = vpop.f32.mrb[0].mxu0
  %3183 = vmatprep.mubr.bf16.mxu0 %v1443
  %3184 = vmatmul.mubr.bf16.gmra.mrb[0].mxu0 %v1442
  %v3185 = vpop.f32.mrb[0].mxu0
  %v3186 = vadd.f32 %v2897, %v3185
  %v3187 = vpop.f32.mrb[0].mxu0
  %v3188 = vpop.f32.mrb[0].mxu0
  %v3189 = vadd.f32 %v2900, %v3188
  %v3190 = vpop.f32.mrb[0].mxu0
  %3191 = vmatprep.mubr.bf16.mxu0 %v1452
  %3192 = vmatmul.mubr.bf16.gmra.mrb[0].mxu0 %v1451
  %v3193 = vpop.f32.mrb[0].mxu0
  %v3194 = vadd.f32 %v2905, %v3193
  %v3195 = vpop.f32.mrb[0].mxu0
  %v3196 = vpop.f32.mrb[0].mxu0
  %v3197 = vadd.f32 %v2908, %v3196
  %v3198 = vpop.f32.mrb[0].mxu0
  %3199 = vmatprep.mubr.bf16.mxu0 %v1461
  %3200 = vmatmul.mubr.bf16.gmra.mrb[0].mxu0 %v1460
  %v3201 = vpop.f32.mrb[0].mxu0
  %v3202 = vadd.f32 %v2913, %v3201
  %v3203 = vpop.f32.mrb[0].mxu0
  %v3204 = vpop.f32.mrb[0].mxu0
  %v3205 = vadd.f32 %v2916, %v3204
  %v3206 = vpop.f32.mrb[0].mxu0
  %3207 = vmatprep.mubr.bf16.mxu0 %v1470
  %3208 = vmatmul.mubr.bf16.gmra.mrb[0].mxu0 %v1469
  %v3209 = vpop.f32.mrb[0].mxu0
  %v3210 = vadd.f32 %v2921, %v3209
  %v3211 = vpop.f32.mrb[0].mxu0
  %v3212 = vpop.f32.mrb[0].mxu0
  %v3213 = vadd.f32 %v2924, %v3212
  %v3214 = vpop.f32.mrb[0].mxu0
  %3215 = vmatprep.mubr.bf16.mxu0 %v1479
  %3216 = vmatmul.mubr.bf16.gmra.mrb[0].mxu0 %v1478
  %v3217 = vpop.f32.mrb[0].mxu0
  %v3218 = vadd.f32 %v2929, %v3217
  %v3219 = vpop.f32.mrb[0].mxu0
  %v3220 = vpop.f32.mrb[0].mxu0
  %v3221 = vadd.f32 %v2932, %v3220
  %v3222 = vpop.f32.mrb[0].mxu0
  %3223 = vmatprep.mubr.bf16.mxu0 %v1488
  %3224 = vmatmul.mubr.bf16.gmra.mrb[0].mxu0 %v1487
  %v3225 = vpop.f32.mrb[0].mxu0
  %v3226 = vadd.f32 %v2937, %v3225
  %v3227 = vpop.f32.mrb[0].mxu0
  %v3228 = vpop.f32.mrb[0].mxu0
  %v3229 = vadd.f32 %v2940, %v3228
  %v3230 = vpop.f32.mrb[0].mxu0
  %3231 = vmatprep.mubr.bf16.mxu0 %v1497
  %3232 = vmatmul.mubr.bf16.gmra.mrb[0].mxu0 %v1496
  %v3233 = vpop.f32.mrb[0].mxu0
  %v3234 = vadd.f32 %v2945, %v3233
  %v3235 = vpop.f32.mrb[0].mxu0
  %v3236 = vpop.f32.mrb[0].mxu0
  %v3237 = vadd.f32 %v2948, %v3236
  %v3238 = vpop.f32.mrb[0].mxu0
  %3239 = vmatprep.mubr.bf16.mxu0 %v1506
  %3240 = vmatmul.mubr.bf16.gmra.mrb[0].mxu0 %v1505
  %v3241 = vpop.f32.mrb[0].mxu0
  %v3242 = vadd.f32 %v2953, %v3241
  %v3243 = vpop.f32.mrb[0].mxu0
  %v3244 = vpop.f32.mrb[0].mxu0
  %v3245 = vadd.f32 %v2956, %v3244
  %v3246 = vpop.f32.mrb[0].mxu0
  %3247 = vmatprep.mubr.bf16.mxu0 %v1515
  %3248 = vmatmul.mubr.bf16.gmra.mrb[0].mxu0 %v1514
  %v3249 = vpop.f32.mrb[0].mxu0
  %v3250 = vadd.f32 %v2961, %v3249
  %v3251 = vpop.f32.mrb[0].mxu0
  %v3252 = vpop.f32.mrb[0].mxu0
  %v3253 = vadd.f32 %v2964, %v3252
  %v3254 = vpop.f32.mrb[0].mxu0
  %3255 = vmatprep.mubr.bf16.mxu0 %v1524
  %3256 = vmatmul.mubr.bf16.gmra.mrb[0].mxu0 %v1523
  %v3257 = vpop.f32.mrb[0].mxu0
  %v3258 = vadd.f32 %v2969, %v3257
  %v3259 = vpop.f32.mrb[0].mxu0
  %v3260 = vpop.f32.mrb[0].mxu0
  %v3261 = vadd.f32 %v2972, %v3260
  %v3262 = vpop.f32.mrb[0].mxu0
  %3263 = vmatprep.mubr.bf16.mxu0 %v1533
  %3264 = vmatmul.mubr.bf16.gmra.mrb[0].mxu0 %v1532
  %v3265 = vpop.f32.mrb[0].mxu0
  %v3266 = vadd.f32 %v2977, %v3265
  %v3267 = vpop.f32.mrb[0].mxu0
  %v3268 = vpop.f32.mrb[0].mxu0
  %v3269 = vadd.f32 %v2980, %v3268
  %v3270 = vpop.f32.mrb[0].mxu0
  %3271 = vmatprep.mubr.bf16.mxu0 %v1542
  %3272 = vmatmul.mubr.bf16.gmra.mrb[0].mxu0 %v1541
  %v3273 = vpop.f32.mrb[0].mxu0
  %v3274 = vadd.f32 %v2985, %v3273
  %v3275 = vpop.f32.mrb[0].mxu0
  %v3276 = vpop.f32.mrb[0].mxu0
  %v3277 = vadd.f32 %v2988, %v3276
  %v3278 = vpop.f32.mrb[0].mxu0
  %3279 = vmatprep.mubr.bf16.mxu0 %v1551
  %3280 = vmatmul.mubr.bf16.gmra.mrb[0].mxu0 %v1550
  %v3281 = vpop.f32.mrb[0].mxu0
  %v3282 = vadd.f32 %v2993, %v3281
  %v3283 = vpop.f32.mrb[0].mxu0
  %v3284 = vpop.f32.mrb[0].mxu0
  %v3285 = vadd.f32 %v2996, %v3284
  %v3286 = vpop.f32.mrb[0].mxu0
  %3287 = vmatprep.mubr.bf16.mxu0 %v1560
  %3288 = vmatmul.mubr.bf16.gmra.mrb[0].mxu0 %v1559
  %v3289 = vpop.f32.mrb[0].mxu0
  %v3290 = vadd.f32 %v3001, %v3289
  %v3291 = vpop.f32.mrb[0].mxu0
  %v3292 = vpop.f32.mrb[0].mxu0
  %v3293 = vadd.f32 %v3004, %v3292
  %v3294 = vpop.f32.mrb[0].mxu0
  %3295 = vmatprep.mubr.bf16.mxu0 %v1569
  %3296 = vmatmul.mubr.bf16.gmra.mrb[0].mxu0 %v1568
  %v3297 = vpop.f32.mrb[0].mxu0
  %v3298 = vadd.f32 %v3009, %v3297
  %v3299 = vpop.f32.mrb[0].mxu0
  %v3300 = vpop.f32.mrb[0].mxu0
  %v3301 = vadd.f32 %v3012, %v3300
  %v3302 = vpop.f32.mrb[0].mxu0
  %3303 = vmatprep.mubr.bf16.mxu0 %v1578
  %3304 = vmatmul.mubr.bf16.gmra.mrb[0].mxu0 %v1577
  %v3305 = vpop.f32.mrb[0].mxu0
  %v3306 = vadd.f32 %v3017, %v3305
  %v3307 = vpop.f32.mrb[0].mxu0
  %v3308 = vpop.f32.mrb[0].mxu0
  %v3309 = vadd.f32 %v3020, %v3308
  %v3310 = vpop.f32.mrb[0].mxu0
  %3311 = vdwg.mxu0
  %3312 = vmatprep.subr.bf16.mxu0 0
  %3313 = vmatpush1.bf16.msra.mxu0 %v2076
  %3314 = vmatprep.subr.bf16.mxu0 0
  %3315 = vmatpush1.bf16.msra.mxu0 %v2077
  %3316 = vmatprep.subr.bf16.mxu0 0
  %3317 = vmatpush1.bf16.msra.mxu0 %v2078
  %3318 = vmatprep.subr.bf16.mxu0 0
  %3319 = vmatpush1.bf16.msra.mxu0 %v2079
  %3320 = vmatprep.subr.bf16.mxu0 0
  %3321 = vmatpush1.bf16.msra.mxu0 %v2080
  %3322 = vmatprep.subr.bf16.mxu0 0
  %3323 = vmatpush1.bf16.msra.mxu0 %v2081
  %3324 = vmatprep.subr.bf16.mxu0 0
  %3325 = vmatpush1.bf16.msra.mxu0 %v2082
  %3326 = vmatprep.subr.bf16.mxu0 0
  %3327 = vmatpush1.bf16.msra.mxu0 %v2083
  %3328 = vmatprep.subr.bf16.mxu0 0
  %3329 = vmatpush1.bf16.msra.mxu0 0
  %3330 = vmatprep.subr.bf16.mxu0 0
  %3331 = vmatpush1.bf16.msra.mxu0 0
  %3332 = vmatprep.subr.bf16.mxu0 0
  %3333 = vmatpush1.bf16.msra.mxu0 0
  %3334 = vmatprep.subr.bf16.mxu0 0
  %3335 = vmatpush1.bf16.msra.mxu0 0
  %3336 = vmatprep.subr.bf16.mxu0 0
  %3337 = vmatpush1.bf16.msra.mxu0 0
  %3338 = vmatprep.subr.bf16.mxu0 0
  %3339 = vmatpush1.bf16.msra.mxu0 0
  %3340 = vmatprep.subr.bf16.mxu0 0
  %3341 = vmatpush1.bf16.msra.mxu0 0
  %3342 = vmatprep.subr.bf16.mxu0 0
  %3343 = vmatpush1.bf16.msra.mxu0 0
  %3344 = vmatprep.mubr.bf16.mxu0 0
  %3345 = vmatmul.mubr.bf16.gmra.mrb[0].mxu0 %v1300
  %v3346 = vpop.f32.mrb[0].mxu0
  %v3347 = vadd.f32 %v3058, %v3346
  %v3348 = vpop.f32.mrb[0].mxu0
  %v3349 = vpop.f32.mrb[0].mxu0
  %v3350 = vadd.f32 %v3061, %v3349
  %v3351 = vpop.f32.mrb[0].mxu0
  %3352 = vmatprep.mubr.bf16.mxu0 0
  %3353 = vmatmul.mubr.bf16.gmra.mrb[0].mxu0 %v1309
  %v3354 = vpop.f32.mrb[0].mxu0
  %v3355 = vadd.f32 %v3066, %v3354
  %v3356 = vpop.f32.mrb[0].mxu0
  %v3357 = vpop.f32.mrb[0].mxu0
  %v3358 = vadd.f32 %v3069, %v3357
  %v3359 = vpop.f32.mrb[0].mxu0
  %3360 = vmatprep.mubr.bf16.mxu0 0
  %3361 = vmatmul.mubr.bf16.gmra.mrb[0].mxu0 %v1318
  %v3362 = vpop.f32.mrb[0].mxu0
  %v3363 = vadd.f32 %v3074, %v3362
  %v3364 = vpop.f32.mrb[0].mxu0
  %v3365 = vpop.f32.mrb[0].mxu0
  %v3366 = vadd.f32 %v3077, %v3365
  %v3367 = vpop.f32.mrb[0].mxu0
  %3368 = vmatprep.mubr.bf16.mxu0 0
  %3369 = vmatmul.mubr.bf16.gmra.mrb[0].mxu0 %v1327
  %v3370 = vpop.f32.mrb[0].mxu0
  %v3371 = vadd.f32 %v3082, %v3370
  %v3372 = vpop.f32.mrb[0].mxu0
  %v3373 = vpop.f32.mrb[0].mxu0
  %v3374 = vadd.f32 %v3085, %v3373
  %v3375 = vpop.f32.mrb[0].mxu0
  %3376 = vmatprep.mubr.bf16.mxu0 0
  %3377 = vmatmul.mubr.bf16.gmra.mrb[0].mxu0 %v1336
  %v3378 = vpop.f32.mrb[0].mxu0
  %v3379 = vadd.f32 %v3090, %v3378
  %v3380 = vpop.f32.mrb[0].mxu0
  %v3381 = vpop.f32.mrb[0].mxu0
  %v3382 = vadd.f32 %v3093, %v3381
  %v3383 = vpop.f32.mrb[0].mxu0
  %3384 = vmatprep.mubr.bf16.mxu0 0
  %3385 = vmatmul.mubr.bf16.gmra.mrb[0].mxu0 %v1345
  %v3386 = vpop.f32.mrb[0].mxu0
  %v3387 = vadd.f32 %v3098, %v3386
  %v3388 = vpop.f32.mrb[0].mxu0
  %v3389 = vpop.f32.mrb[0].mxu0
  %v3390 = vadd.f32 %v3101, %v3389
  %v3391 = vpop.f32.mrb[0].mxu0
  %3392 = vmatprep.mubr.bf16.mxu0 0
  %3393 = vmatmul.mubr.bf16.gmra.mrb[0].mxu0 %v1354
  %v3394 = vpop.f32.mrb[0].mxu0
  %v3395 = vadd.f32 %v3106, %v3394
  %v3396 = vpop.f32.mrb[0].mxu0
  %v3397 = vpop.f32.mrb[0].mxu0
  %v3398 = vadd.f32 %v3109, %v3397
  %v3399 = vpop.f32.mrb[0].mxu0
  %3400 = vmatprep.mubr.bf16.mxu0 0
  %3401 = vmatmul.mubr.bf16.gmra.mrb[0].mxu0 %v1363
  %v3402 = vpop.f32.mrb[0].mxu0
  %v3403 = vadd.f32 %v3114, %v3402
  %v3404 = vpop.f32.mrb[0].mxu0
  %v3405 = vpop.f32.mrb[0].mxu0
  %v3406 = vadd.f32 %v3117, %v3405
  %v3407 = vpop.f32.mrb[0].mxu0
  %3408 = vmatprep.mubr.bf16.mxu0 0
  %3409 = vmatmul.mubr.bf16.gmra.mrb[0].mxu0 %v1372
  %v3410 = vpop.f32.mrb[0].mxu0
  %v3411 = vadd.f32 %v3122, %v3410
  %v3412 = vpop.f32.mrb[0].mxu0
  %v3413 = vpop.f32.mrb[0].mxu0
  %v3414 = vadd.f32 %v3125, %v3413
  %v3415 = vpop.f32.mrb[0].mxu0
  %3416 = vmatprep.mubr.bf16.mxu0 0
  %3417 = vmatmul.mubr.bf16.gmra.mrb[0].mxu0 %v1381
  %v3418 = vpop.f32.mrb[0].mxu0
  %v3419 = vadd.f32 %v3130, %v3418
  %v3420 = vpop.f32.mrb[0].mxu0
  %v3421 = vpop.f32.mrb[0].mxu0
  %v3422 = vadd.f32 %v3133, %v3421
  %v3423 = vpop.f32.mrb[0].mxu0
  %3424 = vmatprep.mubr.bf16.mxu0 0
  %3425 = vmatmul.mubr.bf16.gmra.mrb[0].mxu0 %v1390
  %v3426 = vpop.f32.mrb[0].mxu0
  %v3427 = vadd.f32 %v3138, %v3426
  %v3428 = vpop.f32.mrb[0].mxu0
  %v3429 = vpop.f32.mrb[0].mxu0
  %v3430 = vadd.f32 %v3141, %v3429
  %v3431 = vpop.f32.mrb[0].mxu0
  %3432 = vmatprep.mubr.bf16.mxu0 0
  %3433 = vmatmul.mubr.bf16.gmra.mrb[0].mxu0 %v1399
  %v3434 = vpop.f32.mrb[0].mxu0
  %v3435 = vadd.f32 %v3146, %v3434
  %v3436 = vpop.f32.mrb[0].mxu0
  %v3437 = vpop.f32.mrb[0].mxu0
  %v3438 = vadd.f32 %v3149, %v3437
  %v3439 = vpop.f32.mrb[0].mxu0
  %3440 = vmatprep.mubr.bf16.mxu0 0
  %3441 = vmatmul.mubr.bf16.gmra.mrb[0].mxu0 %v1408
  %v3442 = vpop.f32.mrb[0].mxu0
  %v3443 = vadd.f32 %v3154, %v3442
  %v3444 = vpop.f32.mrb[0].mxu0
  %v3445 = vpop.f32.mrb[0].mxu0
  %v3446 = vadd.f32 %v3157, %v3445
  %v3447 = vpop.f32.mrb[0].mxu0
  %3448 = vmatprep.mubr.bf16.mxu0 0
  %3449 = vmatmul.mubr.bf16.gmra.mrb[0].mxu0 %v1417
  %v3450 = vpop.f32.mrb[0].mxu0
  %v3451 = vadd.f32 %v3162, %v3450
  %v3452 = vpop.f32.mrb[0].mxu0
  %v3453 = vpop.f32.mrb[0].mxu0
  %v3454 = vadd.f32 %v3165, %v3453
  %v3455 = vpop.f32.mrb[0].mxu0
  %3456 = vmatprep.mubr.bf16.mxu0 0
  %3457 = vmatmul.mubr.bf16.gmra.mrb[0].mxu0 %v1426
  %v3458 = vpop.f32.mrb[0].mxu0
  %v3459 = vadd.f32 %v3170, %v3458
  %v3460 = vpop.f32.mrb[0].mxu0
  %v3461 = vpop.f32.mrb[0].mxu0
  %v3462 = vadd.f32 %v3173, %v3461
  %v3463 = vpop.f32.mrb[0].mxu0
  %3464 = vmatprep.mubr.bf16.mxu0 0
  %3465 = vmatmul.mubr.bf16.gmra.mrb[0].mxu0 %v1435
  %v3466 = vpop.f32.mrb[0].mxu0
  %v3467 = vadd.f32 %v3178, %v3466
  %v3468 = vpop.f32.mrb[0].mxu0
  %v3469 = vpop.f32.mrb[0].mxu0
  %v3470 = vadd.f32 %v3181, %v3469
  %v3471 = vpop.f32.mrb[0].mxu0
  %3472 = vmatprep.mubr.bf16.mxu0 0
  %3473 = vmatmul.mubr.bf16.gmra.mrb[0].mxu0 %v1444
  %v3474 = vpop.f32.mrb[0].mxu0
  %v3475 = vadd.f32 %v3186, %v3474
  %v3476 = vpop.f32.mrb[0].mxu0
  %v3477 = vpop.f32.mrb[0].mxu0
  %v3478 = vadd.f32 %v3189, %v3477
  %v3479 = vpop.f32.mrb[0].mxu0
  %3480 = vmatprep.mubr.bf16.mxu0 0
  %3481 = vmatmul.mubr.bf16.gmra.mrb[0].mxu0 %v1453
  %v3482 = vpop.f32.mrb[0].mxu0
  %v3483 = vadd.f32 %v3194, %v3482
  %v3484 = vpop.f32.mrb[0].mxu0
  %v3485 = vpop.f32.mrb[0].mxu0
  %v3486 = vadd.f32 %v3197, %v3485
  %v3487 = vpop.f32.mrb[0].mxu0
  %3488 = vmatprep.mubr.bf16.mxu0 0
  %3489 = vmatmul.mubr.bf16.gmra.mrb[0].mxu0 %v1462
  %v3490 = vpop.f32.mrb[0].mxu0
  %v3491 = vadd.f32 %v3202, %v3490
  %v3492 = vpop.f32.mrb[0].mxu0
  %v3493 = vpop.f32.mrb[0].mxu0
  %v3494 = vadd.f32 %v3205, %v3493
  %v3495 = vpop.f32.mrb[0].mxu0
  %3496 = vmatprep.mubr.bf16.mxu0 0
  %3497 = vmatmul.mubr.bf16.gmra.mrb[0].mxu0 %v1471
  %v3498 = vpop.f32.mrb[0].mxu0
  %v3499 = vadd.f32 %v3210, %v3498
  %v3500 = vpop.f32.mrb[0].mxu0
  %v3501 = vpop.f32.mrb[0].mxu0
  %v3502 = vadd.f32 %v3213, %v3501
  %v3503 = vpop.f32.mrb[0].mxu0
  %3504 = vmatprep.mubr.bf16.mxu0 0
  %3505 = vmatmul.mubr.bf16.gmra.mrb[0].mxu0 %v1480
  %v3506 = vpop.f32.mrb[0].mxu0
  %v3507 = vadd.f32 %v3218, %v3506
  %v3508 = vpop.f32.mrb[0].mxu0
  %v3509 = vpop.f32.mrb[0].mxu0
  %v3510 = vadd.f32 %v3221, %v3509
  %v3511 = vpop.f32.mrb[0].mxu0
  %3512 = vmatprep.mubr.bf16.mxu0 0
  %3513 = vmatmul.mubr.bf16.gmra.mrb[0].mxu0 %v1489
  %v3514 = vpop.f32.mrb[0].mxu0
  %v3515 = vadd.f32 %v3226, %v3514
  %v3516 = vpop.f32.mrb[0].mxu0
  %v3517 = vpop.f32.mrb[0].mxu0
  %v3518 = vadd.f32 %v3229, %v3517
  %v3519 = vpop.f32.mrb[0].mxu0
  %3520 = vmatprep.mubr.bf16.mxu0 0
  %3521 = vmatmul.mubr.bf16.gmra.mrb[0].mxu0 %v1498
  %v3522 = vpop.f32.mrb[0].mxu0
  %v3523 = vadd.f32 %v3234, %v3522
  %v3524 = vpop.f32.mrb[0].mxu0
  %v3525 = vpop.f32.mrb[0].mxu0
  %v3526 = vadd.f32 %v3237, %v3525
  %v3527 = vpop.f32.mrb[0].mxu0
  %3528 = vmatprep.mubr.bf16.mxu0 0
  %3529 = vmatmul.mubr.bf16.gmra.mrb[0].mxu0 %v1507
  %v3530 = vpop.f32.mrb[0].mxu0
  %v3531 = vadd.f32 %v3242, %v3530
  %v3532 = vpop.f32.mrb[0].mxu0
  %v3533 = vpop.f32.mrb[0].mxu0
  %v3534 = vadd.f32 %v3245, %v3533
  %v3535 = vpop.f32.mrb[0].mxu0
  %3536 = vmatprep.mubr.bf16.mxu0 0
  %3537 = vmatmul.mubr.bf16.gmra.mrb[0].mxu0 %v1516
  %v3538 = vpop.f32.mrb[0].mxu0
  %v3539 = vadd.f32 %v3250, %v3538
  %v3540 = vpop.f32.mrb[0].mxu0
  %v3541 = vpop.f32.mrb[0].mxu0
  %v3542 = vadd.f32 %v3253, %v3541
  %v3543 = vpop.f32.mrb[0].mxu0
  %3544 = vmatprep.mubr.bf16.mxu0 0
  %3545 = vmatmul.mubr.bf16.gmra.mrb[0].mxu0 %v1525
  %v3546 = vpop.f32.mrb[0].mxu0
  %v3547 = vadd.f32 %v3258, %v3546
  %v3548 = vpop.f32.mrb[0].mxu0
  %v3549 = vpop.f32.mrb[0].mxu0
  %v3550 = vadd.f32 %v3261, %v3549
  %v3551 = vpop.f32.mrb[0].mxu0
  %3552 = vmatprep.mubr.bf16.mxu0 0
  %3553 = vmatmul.mubr.bf16.gmra.mrb[0].mxu0 %v1534
  %v3554 = vpop.f32.mrb[0].mxu0
  %v3555 = vadd.f32 %v3266, %v3554
  %v3556 = vpop.f32.mrb[0].mxu0
  %v3557 = vpop.f32.mrb[0].mxu0
  %v3558 = vadd.f32 %v3269, %v3557
  %v3559 = vpop.f32.mrb[0].mxu0
  %3560 = vmatprep.mubr.bf16.mxu0 0
  %3561 = vmatmul.mubr.bf16.gmra.mrb[0].mxu0 %v1543
  %v3562 = vpop.f32.mrb[0].mxu0
  %v3563 = vadd.f32 %v3274, %v3562
  %v3564 = vpop.f32.mrb[0].mxu0
  %v3565 = vpop.f32.mrb[0].mxu0
  %v3566 = vadd.f32 %v3277, %v3565
  %v3567 = vpop.f32.mrb[0].mxu0
  %3568 = vmatprep.mubr.bf16.mxu0 0
  %3569 = vmatmul.mubr.bf16.gmra.mrb[0].mxu0 %v1552
  %v3570 = vpop.f32.mrb[0].mxu0
  %v3571 = vadd.f32 %v3282, %v3570
  %v3572 = vpop.f32.mrb[0].mxu0
  %v3573 = vpop.f32.mrb[0].mxu0
  %v3574 = vadd.f32 %v3285, %v3573
  %v3575 = vpop.f32.mrb[0].mxu0
  %3576 = vmatprep.mubr.bf16.mxu0 0
  %3577 = vmatmul.mubr.bf16.gmra.mrb[0].mxu0 %v1561
  %v3578 = vpop.f32.mrb[0].mxu0
  %v3579 = vadd.f32 %v3290, %v3578
  %v3580 = vpop.f32.mrb[0].mxu0
  %v3581 = vpop.f32.mrb[0].mxu0
  %v3582 = vadd.f32 %v3293, %v3581
  %v3583 = vpop.f32.mrb[0].mxu0
  %3584 = vmatprep.mubr.bf16.mxu0 0
  %3585 = vmatmul.mubr.bf16.gmra.mrb[0].mxu0 %v1570
  %v3586 = vpop.f32.mrb[0].mxu0
  %v3587 = vadd.f32 %v3298, %v3586
  %v3588 = vpop.f32.mrb[0].mxu0
  %v3589 = vpop.f32.mrb[0].mxu0
  %v3590 = vadd.f32 %v3301, %v3589
  %v3591 = vpop.f32.mrb[0].mxu0
  %3592 = vmatprep.mubr.bf16.mxu0 0
  %3593 = vmatmul.mubr.bf16.gmra.mrb[0].mxu0 %v1579
  %v3594 = vpop.f32.mrb[0].mxu0
  %v3595 = vadd.f32 %v3306, %v3594
  %v3596 = vpop.f32.mrb[0].mxu0
  %v3597 = vpop.f32.mrb[0].mxu0
  %v3598 = vadd.f32 %v3309, %v3597
  %v3599 = vpop.f32.mrb[0].mxu0
  %3600 = vdwg.mxu0
  %v3601 = vadd.f32 %v3347, %v3350
  %v3602 = vadd.f32 %v3601, %v3355
  %v3603 = vadd.f32 %v3602, %v3358
  %v3604 = vadd.f32 %v3603, %v3363
  %v3605 = vadd.f32 %v3604, %v3366
  %v3606 = vadd.f32 %v3605, %v3371
  %v3607 = vadd.f32 %v3606, %v3374
  %v3608 = vadd.f32 %v3607, %v3379
  %v3609 = vadd.f32 %v3608, %v3382
  %v3610 = vadd.f32 %v3609, %v3387
  %v3611 = vadd.f32 %v3610, %v3390
  %v3612 = vadd.f32 %v3611, %v3395
  %v3613 = vadd.f32 %v3612, %v3398
  %v3614 = vadd.f32 %v3613, %v3403
  %v3615 = vadd.f32 %v3614, %v3406
  %v3616 = vadd.f32 %v3615, %v3411
  %v3617 = vadd.f32 %v3616, %v3414
  %v3618 = vadd.f32 %v3617, %v3419
  %v3619 = vadd.f32 %v3618, %v3422
  %v3620 = vadd.f32 %v3619, %v3427
  %v3621 = vadd.f32 %v3620, %v3430
  %v3622 = vadd.f32 %v3621, %v3435
  %v3623 = vadd.f32 %v3622, %v3438
  %v3624 = vadd.f32 %v3623, %v3443
  %v3625 = vadd.f32 %v3624, %v3446
  %v3626 = vadd.f32 %v3625, %v3451
  %v3627 = vadd.f32 %v3626, %v3454
  %v3628 = vadd.f32 %v3627, %v3459
  %v3629 = vadd.f32 %v3628, %v3462
  %v3630 = vadd.f32 %v3629, %v3467
  %v3631 = vadd.f32 %v3630, %v3470
  %v3632 = vadd.f32 %v3631, %v3475
  %v3633 = vadd.f32 %v3632, %v3478
  %v3634 = vadd.f32 %v3633, %v3483
  %v3635 = vadd.f32 %v3634, %v3486
  %v3636 = vadd.f32 %v3635, %v3491
  %v3637 = vadd.f32 %v3636, %v3494
  %v3638 = vadd.f32 %v3637, %v3499
  %v3639 = vadd.f32 %v3638, %v3502
  %v3640 = vadd.f32 %v3639, %v3507
  %v3641 = vadd.f32 %v3640, %v3510
  %v3642 = vadd.f32 %v3641, %v3515
  %v3643 = vadd.f32 %v3642, %v3518
  %v3644 = vadd.f32 %v3643, %v3523
  %v3645 = vadd.f32 %v3644, %v3526
  %v3646 = vadd.f32 %v3645, %v3531
  %v3647 = vadd.f32 %v3646, %v3534
  %v3648 = vadd.f32 %v3647, %v3539
  %v3649 = vadd.f32 %v3648, %v3542
  %v3650 = vadd.f32 %v3649, %v3547
  %v3651 = vadd.f32 %v3650, %v3550
  %v3652 = vadd.f32 %v3651, %v3555
  %v3653 = vadd.f32 %v3652, %v3558
  %v3654 = vadd.f32 %v3653, %v3563
  %v3655 = vadd.f32 %v3654, %v3566
  %v3656 = vadd.f32 %v3655, %v3571
  %v3657 = vadd.f32 %v3656, %v3574
  %v3658 = vadd.f32 %v3657, %v3579
  %v3659 = vadd.f32 %v3658, %v3582
  %v3660 = vadd.f32 %v3659, %v3587
  %v3661 = vadd.f32 %v3660, %v3590
  %v3662 = vadd.f32 %v3661, %v3595
  %v3663 = vadd.f32 %v3662, %v3598
  %v3664 = vrot.slane %v3663, 4
  %v3665 = vadd.f32 %v3663, %v3664
  %v3666 = vrot.slane %v3665, 2
  %v3667 = vadd.f32 %v3665, %v3666
  %v3668 = vrot.slane %v3667, 1
  %v3669 = vadd.f32 %v3667, %v3668
  %v3670 = vmul.f32 %v3669, 0.001953125
  %v3671 = vmul.f32 %v3347, %v3347
  %v3672 = vmul.f32 %v3350, %v3350
  %v3673 = vmul.f32 %v3355, %v3355
  %v3674 = vmul.f32 %v3358, %v3358
  %v3675 = vmul.f32 %v3363, %v3363
  %v3676 = vmul.f32 %v3366, %v3366
  %v3677 = vmul.f32 %v3371, %v3371
  %v3678 = vmul.f32 %v3374, %v3374
  %v3679 = vmul.f32 %v3379, %v3379
  %v3680 = vmul.f32 %v3382, %v3382
  %v3681 = vmul.f32 %v3387, %v3387
  %v3682 = vmul.f32 %v3390, %v3390
  %v3683 = vmul.f32 %v3395, %v3395
  %v3684 = vmul.f32 %v3398, %v3398
  %v3685 = vmul.f32 %v3403, %v3403
  %v3686 = vmul.f32 %v3406, %v3406
  %v3687 = vmul.f32 %v3411, %v3411
  %v3688 = vmul.f32 %v3414, %v3414
  %v3689 = vmul.f32 %v3419, %v3419
  %v3690 = vmul.f32 %v3422, %v3422
  %v3691 = vmul.f32 %v3427, %v3427
  %v3692 = vmul.f32 %v3430, %v3430
  %v3693 = vmul.f32 %v3435, %v3435
  %v3694 = vmul.f32 %v3438, %v3438
  %v3695 = vmul.f32 %v3443, %v3443
  %v3696 = vmul.f32 %v3446, %v3446
  %v3697 = vmul.f32 %v3451, %v3451
  %v3698 = vmul.f32 %v3454, %v3454
  %v3699 = vmul.f32 %v3459, %v3459
  %v3700 = vmul.f32 %v3462, %v3462
  %v3701 = vmul.f32 %v3467, %v3467
  %v3702 = vmul.f32 %v3470, %v3470
  %v3703 = vmul.f32 %v3475, %v3475
  %v3704 = vmul.f32 %v3478, %v3478
  %v3705 = vmul.f32 %v3483, %v3483
  %v3706 = vmul.f32 %v3486, %v3486
  %v3707 = vmul.f32 %v3491, %v3491
  %v3708 = vmul.f32 %v3494, %v3494
  %v3709 = vmul.f32 %v3499, %v3499
  %v3710 = vmul.f32 %v3502, %v3502
  %v3711 = vmul.f32 %v3507, %v3507
  %v3712 = vmul.f32 %v3510, %v3510
  %v3713 = vmul.f32 %v3515, %v3515
  %v3714 = vmul.f32 %v3518, %v3518
  %v3715 = vmul.f32 %v3523, %v3523
  %v3716 = vmul.f32 %v3526, %v3526
  %v3717 = vmul.f32 %v3531, %v3531
  %v3718 = vmul.f32 %v3534, %v3534
  %v3719 = vmul.f32 %v3539, %v3539
  %v3720 = vmul.f32 %v3542, %v3542
  %v3721 = vmul.f32 %v3547, %v3547
  %v3722 = vmul.f32 %v3550, %v3550
  %v3723 = vmul.f32 %v3555, %v3555
  %v3724 = vmul.f32 %v3558, %v3558
  %v3725 = vmul.f32 %v3563, %v3563
  %v3726 = vmul.f32 %v3566, %v3566
  %v3727 = vmul.f32 %v3571, %v3571
  %v3728 = vmul.f32 %v3574, %v3574
  %v3729 = vmul.f32 %v3579, %v3579
  %v3730 = vmul.f32 %v3582, %v3582
  %v3731 = vmul.f32 %v3587, %v3587
  %v3732 = vmul.f32 %v3590, %v3590
  %v3733 = vmul.f32 %v3595, %v3595
  %v3734 = vmul.f32 %v3598, %v3598
  %v3735 = vadd.f32 %v3671, %v3672
  %v3736 = vadd.f32 %v3735, %v3673
  %v3737 = vadd.f32 %v3736, %v3674
  %v3738 = vadd.f32 %v3737, %v3675
  %v3739 = vadd.f32 %v3738, %v3676
  %v3740 = vadd.f32 %v3739, %v3677
  %v3741 = vadd.f32 %v3740, %v3678
  %v3742 = vadd.f32 %v3741, %v3679
  %v3743 = vadd.f32 %v3742, %v3680
  %v3744 = vadd.f32 %v3743, %v3681
  %v3745 = vadd.f32 %v3744, %v3682
  %v3746 = vadd.f32 %v3745, %v3683
  %v3747 = vadd.f32 %v3746, %v3684
  %v3748 = vadd.f32 %v3747, %v3685
  %v3749 = vadd.f32 %v3748, %v3686
  %v3750 = vadd.f32 %v3749, %v3687
  %v3751 = vadd.f32 %v3750, %v3688
  %v3752 = vadd.f32 %v3751, %v3689
  %v3753 = vadd.f32 %v3752, %v3690
  %v3754 = vadd.f32 %v3753, %v3691
  %v3755 = vadd.f32 %v3754, %v3692
  %v3756 = vadd.f32 %v3755, %v3693
  %v3757 = vadd.f32 %v3756, %v3694
  %v3758 = vadd.f32 %v3757, %v3695
  %v3759 = vadd.f32 %v3758, %v3696
  %v3760 = vadd.f32 %v3759, %v3697
  %v3761 = vadd.f32 %v3760, %v3698
  %v3762 = vadd.f32 %v3761, %v3699
  %v3763 = vadd.f32 %v3762, %v3700
  %v3764 = vadd.f32 %v3763, %v3701
  %v3765 = vadd.f32 %v3764, %v3702
  %v3766 = vadd.f32 %v3765, %v3703
  %v3767 = vadd.f32 %v3766, %v3704
  %v3768 = vadd.f32 %v3767, %v3705
  %v3769 = vadd.f32 %v3768, %v3706
  %v3770 = vadd.f32 %v3769, %v3707
  %v3771 = vadd.f32 %v3770, %v3708
  %v3772 = vadd.f32 %v3771, %v3709
  %v3773 = vadd.f32 %v3772, %v3710
  %v3774 = vadd.f32 %v3773, %v3711
  %v3775 = vadd.f32 %v3774, %v3712
  %v3776 = vadd.f32 %v3775, %v3713
  %v3777 = vadd.f32 %v3776, %v3714
  %v3778 = vadd.f32 %v3777, %v3715
  %v3779 = vadd.f32 %v3778, %v3716
  %v3780 = vadd.f32 %v3779, %v3717
  %v3781 = vadd.f32 %v3780, %v3718
  %v3782 = vadd.f32 %v3781, %v3719
  %v3783 = vadd.f32 %v3782, %v3720
  %v3784 = vadd.f32 %v3783, %v3721
  %v3785 = vadd.f32 %v3784, %v3722
  %v3786 = vadd.f32 %v3785, %v3723
  %v3787 = vadd.f32 %v3786, %v3724
  %v3788 = vadd.f32 %v3787, %v3725
  %v3789 = vadd.f32 %v3788, %v3726
  %v3790 = vadd.f32 %v3789, %v3727
  %v3791 = vadd.f32 %v3790, %v3728
  %v3792 = vadd.f32 %v3791, %v3729
  %v3793 = vadd.f32 %v3792, %v3730
  %v3794 = vadd.f32 %v3793, %v3731
  %v3795 = vadd.f32 %v3794, %v3732
  %v3796 = vadd.f32 %v3795, %v3733
  %v3797 = vadd.f32 %v3796, %v3734
  %v3798 = vrot.slane %v3797, 4
  %v3799 = vadd.f32 %v3797, %v3798
  %v3800 = vrot.slane %v3799, 2
  %v3801 = vadd.f32 %v3799, %v3800
  %v3802 = vrot.slane %v3801, 1
  %v3803 = vadd.f32 %v3801, %v3802
  %v3804 = vmul.f32 %v3803, 0.001953125
  %v3805 = vmul.f32 %v3670, %v3670
  %v3806 = vsub.f32 %v3804, %v3805
  %v3807 = vld [vmem:[%s4] sm:$0x1]
  %v3808 = vadd.f32 %v3806, 0.001
  %v3809 = vrsqrt.pop %v3808
  %v3810 = vmul.f32 %v3807, %v3809
  %v3811 = vld [vmem:[%s5] sm:$0x1]
  %v3812 = vmul.f32 %v3670, %v3810
  %v3813 = vsub.f32 %v3811, %v3812
  %v3815 = vlaneseq
  %v3816 = vshrl.u32 %v3815, 7
  %v3817 = vsub.s32 0, %v3816
  %v3818 = vrot.slane %v3810, %v3817
  %v3820 = vmul.f32 %v3347, %v3818
  %v3821 = vmul.f32 %v3350, %v3818
  %v3822 = vmul.f32 %v3355, %v3818
  %v3823 = vmul.f32 %v3358, %v3818
  %v3824 = vmul.f32 %v3363, %v3818
  %v3825 = vmul.f32 %v3366, %v3818
  %v3826 = vmul.f32 %v3371, %v3818
  %v3827 = vmul.f32 %v3374, %v3818
  %v3828 = vmul.f32 %v3379, %v3818
  %v3829 = vmul.f32 %v3382, %v3818
  %v3830 = vmul.f32 %v3387, %v3818
  %v3831 = vmul.f32 %v3390, %v3818
  %v3832 = vmul.f32 %v3395, %v3818
  %v3833 = vmul.f32 %v3398, %v3818
  %v3834 = vmul.f32 %v3403, %v3818
  %v3835 = vmul.f32 %v3406, %v3818
  %v3836 = vmul.f32 %v3411, %v3818
  %v3837 = vmul.f32 %v3414, %v3818
  %v3838 = vmul.f32 %v3419, %v3818
  %v3839 = vmul.f32 %v3422, %v3818
  %v3840 = vmul.f32 %v3427, %v3818
  %v3841 = vmul.f32 %v3430, %v3818
  %v3842 = vmul.f32 %v3435, %v3818
  %v3843 = vmul.f32 %v3438, %v3818
  %v3844 = vmul.f32 %v3443, %v3818
  %v3845 = vmul.f32 %v3446, %v3818
  %v3846 = vmul.f32 %v3451, %v3818
  %v3847 = vmul.f32 %v3454, %v3818
  %v3848 = vmul.f32 %v3459, %v3818
  %v3849 = vmul.f32 %v3462, %v3818
  %v3850 = vmul.f32 %v3467, %v3818
  %v3851 = vmul.f32 %v3470, %v3818
  %v3852 = vmul.f32 %v3475, %v3818
  %v3853 = vmul.f32 %v3478, %v3818
  %v3854 = vmul.f32 %v3483, %v3818
  %v3855 = vmul.f32 %v3486, %v3818
  %v3856 = vmul.f32 %v3491, %v3818
  %v3857 = vmul.f32 %v3494, %v3818
  %v3858 = vmul.f32 %v3499, %v3818
  %v3859 = vmul.f32 %v3502, %v3818
  %v3860 = vmul.f32 %v3507, %v3818
  %v3861 = vmul.f32 %v3510, %v3818
  %v3862 = vmul.f32 %v3515, %v3818
  %v3863 = vmul.f32 %v3518, %v3818
  %v3864 = vmul.f32 %v3523, %v3818
  %v3865 = vmul.f32 %v3526, %v3818
  %v3866 = vmul.f32 %v3531, %v3818
  %v3867 = vmul.f32 %v3534, %v3818
  %v3868 = vmul.f32 %v3539, %v3818
  %v3869 = vmul.f32 %v3542, %v3818
  %v3870 = vmul.f32 %v3547, %v3818
  %v3871 = vmul.f32 %v3550, %v3818
  %v3872 = vmul.f32 %v3555, %v3818
  %v3873 = vmul.f32 %v3558, %v3818
  %v3874 = vmul.f32 %v3563, %v3818
  %v3875 = vmul.f32 %v3566, %v3818
  %v3876 = vmul.f32 %v3571, %v3818
  %v3877 = vmul.f32 %v3574, %v3818
  %v3878 = vmul.f32 %v3579, %v3818
  %v3879 = vmul.f32 %v3582, %v3818
  %v3880 = vmul.f32 %v3587, %v3818
  %v3881 = vmul.f32 %v3590, %v3818
  %v3882 = vmul.f32 %v3595, %v3818
  %v3883 = vmul.f32 %v3598, %v3818
  %v3885 = vlaneseq
  %v3886 = vshrl.u32 %v3885, 7
  %v3887 = vsub.s32 0, %v3886
  %v3888 = vrot.slane %v3813, %v3887
  %v3890 = vadd.f32 %v3820, %v3888
  %v3891 = vadd.f32 %v3821, %v3888
  %v3892 = vadd.f32 %v3822, %v3888
  %v3893 = vadd.f32 %v3823, %v3888
  %v3894 = vadd.f32 %v3824, %v3888
  %v3895 = vadd.f32 %v3825, %v3888
  %v3896 = vadd.f32 %v3826, %v3888
  %v3897 = vadd.f32 %v3827, %v3888
  %v3898 = vadd.f32 %v3828, %v3888
  %v3899 = vadd.f32 %v3829, %v3888
  %v3900 = vadd.f32 %v3830, %v3888
  %v3901 = vadd.f32 %v3831, %v3888
  %v3902 = vadd.f32 %v3832, %v3888
  %v3903 = vadd.f32 %v3833, %v3888
  %v3904 = vadd.f32 %v3834, %v3888
  %v3905 = vadd.f32 %v3835, %v3888
  %v3906 = vadd.f32 %v3836, %v3888
  %v3907 = vadd.f32 %v3837, %v3888
  %v3908 = vadd.f32 %v3838, %v3888
  %v3909 = vadd.f32 %v3839, %v3888
  %v3910 = vadd.f32 %v3840, %v3888
  %v3911 = vadd.f32 %v3841, %v3888
  %v3912 = vadd.f32 %v3842, %v3888
  %v3913 = vadd.f32 %v3843, %v3888
  %v3914 = vadd.f32 %v3844, %v3888
  %v3915 = vadd.f32 %v3845, %v3888
  %v3916 = vadd.f32 %v3846, %v3888
  %v3917 = vadd.f32 %v3847, %v3888
  %v3918 = vadd.f32 %v3848, %v3888
  %v3919 = vadd.f32 %v3849, %v3888
  %v3920 = vadd.f32 %v3850, %v3888
  %v3921 = vadd.f32 %v3851, %v3888
  %v3922 = vadd.f32 %v3852, %v3888
  %v3923 = vadd.f32 %v3853, %v3888
  %v3924 = vadd.f32 %v3854, %v3888
  %v3925 = vadd.f32 %v3855, %v3888
  %v3926 = vadd.f32 %v3856, %v3888
  %v3927 = vadd.f32 %v3857, %v3888
  %v3928 = vadd.f32 %v3858, %v3888
  %v3929 = vadd.f32 %v3859, %v3888
  %v3930 = vadd.f32 %v3860, %v3888
  %v3931 = vadd.f32 %v3861, %v3888
  %v3932 = vadd.f32 %v3862, %v3888
  %v3933 = vadd.f32 %v3863, %v3888
  %v3934 = vadd.f32 %v3864, %v3888
  %v3935 = vadd.f32 %v3865, %v3888
  %v3936 = vadd.f32 %v3866, %v3888
  %v3937 = vadd.f32 %v3867, %v3888
  %v3938 = vadd.f32 %v3868, %v3888
  %v3939 = vadd.f32 %v3869, %v3888
  %v3940 = vadd.f32 %v3870, %v3888
  %v3941 = vadd.f32 %v3871, %v3888
  %v3942 = vadd.f32 %v3872, %v3888
  %v3943 = vadd.f32 %v3873, %v3888
  %v3944 = vadd.f32 %v3874, %v3888
  %v3945 = vadd.f32 %v3875, %v3888
  %v3946 = vadd.f32 %v3876, %v3888
  %v3947 = vadd.f32 %v3877, %v3888
  %v3948 = vadd.f32 %v3878, %v3888
  %v3949 = vadd.f32 %v3879, %v3888
  %v3950 = vadd.f32 %v3880, %v3888
  %v3951 = vadd.f32 %v3881, %v3888
  %v3952 = vadd.f32 %v3882, %v3888
  %v3953 = vadd.f32 %v3883, %v3888
  %3954 = vst [vmem:[%s6] sm:$0xff] %v3890
  %3955 = vst [vmem:[%s6 + $0x8] sm:$0xff] %v3891
  %3956 = vst [vmem:[%s6 + $0x10] sm:$0xff] %v3892
  %3957 = vst [vmem:[%s6 + $0x18] sm:$0xff] %v3893
  %3958 = vst [vmem:[%s6 + $0x20] sm:$0xff] %v3894
  %3959 = vst [vmem:[%s6 + $0x28] sm:$0xff] %v3895
  %3960 = vst [vmem:[%s6 + $0x30] sm:$0xff] %v3896
  %3961 = vst [vmem:[%s6 + $0x38] sm:$0xff] %v3897
  %3962 = vst [vmem:[%s6 + $0x40] sm:$0xff] %v3898
  %3963 = vst [vmem:[%s6 + $0x48] sm:$0xff] %v3899
  %3964 = vst [vmem:[%s6 + $0x50] sm:$0xff] %v3900
  %3965 = vst [vmem:[%s6 + $0x58] sm:$0xff] %v3901
  %3966 = vst [vmem:[%s6 + $0x60] sm:$0xff] %v3902
  %3967 = vst [vmem:[%s6 + $0x68] sm:$0xff] %v3903
  %3968 = vst [vmem:[%s6 + $0x70] sm:$0xff] %v3904
  %3969 = vst [vmem:[%s6 + $0x78] sm:$0xff] %v3905
  %3970 = vst [vmem:[%s6 + $0x80] sm:$0xff] %v3906
  %3971 = vst [vmem:[%s6 + $0x88] sm:$0xff] %v3907
  %3972 = vst [vmem:[%s6 + $0x90] sm:$0xff] %v3908
  %3973 = vst [vmem:[%s6 + $0x98] sm:$0xff] %v3909
  %3974 = vst [vmem:[%s6 + $0xa0] sm:$0xff] %v3910
  %3975 = vst [vmem:[%s6 + $0xa8] sm:$0xff] %v3911
  %3976 = vst [vmem:[%s6 + $0xb0] sm:$0xff] %v3912
  %3977 = vst [vmem:[%s6 + $0xb8] sm:$0xff] %v3913
  %3978 = vst [vmem:[%s6 + $0xc0] sm:$0xff] %v3914
  %3979 = vst [vmem:[%s6 + $0xc8] sm:$0xff] %v3915
  %3980 = vst [vmem:[%s6 + $0xd0] sm:$0xff] %v3916
  %3981 = vst [vmem:[%s6 + $0xd8] sm:$0xff] %v3917
  %3982 = vst [vmem:[%s6 + $0xe0] sm:$0xff] %v3918
  %3983 = vst [vmem:[%s6 + $0xe8] sm:$0xff] %v3919
  %3984 = vst [vmem:[%s6 + $0xf0] sm:$0xff] %v3920
  %3985 = vst [vmem:[%s6 + $0xf8] sm:$0xff] %v3921
  %3986 = vst [vmem:[%s6 + $0x100] sm:$0xff] %v3922
  %3987 = vst [vmem:[%s6 + $0x108] sm:$0xff] %v3923
  %3988 = vst [vmem:[%s6 + $0x110] sm:$0xff] %v3924
  %3989 = vst [vmem:[%s6 + $0x118] sm:$0xff] %v3925
  %3990 = vst [vmem:[%s6 + $0x120] sm:$0xff] %v3926
  %3991 = vst [vmem:[%s6 + $0x128] sm:$0xff] %v3927
  %3992 = vst [vmem:[%s6 + $0x130] sm:$0xff] %v3928
  %3993 = vst [vmem:[%s6 + $0x138] sm:$0xff] %v3929
  %3994 = vst [vmem:[%s6 + $0x140] sm:$0xff] %v3930
  %3995 = vst [vmem:[%s6 + $0x148] sm:$0xff] %v3931
  %3996 = vst [vmem:[%s6 + $0x150] sm:$0xff] %v3932
  %3997 = vst [vmem:[%s6 + $0x158] sm:$0xff] %v3933
  %3998 = vst [vmem:[%s6 + $0x160] sm:$0xff] %v3934
  %3999 = vst [vmem:[%s6 + $0x168] sm:$0xff] %v3935
  %4000 = vst [vmem:[%s6 + $0x170] sm:$0xff] %v3936
  %4001 = vst [vmem:[%s6 + $0x178] sm:$0xff] %v3937
  %4002 = vst [vmem:[%s6 + $0x180] sm:$0xff] %v3938
  %4003 = vst [vmem:[%s6 + $0x188] sm:$0xff] %v3939
  %4004 = vst [vmem:[%s6 + $0x190] sm:$0xff] %v3940
  %4005 = vst [vmem:[%s6 + $0x198] sm:$0xff] %v3941
  %4006 = vst [vmem:[%s6 + $0x1a0] sm:$0xff] %v3942
  %4007 = vst [vmem:[%s6 + $0x1a8] sm:$0xff] %v3943
  %4008 = vst [vmem:[%s6 + $0x1b0] sm:$0xff] %v3944
  %4009 = vst [vmem:[%s6 + $0x1b8] sm:$0xff] %v3945
  %4010 = vst [vmem:[%s6 + $0x1c0] sm:$0xff] %v3946
  %4011 = vst [vmem:[%s6 + $0x1c8] sm:$0xff] %v3947
  %4012 = vst [vmem:[%s6 + $0x1d0] sm:$0xff] %v3948
  %4013 = vst [vmem:[%s6 + $0x1d8] sm:$0xff] %v3949
  %4014 = vst [vmem:[%s6 + $0x1e0] sm:$0xff] %v3950
  %4015 = vst [vmem:[%s6 + $0x1e8] sm:$0xff] %v3951
  %4016 = vst [vmem:[%s6 + $0x1f0] sm:$0xff] %v3952
  %4017 = vst [vmem:[%s6 + $0x1f8] sm:$0xff] %v3953
  // Predicated region
  $region26: #{bn_relu_conv_bn.1} parent=0 // pred_check
    _
  $region27: #{bn_relu_conv_bn.1} parent=0 // pred_check_branch
    %4019 = sbr.rel (0) target = $region29
  $region28: #{bn_relu_conv_bn.1} parent=0 // pred_region
    _
  $region29: #{bn_relu_conv_bn.1} parent=0 // pred_fallthru
    _
  // Predicated region
  $region30: #{bn_relu_conv_bn.1} parent=0 // pred_check
    _
  $region31: #{bn_relu_conv_bn.1} parent=0 // pred_check_branch
    %4021 = sbr.rel (0) target = $region33
  $region32: #{bn_relu_conv_bn.1} parent=0 // pred_region
    _
  $region33: #{bn_relu_conv_bn.1} parent=0 // pred_fallthru
    _

</llo_original>
